<compile_context>
chip_gen: v5e
topology: v5e:2x2
jax: 0.10.0
libtpu: 0.0.40
codegen_flags: <defaults>
</compile_context>

<pallas_src>
import functools

import jax
import jax.numpy as jnp
from jax.experimental import pallas as pl
from jax.experimental.pallas import tpu as pltpu


PAD = 128  # lane-dense feature width for all padded feature dims


# ----------------------------------------------------------------------------
# Fused Pallas kernel: entire HSSPPI forward for one graph per grid step.
# ----------------------------------------------------------------------------

def _hssppi_kernel(node_ref, edge_ref, a2r_ref,
                   gcn_w_ref, gcn_b_ref, proj_w_ref, proj_b_ref,
                   w1_ref, b1_ref, w2_ref, b2_ref,
                   out_ref, *, num_layer, n_atoms, n_res):
    f32, bf16 = jnp.float32, jnp.bfloat16
    nt = n_atoms + n_res

    edge = edge_ref[...]                               # (nt, nt) bf16 block-diag

    # Row masks separating atom rows (0..n_atoms-1) from residue rows.
    row_ids = jax.lax.broadcasted_iota(jnp.int32, (nt, 1), 0)
    is_atom = row_ids < n_atoms                        # (nt, 1) bool
    atom_m = jnp.where(is_atom, 1.0, 0.0).astype(bf16)
    res_m = jnp.where(is_atom, 0.0, 1.0).astype(bf16)

    def stage(h, stage_idx):
        # h: bf16 (nt, PAD); rows [:n_atoms] atom features, [n_atoms:] residue.
        for l in range(num_layer):
            idx = stage_idx * num_layer + l
            # Merged A@H: block-diagonal edge -> one matmul for both paths.
            ah = jnp.dot(edge, h, preferred_element_type=f32)
            ah_b = ah.astype(bf16)
            # K-stacked H@W: atoms use the top PAD rows of the stacked weight,
            # residues the bottom PAD rows; route rows by zero-masking the
            # half each row does not use (exact: zero contributions).
            ah2 = jnp.concatenate([ah_b * atom_m, ah_b * res_m], axis=1)
            hw = jnp.dot(ah2, gcn_w_ref[idx], preferred_element_type=f32)
            b_pair = gcn_b_ref[idx]                    # (2, PAD) f32
            bias = jnp.where(is_atom, b_pair[0:1, :], b_pair[1:2, :])
            h = jnp.maximum(hw + bias, 0.0).astype(bf16)
        # Bi-directional output projection, same K-stacked routing.
        h2 = jnp.concatenate([h * atom_m, h * res_m], axis=1)
        out = jnp.dot(h2, proj_w_ref[stage_idx], preferred_element_type=f32)
        pb = proj_b_ref[stage_idx]                     # (2, PAD) f32
        return out + jnp.where(is_atom, pb[0:1, :], pb[1:2, :])  # (nt, PAD) f32

    # Combine matrix T = [[I, 0], [OneHot, I]] (entries {0,1} -> exact bf16):
    #   rows [:n_atoms]  of T@X = atom outputs (pass-through)
    #   rows [n_atoms:]  of T@X = residue outputs + atom2residue scatter-add
    rr = jax.lax.broadcasted_iota(jnp.int32, (nt, nt), 0)
    cc = jax.lax.broadcasted_iota(jnp.int32, (nt, nt), 1)
    a2r = a2r_ref[...]                                 # (1, nt) int32, padded cols = nt (sentinel)
    t_mat = ((rr == cc) | (rr == a2r + n_atoms)).astype(bf16)

    # Stage 1
    out1 = stage(node_ref[...], 0)
    comb1 = jnp.dot(t_mat, out1.astype(bf16), preferred_element_type=f32)
    # Stage 2 (atom input = a_out1, residue input = ar_out1 = rows of comb1)
    out2 = stage(comb1.astype(bf16), 1)
    comb2 = jnp.dot(t_mat, out2.astype(bf16), preferred_element_type=f32)

    skip = comb1[n_atoms:, :] + comb2[n_atoms:, :]     # (n_res, PAD) f32

    # MLP head: Linear -> ReLU -> (Dropout=id) -> Linear -> Sigmoid.
    h = jnp.dot(skip.astype(bf16), w1_ref[...],
                preferred_element_type=f32) + b1_ref[...]
    h = jnp.maximum(h, 0.0)
    # (mlp_dim -> 1) projection on VPU/XLU: elementwise mul + lane reduce.
    z = jnp.sum(h * w2_ref[...], axis=-1, keepdims=True) + b2_ref[0, 0]
    # Lane-dense store: broadcast the per-residue result across all 128 lanes.
    out_ref[...] = jnp.broadcast_to(jax.nn.sigmoid(z), (n_res, PAD))


# ----------------------------------------------------------------------------
# Parameter construction (padded, K-stacked, bf16 weights) — plain JAX glue.
# ----------------------------------------------------------------------------

def _pad_to(x, shape):
    out = jnp.zeros(shape, x.dtype)
    return out.at[tuple(slice(0, s) for s in x.shape)].set(x)


def _init_linear(key, d_in, d_out, scale=0.1):
    kw, kb = jax.random.split(key)
    w = scale * jax.random.normal(kw, (d_in, d_out), jnp.float32)
    b = scale * jax.random.normal(kb, (d_out,), jnp.float32)
    return w, b


def init_hssppi_params(key, a_in_dim, r_in_dim, h_dim1, h_dim2, num_layer, bi,
                       mlp_dim, pad=PAD):
    out_w = h_dim2 * 2 if bi else h_dim2
    assert max(a_in_dim, r_in_dim, h_dim1, out_w, mlp_dim) <= pad
    keys = jax.random.split(key, 2 * (2 * num_layer + 4) + 2)
    ki = 0
    stage_in = [(a_in_dim, r_in_dim), (out_w, out_w)]

    gcn_w, gcn_b, proj_w, proj_b = [], [], [], []
    for stage in range(2):
        d = list(stage_in[stage])                      # [atom_in, residue_in]
        for _ in range(num_layer):
            hw, hb = [], []
            for half in range(2):                      # 0 = atom, 1 = residue
                w, b = _init_linear(keys[ki], d[half], h_dim1); ki += 1
                hw.append(_pad_to(w, (pad, pad)))
                hb.append(_pad_to(b.reshape(1, -1), (1, pad)))
            gcn_w.append(jnp.concatenate(hw, axis=0))  # (2*pad, pad) K-stacked
            gcn_b.append(jnp.concatenate(hb, axis=0))  # (2, pad)
            d = [h_dim1, h_dim1]
        hw, hb = [], []
        for half in range(2):
            wf, bf_ = _init_linear(keys[ki], h_dim1, h_dim2); ki += 1
            if bi:
                wb, bb = _init_linear(keys[ki], h_dim1, h_dim2); ki += 1
                wcat = jnp.concatenate([wf, wb], axis=1)
                bcat = jnp.concatenate([bf_, bb], axis=0)
            else:
                wcat, bcat = wf, bf_
            hw.append(_pad_to(wcat, (pad, pad)))
            hb.append(_pad_to(bcat.reshape(1, -1), (1, pad)))
        proj_w.append(jnp.concatenate(hw, axis=0))     # (2*pad, pad)
        proj_b.append(jnp.concatenate(hb, axis=0))     # (2, pad)

    w1, b1 = _init_linear(keys[ki], out_w, mlp_dim); ki += 1
    w2, b2 = _init_linear(keys[ki], mlp_dim, 1); ki += 1

    return {
        "gcn_w": jnp.stack(gcn_w).astype(jnp.bfloat16),   # (2*num_layer, 2*pad, pad)
        "gcn_b": jnp.stack(gcn_b),                        # (2*num_layer, 2, pad) f32
        "proj_w": jnp.stack(proj_w).astype(jnp.bfloat16), # (2, 2*pad, pad)
        "proj_b": jnp.stack(proj_b),                      # (2, 2, pad) f32
        "w1": _pad_to(w1, (pad, pad)).astype(jnp.bfloat16),
        "b1": _pad_to(b1.reshape(1, -1), (1, pad)),
        "w2": _pad_to(w2.reshape(1, -1), (1, pad)),       # row-vector (VPU path)
        "b2": b2.reshape(1, 1),                           # scalar bias -> SMEM
    }


# ----------------------------------------------------------------------------
# Forward wrapper (one batched pallas_call) + pure-JAX reference.
# ----------------------------------------------------------------------------

def _prep_inputs(a_node, a_edge, r_node, r_edge, a2r_map, pad=PAD):
    """Build per-graph stacked nodes, block-diag edges and padded a2r."""
    b, n_atoms = a_node.shape[0], a_node.shape[1]
    n_res = r_node.shape[1]
    nt = n_atoms + n_res
    assert n_atoms % 8 == 0 and n_res % 8 == 0  # TODO(synk): pad rows otherwise

    node = jnp.zeros((b, nt, pad), jnp.float32)
    node = node.at[:, :n_atoms, :a_node.shape[-1]].set(a_node)
    node = node.at[:, n_atoms:, :r_node.shape[-1]].set(r_node)

    edge = jnp.zeros((b, nt, nt), jnp.float32)
    edge = edge.at[:, :n_atoms, :n_atoms].set(a_edge)
    edge = edge.at[:, n_atoms:, n_atoms:].set(r_edge)

    a2r = jnp.full((b, 1, nt), nt, jnp.int32)          # sentinel nt -> never matches
    a2r = a2r.at[:, 0, :n_atoms].set(a2r_map.astype(jnp.int32))
    return node.astype(jnp.bfloat16), edge.astype(jnp.bfloat16), a2r


def hssppi_forward(params, a_node, a_edge, r_node, r_edge, a2r_map, *,
                   num_layer, pad=PAD):
    node, edge, a2r = _prep_inputs(a_node, a_edge, r_node, r_edge, a2r_map, pad)
    b_graphs, nt, _ = node.shape
    n_atoms, n_res = a_node.shape[1], r_node.shape[1]

    kernel = functools.partial(_hssppi_kernel, num_layer=num_layer,
                               n_atoms=n_atoms, n_res=n_res)

    def per_graph(shape):     # pipelined per-graph blocks (leading dim squeezed)
        return pl.BlockSpec((None,) + shape, lambda b: (b,) + (0,) * len(shape))

    def resident(arr):        # whole-array, constant index -> stays VMEM-resident
        return pl.BlockSpec(arr.shape, lambda b, _n=arr.ndim: (0,) * _n)

    in_specs = [
        per_graph((nt, pad)),                               # node
        per_graph((nt, nt)),                                # edge (block-diag)
        per_graph((1, nt)),                                 # a2r map
        resident(params["gcn_w"]), resident(params["gcn_b"]),
        resident(params["proj_w"]), resident(params["proj_b"]),
        resident(params["w1"]), resident(params["b1"]), resident(params["w2"]),
        pl.BlockSpec(memory_space=pltpu.MemorySpace.SMEM),  # b2 scalar
    ]
    out_spec = pl.BlockSpec((None, n_res, pad), lambda b: (b, 0, 0))

    # Advisory cost estimate so XLA can overlap this tiny call with neighbors.
    mm = lambda m, k, n: 2 * m * k * n
    flops_stage = (num_layer * (mm(nt, nt, pad) + mm(nt, 2 * pad, pad))
                   + mm(nt, 2 * pad, pad))
    flops_graph = (2 * flops_stage + 2 * mm(nt, nt, pad)
                   + mm(n_res, pad, pad) + 4 * n_res * pad)
    in_bytes = sum(int(x.size) * x.dtype.itemsize for x in
                   (node, edge, a2r, params["gcn_w"], params["gcn_b"],
                    params["proj_w"], params["proj_b"], params["w1"],
                    params["b1"], params["w2"], params["b2"]))
    cost = pl.CostEstimate(flops=b_graphs * flops_graph,
                           transcendentals=b_graphs * n_res,
                           bytes_accessed=in_bytes + b_graphs * n_res * pad * 4)

    out = pl.pallas_call(
        kernel,
        out_shape=jax.ShapeDtypeStruct((b_graphs, n_res, pad), jnp.float32),
        grid=(b_graphs,),
        in_specs=in_specs,
        out_specs=out_spec,
        compiler_params=pltpu.CompilerParams(dimension_semantics=("parallel",)),
        cost_estimate=cost,
    )(node, edge, a2r,
      params["gcn_w"], params["gcn_b"], params["proj_w"], params["proj_b"],
      params["w1"], params["b1"], params["w2"], params["b2"])
    return out[..., :1]                                     # (B, n_res, 1)


def _reference_forward(params, node, edge, a2r, *, num_layer, n_atoms, n_res):
    """Plain-JAX per-graph replica (separate atom/residue paths, same casts)."""
    f32, bf16 = jnp.float32, jnp.bfloat16
    pad = params["w1"].shape[0]
    a_node, r_node = node[:n_atoms], node[n_atoms:]
    a_edge = edge[:n_atoms, :n_atoms]
    r_edge = edge[n_atoms:, n_atoms:]
    a2r_v = a2r[0, :n_atoms]

    def block(h, e, stage, half):
        h = h.astype(bf16)
        for l in range(num_layer):
            idx = stage * num_layer + l
            w = params["gcn_w"][idx, half * pad:(half + 1) * pad]
            b = params["gcn_b"][idx, half:half + 1]
            ah = jnp.dot(e, h, preferred_element_type=f32)
            hw = jnp.dot(ah.astype(bf16), w, preferred_element_type=f32)
            h = jnp.maximum(hw + b, 0.0).astype(bf16)
        w = params["proj_w"][stage, half * pad:(half + 1) * pad]
        b = params["proj_b"][stage, half:half + 1]
        return jnp.dot(h, w, preferred_element_type=f32) + b

    one_hot = (jnp.arange(n_res)[:, None] == a2r_v[None, :]).astype(bf16)
    a1 = block(a_node, a_edge, 0, 0)
    r1 = block(r_node, r_edge, 0, 1)
    ar1 = r1 + jnp.dot(one_hot, a1.astype(bf16), preferred_element_type=f32)
    a2 = block(a1, a_edge, 1, 0)
    r2 = block(ar1, r_edge, 1, 1)
    ar2 = r2 + jnp.dot(one_hot, a2.astype(bf16), preferred_element_type=f32)
    skip = ar1 + ar2
    h = jnp.maximum(jnp.dot(skip.astype(bf16), params["w1"],
                            preferred_element_type=f32) + params["b1"], 0.0)
    z = jnp.sum(h * params["w2"], axis=-1, keepdims=True) + params["b2"][0, 0]
    return jax.nn.sigmoid(z)


# ----------------------------------------------------------------------------
# Main
# ----------------------------------------------------------------------------

if __name__ == "__main__":
    B = 2
    N_ATOMS, N_RES = 64, 32
    A_IN, R_IN = 16, 20
    H1, H2 = 32, 16
    NUM_LAYER, BI = 2, True
    MLP_DIM = 64

    key = jax.random.PRNGKey(0)
    k_params, k_an, k_ae, k_rn, k_re, k_map = jax.random.split(key, 6)

    params = init_hssppi_params(k_params, A_IN, R_IN, H1, H2, NUM_LAYER, BI,
                                MLP_DIM)

    a_node = jax.random.normal(k_an, (B, N_ATOMS, A_IN), jnp.float32)
    a_edge = (jax.random.uniform(k_ae, (B, N_ATOMS, N_ATOMS)) < 0.2).astype(jnp.float32)
    a_edge = a_edge + jnp.eye(N_ATOMS, dtype=jnp.float32)[None]      # self loops
    r_node = jax.random.normal(k_rn, (B, N_RES, R_IN), jnp.float32)
    r_edge = (jax.random.uniform(k_re, (B, N_RES, N_RES)) < 0.3).astype(jnp.float32)
    r_edge = r_edge + jnp.eye(N_RES, dtype=jnp.float32)[None]
    a2r_map = jax.random.randint(k_map, (B, N_ATOMS), 0, N_RES, dtype=jnp.int32)

    out = hssppi_forward(params, a_node, a_edge, r_node, r_edge, a2r_map,
                         num_layer=NUM_LAYER)
    out = jax.block_until_ready(out)

    assert out.shape == (B, N_RES, 1), out.shape
    assert bool(jnp.all(jnp.isfinite(out)))
    assert bool(jnp.all((out >= 0.0) & (out <= 1.0)))                # sigmoid range

    # Numerical check against a plain-JAX per-graph replica.
    node, edge, a2r = _prep_inputs(a_node, a_edge, r_node, r_edge, a2r_map)
    for b in range(B):
        ref = _reference_forward(params, node[b], edge[b], a2r[b],
                                 num_layer=NUM_LAYER, n_atoms=N_ATOMS,
                                 n_res=N_RES)
        err = float(jnp.max(jnp.abs(out[b] - ref)))
        assert err < 5e-2, f"kernel/reference mismatch on graph {b}: {err}"

    print("KERNEL_OK")
</pallas_src>

<mosaic_0001>
module attributes {stable_mosaic.version = 11 : i64} {
  func.func @_hssppi_kernel(%arg0: i32, %arg1: memref<1x96x128xbf16, #tpu.memory_space<vmem>>, %arg2: memref<1x96x96xbf16, #tpu.memory_space<vmem>>, %arg3: memref<1x1x96xi32, #tpu.memory_space<vmem>>, %arg4: memref<4x256x128xbf16, #tpu.memory_space<vmem>>, %arg5: memref<4x2x128xf32, #tpu.memory_space<vmem>>, %arg6: memref<2x256x128xbf16, #tpu.memory_space<vmem>>, %arg7: memref<2x2x128xf32, #tpu.memory_space<vmem>>, %arg8: memref<128x128xbf16, #tpu.memory_space<vmem>>, %arg9: memref<1x128xf32, #tpu.memory_space<vmem>>, %arg10: memref<1x128xf32, #tpu.memory_space<vmem>>, %arg11: memref<1x1xf32, #tpu.memory_space<smem>>, %arg12: memref<1x32x128xf32, #tpu.memory_space<vmem>>) attributes {dimension_semantics = [#tpu.dimension_semantics<parallel>], iteration_bounds = array<i64: 2>, scalar_prefetch = 0 : i64, scratch_operands = 0 : i64, tpu.core_type = #tpu.core_type<tc>, window_params = [{transform_indices = @transform_0, window_bounds = array<i64: 1, 96, 128>}, {transform_indices = @transform_1, window_bounds = array<i64: 1, 96, 96>}, {transform_indices = @transform_2, window_bounds = array<i64: 1, 1, 96>}, {pipeline_mode = #tpu.pipeline_mode<synchronous>, transform_indices = @transform_3, window_bounds = array<i64: 4, 256, 128>}, {pipeline_mode = #tpu.pipeline_mode<synchronous>, transform_indices = @transform_4, window_bounds = array<i64: 4, 2, 128>}, {pipeline_mode = #tpu.pipeline_mode<synchronous>, transform_indices = @transform_5, window_bounds = array<i64: 2, 256, 128>}, {pipeline_mode = #tpu.pipeline_mode<synchronous>, transform_indices = @transform_6, window_bounds = array<i64: 2, 2, 128>}, {pipeline_mode = #tpu.pipeline_mode<synchronous>, transform_indices = @transform_7, window_bounds = array<i64: 128, 128>}, {pipeline_mode = #tpu.pipeline_mode<synchronous>, transform_indices = @transform_8, window_bounds = array<i64: 1, 128>}, {pipeline_mode = #tpu.pipeline_mode<synchronous>, transform_indices = @transform_9, window_bounds = array<i64: 1, 128>}, {transform_indices = @transform_10, window_bounds = array<i64: 1, 1>}, {transform_indices = @transform_11, window_bounds = array<i64: 1, 32, 128>}]} {
    %c0 = arith.constant 0 : index
    %c0_0 = arith.constant 0 : index
    %c0_1 = arith.constant 0 : index
    %0 = vector.load %arg2[%c0, %c0_0, %c0_1] : memref<1x96x96xbf16, #tpu.memory_space<vmem>>, vector<1x96x96xbf16>
    %1 = vector.shape_cast %0 : vector<1x96x96xbf16> to vector<96x96xbf16>
    %2 = tpu.iota {dimensions = array<i32: 0>} : vector<96x1xi32>
    %c64_i32 = arith.constant 64 : i32
    %3 = vector.broadcast %c64_i32 : i32 to vector<96x1xi32>
    %4 = arith.cmpi slt, %2, %3 : vector<96x1xi32>
    %cst = arith.constant 1.000000e+00 : f32
    %cst_2 = arith.constant 0.000000e+00 : f32
    %5 = vector.broadcast %cst : f32 to vector<96x1xf32>
    %6 = vector.broadcast %cst_2 : f32 to vector<96x1xf32>
    %7 = arith.select %4, %5, %6 : vector<96x1xi1>, vector<96x1xf32>
    %8 = arith.truncf %7 : vector<96x1xf32> to vector<96x1xbf16>
    %cst_3 = arith.constant 0.000000e+00 : f32
    %cst_4 = arith.constant 1.000000e+00 : f32
    %9 = vector.broadcast %cst_3 : f32 to vector<96x1xf32>
    %10 = vector.broadcast %cst_4 : f32 to vector<96x1xf32>
    %11 = arith.select %4, %9, %10 : vector<96x1xi1>, vector<96x1xf32>
    %12 = arith.truncf %11 : vector<96x1xf32> to vector<96x1xbf16>
    %13 = tpu.iota {dimensions = array<i32: 0>} : vector<96x96xi32>
    %14 = tpu.iota {dimensions = array<i32: 1>} : vector<96x96xi32>
    %c0_5 = arith.constant 0 : index
    %c0_6 = arith.constant 0 : index
    %c0_7 = arith.constant 0 : index
    %15 = vector.load %arg3[%c0_5, %c0_6, %c0_7] : memref<1x1x96xi32, #tpu.memory_space<vmem>>, vector<1x1x96xi32>
    %16 = vector.shape_cast %15 : vector<1x1x96xi32> to vector<1x96xi32>
    %17 = arith.cmpi eq, %13, %14 : vector<96x96xi32>
    %c64_i32_8 = arith.constant 64 : i32
    %18 = vector.broadcast %c64_i32_8 : i32 to vector<1x96xi32>
    %19 = arith.addi %16, %18 : vector<1x96xi32>
    %20 = vector.broadcast %19 : vector<1x96xi32> to vector<96x96xi32>
    %21 = arith.cmpi eq, %13, %20 : vector<96x96xi32>
    %22 = arith.ori %17, %21 : vector<96x96xi1>
    %23 = arith.extui %22 : vector<96x96xi1> to vector<96x96xi32>
    %24 = arith.sitofp %23 : vector<96x96xi32> to vector<96x96xf32>
    %25 = arith.truncf %24 : vector<96x96xf32> to vector<96x96xbf16>
    %c0_9 = arith.constant 0 : index
    %c0_10 = arith.constant 0 : index
    %c0_11 = arith.constant 0 : index
    %26 = vector.load %arg1[%c0_9, %c0_10, %c0_11] : memref<1x96x128xbf16, #tpu.memory_space<vmem>>, vector<1x96x128xbf16>
    %27 = vector.shape_cast %26 : vector<1x96x128xbf16> to vector<96x128xbf16>
    %cst_12 = arith.constant dense<0.000000e+00> : vector<96x128xf32>
    %28 = tpu.matmul %1, %27, %cst_12 {dimension_numbers = #tpu.dot_dimension_numbers<[1], [0], [0], [1], [0, 0, 1, 1], [], []>} : vector<96x96xbf16>, vector<96x128xbf16>, vector<96x128xf32> -> vector<96x128xf32>
    %29 = arith.truncf %28 : vector<96x128xf32> to vector<96x128xbf16>
    %30 = vector.broadcast %8 : vector<96x1xbf16> to vector<96x128xbf16>
    %31 = arith.mulf %29, %30 : vector<96x128xbf16>
    %32 = vector.broadcast %12 : vector<96x1xbf16> to vector<96x128xbf16>
    %33 = arith.mulf %29, %32 : vector<96x128xbf16>
    %34 = tpu.concatenate %31, %33 in 1 : vector<96x128xbf16>, vector<96x128xbf16> -> vector<96x256xbf16>
    %c0_13 = arith.constant 0 : index
    %c0_14 = arith.constant 0 : index
    %c0_15 = arith.constant 0 : index
    %35 = vector.load %arg4[%c0_13, %c0_14, %c0_15] : memref<4x256x128xbf16, #tpu.memory_space<vmem>>, vector<1x256x128xbf16>
    %36 = vector.shape_cast %35 : vector<1x256x128xbf16> to vector<256x128xbf16>
    %cst_16 = arith.constant dense<0.000000e+00> : vector<96x128xf32>
    %37 = tpu.matmul %34, %36, %cst_16 {dimension_numbers = #tpu.dot_dimension_numbers<[1], [0], [0], [1], [0, 0, 1, 1], [], []>} : vector<96x256xbf16>, vector<256x128xbf16>, vector<96x128xf32> -> vector<96x128xf32>
    %c0_17 = arith.constant 0 : index
    %c0_18 = arith.constant 0 : index
    %c0_19 = arith.constant 0 : index
    %38 = vector.load %arg5[%c0_17, %c0_18, %c0_19] : memref<4x2x128xf32, #tpu.memory_space<vmem>>, vector<1x2x128xf32>
    %39 = vector.shape_cast %38 : vector<1x2x128xf32> to vector<2x128xf32>
    %40 = vector.extract_strided_slice %39 {offsets = [0, 0], sizes = [1, 128], strides = [1, 1]} : vector<2x128xf32> to vector<1x128xf32>
    %41 = vector.extract_strided_slice %39 {offsets = [1, 0], sizes = [1, 128], strides = [1, 1]} : vector<2x128xf32> to vector<1x128xf32>
    %42 = vector.shape_cast %4 : vector<96x1xi1> to vector<96x1xi1>
    %43 = vector.broadcast %42 : vector<96x1xi1> to vector<96x128xi1>
    %44 = vector.shape_cast %40 : vector<1x128xf32> to vector<1x128xf32>
    %45 = vector.broadcast %44 : vector<1x128xf32> to vector<96x128xf32>
    %46 = vector.shape_cast %41 : vector<1x128xf32> to vector<1x128xf32>
    %47 = vector.broadcast %46 : vector<1x128xf32> to vector<96x128xf32>
    %48 = arith.select %43, %45, %47 : vector<96x128xi1>, vector<96x128xf32>
    %49 = arith.addf %37, %48 : vector<96x128xf32>
    %cst_20 = arith.constant 0.000000e+00 : f32
    %50 = vector.broadcast %cst_20 : f32 to vector<96x128xf32>
    %51 = arith.maximumf %49, %50 : vector<96x128xf32>
    %52 = arith.truncf %51 : vector<96x128xf32> to vector<96x128xbf16>
    %cst_21 = arith.constant dense<0.000000e+00> : vector<96x128xf32>
    %53 = tpu.matmul %1, %52, %cst_21 {dimension_numbers = #tpu.dot_dimension_numbers<[1], [0], [0], [1], [0, 0, 1, 1], [], []>} : vector<96x96xbf16>, vector<96x128xbf16>, vector<96x128xf32> -> vector<96x128xf32>
    %54 = arith.truncf %53 : vector<96x128xf32> to vector<96x128xbf16>
    %55 = vector.broadcast %8 : vector<96x1xbf16> to vector<96x128xbf16>
    %56 = arith.mulf %54, %55 : vector<96x128xbf16>
    %57 = vector.broadcast %12 : vector<96x1xbf16> to vector<96x128xbf16>
    %58 = arith.mulf %54, %57 : vector<96x128xbf16>
    %59 = tpu.concatenate %56, %58 in 1 : vector<96x128xbf16>, vector<96x128xbf16> -> vector<96x256xbf16>
    %c1 = arith.constant 1 : index
    %c0_22 = arith.constant 0 : index
    %c0_23 = arith.constant 0 : index
    %60 = vector.load %arg4[%c1, %c0_22, %c0_23] : memref<4x256x128xbf16, #tpu.memory_space<vmem>>, vector<1x256x128xbf16>
    %61 = vector.shape_cast %60 : vector<1x256x128xbf16> to vector<256x128xbf16>
    %cst_24 = arith.constant dense<0.000000e+00> : vector<96x128xf32>
    %62 = tpu.matmul %59, %61, %cst_24 {dimension_numbers = #tpu.dot_dimension_numbers<[1], [0], [0], [1], [0, 0, 1, 1], [], []>} : vector<96x256xbf16>, vector<256x128xbf16>, vector<96x128xf32> -> vector<96x128xf32>
    %c1_25 = arith.constant 1 : index
    %c0_26 = arith.constant 0 : index
    %c0_27 = arith.constant 0 : index
    %63 = vector.load %arg5[%c1_25, %c0_26, %c0_27] : memref<4x2x128xf32, #tpu.memory_space<vmem>>, vector<1x2x128xf32>
    %64 = vector.shape_cast %63 : vector<1x2x128xf32> to vector<2x128xf32>
    %65 = vector.extract_strided_slice %64 {offsets = [0, 0], sizes = [1, 128], strides = [1, 1]} : vector<2x128xf32> to vector<1x128xf32>
    %66 = vector.extract_strided_slice %64 {offsets = [1, 0], sizes = [1, 128], strides = [1, 1]} : vector<2x128xf32> to vector<1x128xf32>
    %67 = vector.shape_cast %4 : vector<96x1xi1> to vector<96x1xi1>
    %68 = vector.broadcast %67 : vector<96x1xi1> to vector<96x128xi1>
    %69 = vector.shape_cast %65 : vector<1x128xf32> to vector<1x128xf32>
    %70 = vector.broadcast %69 : vector<1x128xf32> to vector<96x128xf32>
    %71 = vector.shape_cast %66 : vector<1x128xf32> to vector<1x128xf32>
    %72 = vector.broadcast %71 : vector<1x128xf32> to vector<96x128xf32>
    %73 = arith.select %68, %70, %72 : vector<96x128xi1>, vector<96x128xf32>
    %74 = arith.addf %62, %73 : vector<96x128xf32>
    %cst_28 = arith.constant 0.000000e+00 : f32
    %75 = vector.broadcast %cst_28 : f32 to vector<96x128xf32>
    %76 = arith.maximumf %74, %75 : vector<96x128xf32>
    %77 = arith.truncf %76 : vector<96x128xf32> to vector<96x128xbf16>
    %78 = vector.broadcast %8 : vector<96x1xbf16> to vector<96x128xbf16>
    %79 = arith.mulf %77, %78 : vector<96x128xbf16>
    %80 = vector.broadcast %12 : vector<96x1xbf16> to vector<96x128xbf16>
    %81 = arith.mulf %77, %80 : vector<96x128xbf16>
    %82 = tpu.concatenate %79, %81 in 1 : vector<96x128xbf16>, vector<96x128xbf16> -> vector<96x256xbf16>
    %c0_29 = arith.constant 0 : index
    %c0_30 = arith.constant 0 : index
    %c0_31 = arith.constant 0 : index
    %83 = vector.load %arg6[%c0_29, %c0_30, %c0_31] : memref<2x256x128xbf16, #tpu.memory_space<vmem>>, vector<1x256x128xbf16>
    %84 = vector.shape_cast %83 : vector<1x256x128xbf16> to vector<256x128xbf16>
    %cst_32 = arith.constant dense<0.000000e+00> : vector<96x128xf32>
    %85 = tpu.matmul %82, %84, %cst_32 {dimension_numbers = #tpu.dot_dimension_numbers<[1], [0], [0], [1], [0, 0, 1, 1], [], []>} : vector<96x256xbf16>, vector<256x128xbf16>, vector<96x128xf32> -> vector<96x128xf32>
    %c0_33 = arith.constant 0 : index
    %c0_34 = arith.constant 0 : index
    %c0_35 = arith.constant 0 : index
    %86 = vector.load %arg7[%c0_33, %c0_34, %c0_35] : memref<2x2x128xf32, #tpu.memory_space<vmem>>, vector<1x2x128xf32>
    %87 = vector.shape_cast %86 : vector<1x2x128xf32> to vector<2x128xf32>
    %88 = vector.extract_strided_slice %87 {offsets = [0, 0], sizes = [1, 128], strides = [1, 1]} : vector<2x128xf32> to vector<1x128xf32>
    %89 = vector.extract_strided_slice %87 {offsets = [1, 0], sizes = [1, 128], strides = [1, 1]} : vector<2x128xf32> to vector<1x128xf32>
    %90 = vector.shape_cast %4 : vector<96x1xi1> to vector<96x1xi1>
    %91 = vector.broadcast %90 : vector<96x1xi1> to vector<96x128xi1>
    %92 = vector.shape_cast %88 : vector<1x128xf32> to vector<1x128xf32>
    %93 = vector.broadcast %92 : vector<1x128xf32> to vector<96x128xf32>
    %94 = vector.shape_cast %89 : vector<1x128xf32> to vector<1x128xf32>
    %95 = vector.broadcast %94 : vector<1x128xf32> to vector<96x128xf32>
    %96 = arith.select %91, %93, %95 : vector<96x128xi1>, vector<96x128xf32>
    %97 = arith.addf %85, %96 : vector<96x128xf32>
    %98 = arith.truncf %97 : vector<96x128xf32> to vector<96x128xbf16>
    %cst_36 = arith.constant dense<0.000000e+00> : vector<96x128xf32>
    %99 = tpu.matmul %25, %98, %cst_36 {dimension_numbers = #tpu.dot_dimension_numbers<[1], [0], [0], [1], [0, 0, 1, 1], [], []>} : vector<96x96xbf16>, vector<96x128xbf16>, vector<96x128xf32> -> vector<96x128xf32>
    %100 = arith.truncf %99 : vector<96x128xf32> to vector<96x128xbf16>
    %cst_37 = arith.constant dense<0.000000e+00> : vector<96x128xf32>
    %101 = tpu.matmul %1, %100, %cst_37 {dimension_numbers = #tpu.dot_dimension_numbers<[1], [0], [0], [1], [0, 0, 1, 1], [], []>} : vector<96x96xbf16>, vector<96x128xbf16>, vector<96x128xf32> -> vector<96x128xf32>
    %102 = arith.truncf %101 : vector<96x128xf32> to vector<96x128xbf16>
    %103 = vector.broadcast %8 : vector<96x1xbf16> to vector<96x128xbf16>
    %104 = arith.mulf %102, %103 : vector<96x128xbf16>
    %105 = vector.broadcast %12 : vector<96x1xbf16> to vector<96x128xbf16>
    %106 = arith.mulf %102, %105 : vector<96x128xbf16>
    %107 = tpu.concatenate %104, %106 in 1 : vector<96x128xbf16>, vector<96x128xbf16> -> vector<96x256xbf16>
    %c2 = arith.constant 2 : index
    %c0_38 = arith.constant 0 : index
    %c0_39 = arith.constant 0 : index
    %108 = vector.load %arg4[%c2, %c0_38, %c0_39] : memref<4x256x128xbf16, #tpu.memory_space<vmem>>, vector<1x256x128xbf16>
    %109 = vector.shape_cast %108 : vector<1x256x128xbf16> to vector<256x128xbf16>
    %cst_40 = arith.constant dense<0.000000e+00> : vector<96x128xf32>
    %110 = tpu.matmul %107, %109, %cst_40 {dimension_numbers = #tpu.dot_dimension_numbers<[1], [0], [0], [1], [0, 0, 1, 1], [], []>} : vector<96x256xbf16>, vector<256x128xbf16>, vector<96x128xf32> -> vector<96x128xf32>
    %c2_41 = arith.constant 2 : index
    %c0_42 = arith.constant 0 : index
    %c0_43 = arith.constant 0 : index
    %111 = vector.load %arg5[%c2_41, %c0_42, %c0_43] : memref<4x2x128xf32, #tpu.memory_space<vmem>>, vector<1x2x128xf32>
    %112 = vector.shape_cast %111 : vector<1x2x128xf32> to vector<2x128xf32>
    %113 = vector.extract_strided_slice %112 {offsets = [0, 0], sizes = [1, 128], strides = [1, 1]} : vector<2x128xf32> to vector<1x128xf32>
    %114 = vector.extract_strided_slice %112 {offsets = [1, 0], sizes = [1, 128], strides = [1, 1]} : vector<2x128xf32> to vector<1x128xf32>
    %115 = vector.shape_cast %4 : vector<96x1xi1> to vector<96x1xi1>
    %116 = vector.broadcast %115 : vector<96x1xi1> to vector<96x128xi1>
    %117 = vector.shape_cast %113 : vector<1x128xf32> to vector<1x128xf32>
    %118 = vector.broadcast %117 : vector<1x128xf32> to vector<96x128xf32>
    %119 = vector.shape_cast %114 : vector<1x128xf32> to vector<1x128xf32>
    %120 = vector.broadcast %119 : vector<1x128xf32> to vector<96x128xf32>
    %121 = arith.select %116, %118, %120 : vector<96x128xi1>, vector<96x128xf32>
    %122 = arith.addf %110, %121 : vector<96x128xf32>
    %cst_44 = arith.constant 0.000000e+00 : f32
    %123 = vector.broadcast %cst_44 : f32 to vector<96x128xf32>
    %124 = arith.maximumf %122, %123 : vector<96x128xf32>
    %125 = arith.truncf %124 : vector<96x128xf32> to vector<96x128xbf16>
    %cst_45 = arith.constant dense<0.000000e+00> : vector<96x128xf32>
    %126 = tpu.matmul %1, %125, %cst_45 {dimension_numbers = #tpu.dot_dimension_numbers<[1], [0], [0], [1], [0, 0, 1, 1], [], []>} : vector<96x96xbf16>, vector<96x128xbf16>, vector<96x128xf32> -> vector<96x128xf32>
    %127 = arith.truncf %126 : vector<96x128xf32> to vector<96x128xbf16>
    %128 = vector.broadcast %8 : vector<96x1xbf16> to vector<96x128xbf16>
    %129 = arith.mulf %127, %128 : vector<96x128xbf16>
    %130 = vector.broadcast %12 : vector<96x1xbf16> to vector<96x128xbf16>
    %131 = arith.mulf %127, %130 : vector<96x128xbf16>
    %132 = tpu.concatenate %129, %131 in 1 : vector<96x128xbf16>, vector<96x128xbf16> -> vector<96x256xbf16>
    %c3 = arith.constant 3 : index
    %c0_46 = arith.constant 0 : index
    %c0_47 = arith.constant 0 : index
    %133 = vector.load %arg4[%c3, %c0_46, %c0_47] : memref<4x256x128xbf16, #tpu.memory_space<vmem>>, vector<1x256x128xbf16>
    %134 = vector.shape_cast %133 : vector<1x256x128xbf16> to vector<256x128xbf16>
    %cst_48 = arith.constant dense<0.000000e+00> : vector<96x128xf32>
    %135 = tpu.matmul %132, %134, %cst_48 {dimension_numbers = #tpu.dot_dimension_numbers<[1], [0], [0], [1], [0, 0, 1, 1], [], []>} : vector<96x256xbf16>, vector<256x128xbf16>, vector<96x128xf32> -> vector<96x128xf32>
    %c3_49 = arith.constant 3 : index
    %c0_50 = arith.constant 0 : index
    %c0_51 = arith.constant 0 : index
    %136 = vector.load %arg5[%c3_49, %c0_50, %c0_51] : memref<4x2x128xf32, #tpu.memory_space<vmem>>, vector<1x2x128xf32>
    %137 = vector.shape_cast %136 : vector<1x2x128xf32> to vector<2x128xf32>
    %138 = vector.extract_strided_slice %137 {offsets = [0, 0], sizes = [1, 128], strides = [1, 1]} : vector<2x128xf32> to vector<1x128xf32>
    %139 = vector.extract_strided_slice %137 {offsets = [1, 0], sizes = [1, 128], strides = [1, 1]} : vector<2x128xf32> to vector<1x128xf32>
    %140 = vector.shape_cast %4 : vector<96x1xi1> to vector<96x1xi1>
    %141 = vector.broadcast %140 : vector<96x1xi1> to vector<96x128xi1>
    %142 = vector.shape_cast %138 : vector<1x128xf32> to vector<1x128xf32>
    %143 = vector.broadcast %142 : vector<1x128xf32> to vector<96x128xf32>
    %144 = vector.shape_cast %139 : vector<1x128xf32> to vector<1x128xf32>
    %145 = vector.broadcast %144 : vector<1x128xf32> to vector<96x128xf32>
    %146 = arith.select %141, %143, %145 : vector<96x128xi1>, vector<96x128xf32>
    %147 = arith.addf %135, %146 : vector<96x128xf32>
    %cst_52 = arith.constant 0.000000e+00 : f32
    %148 = vector.broadcast %cst_52 : f32 to vector<96x128xf32>
    %149 = arith.maximumf %147, %148 : vector<96x128xf32>
    %150 = arith.truncf %149 : vector<96x128xf32> to vector<96x128xbf16>
    %151 = vector.broadcast %8 : vector<96x1xbf16> to vector<96x128xbf16>
    %152 = arith.mulf %150, %151 : vector<96x128xbf16>
    %153 = vector.broadcast %12 : vector<96x1xbf16> to vector<96x128xbf16>
    %154 = arith.mulf %150, %153 : vector<96x128xbf16>
    %155 = tpu.concatenate %152, %154 in 1 : vector<96x128xbf16>, vector<96x128xbf16> -> vector<96x256xbf16>
    %c1_53 = arith.constant 1 : index
    %c0_54 = arith.constant 0 : index
    %c0_55 = arith.constant 0 : index
    %156 = vector.load %arg6[%c1_53, %c0_54, %c0_55] : memref<2x256x128xbf16, #tpu.memory_space<vmem>>, vector<1x256x128xbf16>
    %157 = vector.shape_cast %156 : vector<1x256x128xbf16> to vector<256x128xbf16>
    %cst_56 = arith.constant dense<0.000000e+00> : vector<96x128xf32>
    %158 = tpu.matmul %155, %157, %cst_56 {dimension_numbers = #tpu.dot_dimension_numbers<[1], [0], [0], [1], [0, 0, 1, 1], [], []>} : vector<96x256xbf16>, vector<256x128xbf16>, vector<96x128xf32> -> vector<96x128xf32>
    %c1_57 = arith.constant 1 : index
    %c0_58 = arith.constant 0 : index
    %c0_59 = arith.constant 0 : index
    %159 = vector.load %arg7[%c1_57, %c0_58, %c0_59] : memref<2x2x128xf32, #tpu.memory_space<vmem>>, vector<1x2x128xf32>
    %160 = vector.shape_cast %159 : vector<1x2x128xf32> to vector<2x128xf32>
    %161 = vector.extract_strided_slice %160 {offsets = [0, 0], sizes = [1, 128], strides = [1, 1]} : vector<2x128xf32> to vector<1x128xf32>
    %162 = vector.extract_strided_slice %160 {offsets = [1, 0], sizes = [1, 128], strides = [1, 1]} : vector<2x128xf32> to vector<1x128xf32>
    %163 = vector.shape_cast %4 : vector<96x1xi1> to vector<96x1xi1>
    %164 = vector.broadcast %163 : vector<96x1xi1> to vector<96x128xi1>
    %165 = vector.shape_cast %161 : vector<1x128xf32> to vector<1x128xf32>
    %166 = vector.broadcast %165 : vector<1x128xf32> to vector<96x128xf32>
    %167 = vector.shape_cast %162 : vector<1x128xf32> to vector<1x128xf32>
    %168 = vector.broadcast %167 : vector<1x128xf32> to vector<96x128xf32>
    %169 = arith.select %164, %166, %168 : vector<96x128xi1>, vector<96x128xf32>
    %170 = arith.addf %158, %169 : vector<96x128xf32>
    %171 = arith.truncf %170 : vector<96x128xf32> to vector<96x128xbf16>
    %cst_60 = arith.constant dense<0.000000e+00> : vector<96x128xf32>
    %172 = tpu.matmul %25, %171, %cst_60 {dimension_numbers = #tpu.dot_dimension_numbers<[1], [0], [0], [1], [0, 0, 1, 1], [], []>} : vector<96x96xbf16>, vector<96x128xbf16>, vector<96x128xf32> -> vector<96x128xf32>
    %173 = vector.extract_strided_slice %99 {offsets = [64, 0], sizes = [32, 128], strides = [1, 1]} : vector<96x128xf32> to vector<32x128xf32>
    %174 = vector.extract_strided_slice %172 {offsets = [64, 0], sizes = [32, 128], strides = [1, 1]} : vector<96x128xf32> to vector<32x128xf32>
    %175 = arith.addf %173, %174 : vector<32x128xf32>
    %176 = arith.truncf %175 : vector<32x128xf32> to vector<32x128xbf16>
    %c0_61 = arith.constant 0 : index
    %c0_62 = arith.constant 0 : index
    %177 = vector.load %arg8[%c0_61, %c0_62] : memref<128x128xbf16, #tpu.memory_space<vmem>>, vector<128x128xbf16>
    %cst_63 = arith.constant dense<0.000000e+00> : vector<32x128xf32>
    %178 = tpu.matmul %176, %177, %cst_63 {dimension_numbers = #tpu.dot_dimension_numbers<[1], [0], [0], [1], [0, 0, 1, 1], [], []>} : vector<32x128xbf16>, vector<128x128xbf16>, vector<32x128xf32> -> vector<32x128xf32>
    %c0_64 = arith.constant 0 : index
    %c0_65 = arith.constant 0 : index
    %179 = vector.load %arg9[%c0_64, %c0_65] : memref<1x128xf32, #tpu.memory_space<vmem>>, vector<1x128xf32>
    %180 = vector.broadcast %179 : vector<1x128xf32> to vector<32x128xf32>
    %181 = arith.addf %178, %180 : vector<32x128xf32>
    %cst_66 = arith.constant 0.000000e+00 : f32
    %182 = vector.broadcast %cst_66 : f32 to vector<32x128xf32>
    %183 = arith.maximumf %181, %182 : vector<32x128xf32>
    %c0_67 = arith.constant 0 : index
    %c0_68 = arith.constant 0 : index
    %184 = vector.load %arg10[%c0_67, %c0_68] : memref<1x128xf32, #tpu.memory_space<vmem>>, vector<1x128xf32>
    %185 = vector.broadcast %184 : vector<1x128xf32> to vector<32x128xf32>
    %186 = arith.mulf %183, %185 : vector<32x128xf32>
    %cst_69 = arith.constant dense<0.000000e+00> : vector<32xf32>
    %187 = vector.multi_reduction <add>, %186, %cst_69 [1] : vector<32x128xf32> to vector<32xf32>
    %188 = vector.shape_cast %187 : vector<32xf32> to vector<32x1xf32>
    %c0_70 = arith.constant 0 : index
    %c0_71 = arith.constant 0 : index
    %189 = memref.load %arg11[%c0_70, %c0_71] : memref<1x1xf32, #tpu.memory_space<smem>>
    %190 = vector.broadcast %189 : f32 to vector<32x1xf32>
    %191 = arith.addf %188, %190 : vector<32x1xf32>
    %192 = arith.negf %191 : vector<32x1xf32>
    %193 = math.exp %192 : vector<32x1xf32>
    %cst_72 = arith.constant 1.000000e+00 : f32
    %194 = vector.broadcast %cst_72 : f32 to vector<32x1xf32>
    %195 = arith.addf %194, %193 : vector<32x1xf32>
    %196 = arith.divf %194, %195 : vector<32x1xf32>
    %197 = vector.shape_cast %196 : vector<32x1xf32> to vector<32x1xf32>
    %198 = vector.broadcast %197 : vector<32x1xf32> to vector<32x128xf32>
    %c0_73 = arith.constant 0 : index
    %c0_74 = arith.constant 0 : index
    %c0_75 = arith.constant 0 : index
    %199 = vector.load %arg12[%c0_73, %c0_74, %c0_75] : memref<1x32x128xf32, #tpu.memory_space<vmem>>, vector<1x32x128xf32>
    %200 = vector.shape_cast %199 : vector<1x32x128xf32> to vector<32x128xf32>
    %201 = vector.shape_cast %198 : vector<32x128xf32> to vector<1x32x128xf32>
    tpu.vector_store %arg12[%c0_73, %c0_74, %c0_75], %201 {strides = array<i32>} : memref<1x32x128xf32, #tpu.memory_space<vmem>>, vector<1x32x128xf32>,
    return
  }
  func.func @transform_0(%arg0: i32) -> (i32, i32, i32) {
    %c0_i32 = arith.constant 0 : i32
    %c0_i32_0 = arith.constant 0 : i32
    %c0_i32_1 = arith.constant 0 : i32
    return %arg0, %c0_i32, %c0_i32_0 : i32, i32, i32
  }
  func.func @transform_1(%arg0: i32) -> (i32, i32, i32) {
    %c0_i32 = arith.constant 0 : i32
    %c0_i32_0 = arith.constant 0 : i32
    %c0_i32_1 = arith.constant 0 : i32
    return %arg0, %c0_i32, %c0_i32_0 : i32, i32, i32
  }
  func.func @transform_2(%arg0: i32) -> (i32, i32, i32) {
    %c0_i32 = arith.constant 0 : i32
    %c0_i32_0 = arith.constant 0 : i32
    %c0_i32_1 = arith.constant 0 : i32
    return %arg0, %c0_i32, %c0_i32_0 : i32, i32, i32
  }
  func.func @transform_3(%arg0: i32) -> (i32, i32, i32) {
    %c0_i32 = arith.constant 0 : i32
    %c0_i32_0 = arith.constant 0 : i32
    %c0_i32_1 = arith.constant 0 : i32
    %c0_i32_2 = arith.constant 0 : i32
    return %c0_i32, %c0_i32_0, %c0_i32_1 : i32, i32, i32
  }
  func.func @transform_4(%arg0: i32) -> (i32, i32, i32) {
    %c0_i32 = arith.constant 0 : i32
    %c0_i32_0 = arith.constant 0 : i32
    %c0_i32_1 = arith.constant 0 : i32
    %c0_i32_2 = arith.constant 0 : i32
    return %c0_i32, %c0_i32_0, %c0_i32_1 : i32, i32, i32
  }
  func.func @transform_5(%arg0: i32) -> (i32, i32, i32) {
    %c0_i32 = arith.constant 0 : i32
    %c0_i32_0 = arith.constant 0 : i32
    %c0_i32_1 = arith.constant 0 : i32
    %c0_i32_2 = arith.constant 0 : i32
    return %c0_i32, %c0_i32_0, %c0_i32_1 : i32, i32, i32
  }
  func.func @transform_6(%arg0: i32) -> (i32, i32, i32) {
    %c0_i32 = arith.constant 0 : i32
    %c0_i32_0 = arith.constant 0 : i32
    %c0_i32_1 = arith.constant 0 : i32
    %c0_i32_2 = arith.constant 0 : i32
    return %c0_i32, %c0_i32_0, %c0_i32_1 : i32, i32, i32
  }
  func.func @transform_7(%arg0: i32) -> (i32, i32) {
    %c0_i32 = arith.constant 0 : i32
    %c0_i32_0 = arith.constant 0 : i32
    %c0_i32_1 = arith.constant 0 : i32
    return %c0_i32, %c0_i32_0 : i32, i32
  }
  func.func @transform_8(%arg0: i32) -> (i32, i32) {
    %c0_i32 = arith.constant 0 : i32
    %c0_i32_0 = arith.constant 0 : i32
    %c0_i32_1 = arith.constant 0 : i32
    return %c0_i32, %c0_i32_0 : i32, i32
  }
  func.func @transform_9(%arg0: i32) -> (i32, i32) {
    %c0_i32 = arith.constant 0 : i32
    %c0_i32_0 = arith.constant 0 : i32
    %c0_i32_1 = arith.constant 0 : i32
    return %c0_i32, %c0_i32_0 : i32, i32
  }
  func.func @transform_10(%arg0: i32) -> (i32, i32) {
    %c0_i32 = arith.constant 0 : i32
    %c0_i32_0 = arith.constant 0 : i32
    %c0_i32_1 = arith.constant 0 : i32
    return %c0_i32, %c0_i32_0 : i32, i32
  }
  func.func @transform_11(%arg0: i32) -> (i32, i32, i32) {
    %c0_i32 = arith.constant 0 : i32
    %c0_i32_0 = arith.constant 0 : i32
    %c0_i32_1 = arith.constant 0 : i32
    return %arg0, %c0_i32, %c0_i32_0 : i32, i32, i32
  }
}

</mosaic_0001>

<llo_original>
// kernel: tpu_custom_call.1
$region0: #{tpu_custom_call.1}
  #allocation0 [shape = 'u32[]', space=smem, size = 0x4, offset = 0x4, fixed_abs, tag = 'smem constant byte address 0x4 - core index']
  #allocation1 [shape = 'u32[72,128]{1,0:T(1,128)}', space=vmem, size = 0x9000, scoped, tag = 'internal scratch']
  #allocation2 [shape = 'f32[1,1]{1,0:T(1,128)S(6)}', space=smem, size = 0x200, scoped, tag = 'scoped memory for tpu_custom_call.1']
  %s0 = inlined_call_operand.hbm [shape: bf16[2,96,128], index: 0, kind: input, shape index: {}]
  %s1 = inlined_call_operand.hbm [shape: bf16[2,96,96], index: 1, kind: input, shape index: {}]
  %s2 = inlined_call_operand.vmem [shape: s32[2,1,96], index: 2, kind: input, shape index: {}]
  %s3 = inlined_call_operand.hbm [shape: bf16[4,256,128], index: 3, kind: input, shape index: {}]
  %s4 = inlined_call_operand.hbm [shape: f32[4,2,128], index: 4, kind: input, shape index: {}]
  %s5 = inlined_call_operand.hbm [shape: bf16[2,256,128], index: 5, kind: input, shape index: {}]
  %s6 = inlined_call_operand.vmem [shape: f32[2,2,128], index: 6, kind: input, shape index: {}]
  %s7 = inlined_call_operand.hbm [shape: bf16[128,128], index: 7, kind: input, shape index: {}]
  %s8 = inlined_call_operand.vmem [shape: f32[1,128], index: 8, kind: input, shape index: {}]
  %s9 = inlined_call_operand.vmem [shape: f32[1,128], index: 9, kind: input, shape index: {}]
  %s10 = inlined_call_operand.<no memory space> [shape: f32[1,1], index: 10, kind: input, shape index: {}]
  %s11 = inlined_call_operand.hbm [shape: f32[2,32,128], index: 11, kind: output, shape index: {}]
  %s12 = sld [smem:[#allocation0]]
  $region101: #{tpu_custom_call.1} parent=0
    _
  %s14 = ssub.s32 1, %s12
  %s15 = scalar_select 0, %s14, %s12
  %16 = sst [smem:[#allocation2]] %s10
  $region1: #{tpu_custom_call.1} parent=0
    #allocation3 [shape = 'u8[49152]{0}', space=vmem, size = 0xc000, scoped, tag = 'input window, operand 0']
    #allocation4 [shape = 's32[2]{0}', space=sflag, size = 0x8, scoped, tag = 'scoped memory for tpu_custom_call.1']
    #allocation5 [shape = 's32[2]{0}', space=sflag, size = 0x8, scoped, tag = 'scoped memory for tpu_custom_call.1']
    #allocation6 [shape = 'u8[49152]{0}', space=vmem, size = 0xc000, scoped, tag = 'input window, operand 1']
    #allocation7 [shape = 's32[2]{0}', space=sflag, size = 0x8, scoped, tag = 'scoped memory for tpu_custom_call.1']
    #allocation8 [shape = 'u8[262144]{0}', space=vmem, size = 0x40000, scoped, tag = 'input window, operand 3, single buffered']
    #allocation9 [shape = 'u8[4096]{0}', space=vmem, size = 0x1000, scoped, tag = 'input window, operand 4, single buffered']
    #allocation10 [shape = 's32[1]{0}', space=sflag, size = 0x4, scoped, tag = 'scoped memory for tpu_custom_call.1']
    #allocation11 [shape = 'u8[131072]{0}', space=vmem, size = 0x20000, scoped, tag = 'input window, operand 5, single buffered']
    #allocation12 [shape = 'u8[32768]{0}', space=vmem, size = 0x8000, scoped, tag = 'input window, operand 7, single buffered']
    #allocation13 [shape = 's32[1]{0}', space=sflag, size = 0x4, scoped, tag = 'scoped memory for tpu_custom_call.1']
    #allocation14 [shape = 'u8[32768]{0}', space=vmem, size = 0x8000, scoped, tag = 'output window, operand 0']
    %17 = vsyncpa [#allocation4], 0
    %s18 = scalar_lea.sflag [#allocation4], 1
    %19 = vsyncpa %s18, 0
    %20 = vsyncpa [#allocation7], 0
    %s21 = scalar_lea.sflag [#allocation7], 1
    %22 = vsyncpa %s21, 0
    %23 = vsyncpa [#allocation10], 0
    %24 = vsyncpa [#allocation13], 0
    %25 = vsyncpa [#allocation5], 0
    %s26 = scalar_lea.sflag [#allocation5], 1
    %27 = vsyncpa %s26, 0
    loop: start=0, step=1, limit=4
    $region2: #{tpu_custom_call.1} parent=1 // loop_pre_header
      _
    $region3: #{tpu_custom_call.1} parent=1 // loop_header
      %s29 = sphi 0, %s33
      %p30 = scmp.ge.s32.totalorder %s29, 4
      %s39 = sphi 0, %s41
      %s42 = sphi 0, %s39
      %s43 = sphi 0, %s42
      %s59 = sphi 0, %s43
      %s65 = sphi 0, %s67
      %s68 = sphi 0, %s65
      %s69 = sphi 0, %s68
      %s85 = sphi 0, %s69
      %s91 = sphi 0, %s93
      %s94 = sphi 0, %s91
      %s95 = sphi 0, %s94
      %s111 = sphi 0, %s95
      %s115 = sphi 0, %s115
      %s117 = sphi 0, %s115
      %s118 = sphi 0, %s117
      %s132 = sphi 0, %s118
      %s136 = sphi 0, %s136
      %s138 = sphi 0, %s136
      %s139 = sphi 0, %s138
      %s153 = sphi 0, %s139
      %s157 = sphi 0, %s157
      %s159 = sphi 0, %s157
      %s160 = sphi 0, %s159
      %s174 = sphi 0, %s160
      %s178 = sphi 0, %s178
      %s180 = sphi 0, %s178
      %s181 = sphi 0, %s180
      %s195 = sphi 0, %s181
      %s199 = sphi 0, %s199
      %s201 = sphi 0, %s199
      %s202 = sphi 0, %s201
      %s216 = sphi 0, %s202
      %s220 = sphi 0, %s220
      %s222 = sphi 0, %s220
      %s223 = sphi 0, %s222
      %s237 = sphi 0, %s223
      %s241 = sphi 0, %s241
      %s243 = sphi 0, %s241
      %s244 = sphi 0, %s243
      %s258 = sphi 0, %s244
      %s262 = sphi 0, %s262
      %s264 = sphi 0, %s262
      %s265 = sphi 0, %s264
      %s279 = sphi 0, %s265
      %s285 = sphi 0, %s287
      %s288 = sphi 0, %s285
      %s289 = sphi 0, %s288
      %s305 = sphi 0, %s289
    $region4: #{tpu_custom_call.1} parent=1 // loop_header_branch
      %32 = sbr.rel (%p30) target = $region8
    $region5: #{tpu_custom_call.1} parent=1 // loop_body
      %s34 = ssub.s32 %s29, 1
      %s35 = ssub.s32 %s29, 2
      %s36 = sadd.s32 %s29, 1
      %s37 = ssub.s32 %s29, %s36
      %p38 = scmp.eq.s32.totalorder %s37, 0
      %s40 = sadd.s32 %s39, 1
      %s41 = scalar_select %p38, %s39, %s40
      %p44 = pneg %p38
      %p45 = scmp.eq.s32.totalorder %s29, 1
      %p46 = por %p44, %p45
      %p47 = scmp.ne.s32.totalorder %s39, %s42
      %p48 = scmp.eq.s32.totalorder %s29, 0
      %p49 = por %p47, %p48
      %p50 = scmp.ne.s32.totalorder %s39, %s42
      %p51 = scmp.eq.s32.totalorder %s34, 1
      %p52 = por %p50, %p51
      %p53 = scmp.ne.s32.totalorder %s42, %s43
      %p54 = scmp.eq.s32.totalorder %s34, 0
      %p55 = por %p53, %p54
      %p56 = scmp.ne.s32.totalorder %s42, %s43
      %p57 = scmp.eq.s32.totalorder %s35, 1
      %p58 = por %p56, %p57
      %p60 = scmp.ne.s32.totalorder %s43, %s59
      %p61 = scmp.eq.s32.totalorder %s35, 0
      %p62 = por %p60, %p61
      %s63 = ssub.s32 %s29, %s36
      %p64 = scmp.eq.s32.totalorder %s63, 0
      %s66 = sadd.s32 %s65, 1
      %s67 = scalar_select %p64, %s65, %s66
      %p70 = pneg %p64
      %p71 = scmp.eq.s32.totalorder %s29, 1
      %p72 = por %p70, %p71
      %p73 = scmp.ne.s32.totalorder %s65, %s68
      %p74 = scmp.eq.s32.totalorder %s29, 0
      %p75 = por %p73, %p74
      %p76 = scmp.ne.s32.totalorder %s65, %s68
      %p77 = scmp.eq.s32.totalorder %s34, 1
      %p78 = por %p76, %p77
      %p79 = scmp.ne.s32.totalorder %s68, %s69
      %p80 = scmp.eq.s32.totalorder %s34, 0
      %p81 = por %p79, %p80
      %p82 = scmp.ne.s32.totalorder %s68, %s69
      %p83 = scmp.eq.s32.totalorder %s35, 1
      %p84 = por %p82, %p83
      %p86 = scmp.ne.s32.totalorder %s69, %s85
      %p87 = scmp.eq.s32.totalorder %s35, 0
      %p88 = por %p86, %p87
      %s89 = ssub.s32 %s29, %s36
      %p90 = scmp.eq.s32.totalorder %s89, 0
      %s92 = sadd.s32 %s91, 1
      %s93 = scalar_select %p90, %s91, %s92
      %p96 = pneg %p90
      %p97 = scmp.eq.s32.totalorder %s29, 1
      %p98 = por %p96, %p97
      %p99 = scmp.ne.s32.totalorder %s91, %s94
      %p100 = scmp.eq.s32.totalorder %s29, 0
      %p101 = por %p99, %p100
      %p102 = scmp.ne.s32.totalorder %s91, %s94
      %p103 = scmp.eq.s32.totalorder %s34, 1
      %p104 = por %p102, %p103
      %p105 = scmp.ne.s32.totalorder %s94, %s95
      %p106 = scmp.eq.s32.totalorder %s34, 0
      %p107 = por %p105, %p106
      %p108 = scmp.ne.s32.totalorder %s94, %s95
      %p109 = scmp.eq.s32.totalorder %s35, 1
      %p110 = por %p108, %p109
      %p112 = scmp.ne.s32.totalorder %s95, %s111
      %p113 = scmp.eq.s32.totalorder %s35, 0
      %p114 = por %p112, %p113
      %s116 = sadd.s32 %s115, 1
      %p119 = scmp.eq.s32.totalorder %s29, 1
      %p120 = scmp.ne.s32.totalorder %s115, %s117
      %p121 = scmp.eq.s32.totalorder %s29, 0
      %p122 = por %p120, %p121
      %p123 = scmp.ne.s32.totalorder %s115, %s117
      %p124 = scmp.eq.s32.totalorder %s34, 1
      %p125 = por %p123, %p124
      %p126 = scmp.ne.s32.totalorder %s117, %s118
      %p127 = scmp.eq.s32.totalorder %s34, 0
      %p128 = por %p126, %p127
      %p129 = scmp.ne.s32.totalorder %s117, %s118
      %p130 = scmp.eq.s32.totalorder %s35, 1
      %p131 = por %p129, %p130
      %p133 = scmp.ne.s32.totalorder %s118, %s132
      %p134 = scmp.eq.s32.totalorder %s35, 0
      %p135 = por %p133, %p134
      %s137 = sadd.s32 %s136, 1
      %p140 = scmp.eq.s32.totalorder %s29, 1
      %p141 = scmp.ne.s32.totalorder %s136, %s138
      %p142 = scmp.eq.s32.totalorder %s29, 0
      %p143 = por %p141, %p142
      %p144 = scmp.ne.s32.totalorder %s136, %s138
      %p145 = scmp.eq.s32.totalorder %s34, 1
      %p146 = por %p144, %p145
      %p147 = scmp.ne.s32.totalorder %s138, %s139
      %p148 = scmp.eq.s32.totalorder %s34, 0
      %p149 = por %p147, %p148
      %p150 = scmp.ne.s32.totalorder %s138, %s139
      %p151 = scmp.eq.s32.totalorder %s35, 1
      %p152 = por %p150, %p151
      %p154 = scmp.ne.s32.totalorder %s139, %s153
      %p155 = scmp.eq.s32.totalorder %s35, 0
      %p156 = por %p154, %p155
      %s158 = sadd.s32 %s157, 1
      %p161 = scmp.eq.s32.totalorder %s29, 1
      %p162 = scmp.ne.s32.totalorder %s157, %s159
      %p163 = scmp.eq.s32.totalorder %s29, 0
      %p164 = por %p162, %p163
      %p165 = scmp.ne.s32.totalorder %s157, %s159
      %p166 = scmp.eq.s32.totalorder %s34, 1
      %p167 = por %p165, %p166
      %p168 = scmp.ne.s32.totalorder %s159, %s160
      %p169 = scmp.eq.s32.totalorder %s34, 0
      %p170 = por %p168, %p169
      %p171 = scmp.ne.s32.totalorder %s159, %s160
      %p172 = scmp.eq.s32.totalorder %s35, 1
      %p173 = por %p171, %p172
      %p175 = scmp.ne.s32.totalorder %s160, %s174
      %p176 = scmp.eq.s32.totalorder %s35, 0
      %p177 = por %p175, %p176
      %s179 = sadd.s32 %s178, 1
      %p182 = scmp.eq.s32.totalorder %s29, 1
      %p183 = scmp.ne.s32.totalorder %s178, %s180
      %p184 = scmp.eq.s32.totalorder %s29, 0
      %p185 = por %p183, %p184
      %p186 = scmp.ne.s32.totalorder %s178, %s180
      %p187 = scmp.eq.s32.totalorder %s34, 1
      %p188 = por %p186, %p187
      %p189 = scmp.ne.s32.totalorder %s180, %s181
      %p190 = scmp.eq.s32.totalorder %s34, 0
      %p191 = por %p189, %p190
      %p192 = scmp.ne.s32.totalorder %s180, %s181
      %p193 = scmp.eq.s32.totalorder %s35, 1
      %p194 = por %p192, %p193
      %p196 = scmp.ne.s32.totalorder %s181, %s195
      %p197 = scmp.eq.s32.totalorder %s35, 0
      %p198 = por %p196, %p197
      %s200 = sadd.s32 %s199, 1
      %p203 = scmp.eq.s32.totalorder %s29, 1
      %p204 = scmp.ne.s32.totalorder %s199, %s201
      %p205 = scmp.eq.s32.totalorder %s29, 0
      %p206 = por %p204, %p205
      %p207 = scmp.ne.s32.totalorder %s199, %s201
      %p208 = scmp.eq.s32.totalorder %s34, 1
      %p209 = por %p207, %p208
      %p210 = scmp.ne.s32.totalorder %s201, %s202
      %p211 = scmp.eq.s32.totalorder %s34, 0
      %p212 = por %p210, %p211
      %p213 = scmp.ne.s32.totalorder %s201, %s202
      %p214 = scmp.eq.s32.totalorder %s35, 1
      %p215 = por %p213, %p214
      %p217 = scmp.ne.s32.totalorder %s202, %s216
      %p218 = scmp.eq.s32.totalorder %s35, 0
      %p219 = por %p217, %p218
      %s221 = sadd.s32 %s220, 1
      %p224 = scmp.eq.s32.totalorder %s29, 1
      %p225 = scmp.ne.s32.totalorder %s220, %s222
      %p226 = scmp.eq.s32.totalorder %s29, 0
      %p227 = por %p225, %p226
      %p228 = scmp.ne.s32.totalorder %s220, %s222
      %p229 = scmp.eq.s32.totalorder %s34, 1
      %p230 = por %p228, %p229
      %p231 = scmp.ne.s32.totalorder %s222, %s223
      %p232 = scmp.eq.s32.totalorder %s34, 0
      %p233 = por %p231, %p232
      %p234 = scmp.ne.s32.totalorder %s222, %s223
      %p235 = scmp.eq.s32.totalorder %s35, 1
      %p236 = por %p234, %p235
      %p238 = scmp.ne.s32.totalorder %s223, %s237
      %p239 = scmp.eq.s32.totalorder %s35, 0
      %p240 = por %p238, %p239
      %s242 = sadd.s32 %s241, 1
      %p245 = scmp.eq.s32.totalorder %s29, 1
      %p246 = scmp.ne.s32.totalorder %s241, %s243
      %p247 = scmp.eq.s32.totalorder %s29, 0
      %p248 = por %p246, %p247
      %p249 = scmp.ne.s32.totalorder %s241, %s243
      %p250 = scmp.eq.s32.totalorder %s34, 1
      %p251 = por %p249, %p250
      %p252 = scmp.ne.s32.totalorder %s243, %s244
      %p253 = scmp.eq.s32.totalorder %s34, 0
      %p254 = por %p252, %p253
      %p255 = scmp.ne.s32.totalorder %s243, %s244
      %p256 = scmp.eq.s32.totalorder %s35, 1
      %p257 = por %p255, %p256
      %p259 = scmp.ne.s32.totalorder %s244, %s258
      %p260 = scmp.eq.s32.totalorder %s35, 0
      %p261 = por %p259, %p260
      %s263 = sadd.s32 %s262, 1
      %p266 = scmp.eq.s32.totalorder %s29, 1
      %p267 = scmp.ne.s32.totalorder %s262, %s264
      %p268 = scmp.eq.s32.totalorder %s29, 0
      %p269 = por %p267, %p268
      %p270 = scmp.ne.s32.totalorder %s262, %s264
      %p271 = scmp.eq.s32.totalorder %s34, 1
      %p272 = por %p270, %p271
      %p273 = scmp.ne.s32.totalorder %s264, %s265
      %p274 = scmp.eq.s32.totalorder %s34, 0
      %p275 = por %p273, %p274
      %p276 = scmp.ne.s32.totalorder %s264, %s265
      %p277 = scmp.eq.s32.totalorder %s35, 1
      %p278 = por %p276, %p277
      %p280 = scmp.ne.s32.totalorder %s265, %s279
      %p281 = scmp.eq.s32.totalorder %s35, 0
      %p282 = por %p280, %p281
      %s283 = ssub.s32 %s29, %s36
      %p284 = scmp.eq.s32.totalorder %s283, 0
      %s286 = sadd.s32 %s285, 1
      %s287 = scalar_select %p284, %s285, %s286
      %p290 = pneg %p284
      %p291 = scmp.eq.s32.totalorder %s29, 1
      %p292 = por %p290, %p291
      %p293 = scmp.ne.s32.totalorder %s285, %s288
      %p294 = scmp.eq.s32.totalorder %s29, 0
      %p295 = por %p293, %p294
      %p296 = scmp.ne.s32.totalorder %s285, %s288
      %p297 = scmp.eq.s32.totalorder %s34, 1
      %p298 = por %p296, %p297
      %p299 = scmp.ne.s32.totalorder %s288, %s289
      %p300 = scmp.eq.s32.totalorder %s34, 0
      %p301 = por %p299, %p300
      %p302 = scmp.ne.s32.totalorder %s288, %s289
      %p303 = scmp.eq.s32.totalorder %s35, 1
      %p304 = por %p302, %p303
      %p306 = scmp.ne.s32.totalorder %s289, %s305
      %p307 = scmp.eq.s32.totalorder %s35, 0
      %p308 = por %p306, %p307
      %p309 = scmp.le.s32.totalorder 1, %s29
      %p310 = scmp.lt.s32.totalorder %s29, 3
      %p311 = pnand %p309, %p310
      %p312 = pneg %p311
      // Predicated region
      $region9: #{tpu_custom_call.1} parent=5 // pred_check
        _
      $region10: #{tpu_custom_call.1} parent=5 // pred_check_branch
        %314 = sbr.rel (%p311) target = $region12
      $region11: #{tpu_custom_call.1} parent=5 // pred_region
        %s315 = ssub.s32 %s29, 1
        // Predicated region
        $region13: #{tpu_custom_call.1} parent=11 // pred_check
          %p316 = pneg %p128
        $region14: #{tpu_custom_call.1} parent=11 // pred_check_branch
          %318 = sbr.rel (%p316) target = $region16
        $region15: #{tpu_custom_call.1} parent=11 // pred_region
          %320 = vsyncadd [#allocation7], 0
          %s321 = sshll.u32 %s3, 4
          %s322 = int_to_ptr.hbm [resolvable:$true] %s321
          %s323 = sshll.u32 [#allocation8], 4
          %s324 = int_to_ptr.vmem [resolvable:$true] %s323
          %329 = dma.hbm_to_vmem [thread:$0]  %s322, 8192, %s324, [#allocation7], 64, 64, 4
        $region16: #{tpu_custom_call.1} parent=11 // pred_fallthru
          _
        // Predicated region
        $region17: #{tpu_custom_call.1} parent=11 // pred_check
          %p330 = pneg %p149
        $region18: #{tpu_custom_call.1} parent=11 // pred_check_branch
          %332 = sbr.rel (%p330) target = $region20
        $region19: #{tpu_custom_call.1} parent=11 // pred_region
          %334 = vsyncadd [#allocation10], 0
          %s335 = sshll.u32 %s4, 4
          %s336 = int_to_ptr.hbm [resolvable:$true] %s335
          %s337 = sshll.u32 [#allocation9], 4
          %s338 = int_to_ptr.vmem [resolvable:$true] %s337
          %343 = dma.hbm_to_vmem [thread:$0]  %s336, 128, %s338, [#allocation10], 32, 32, 2
        $region20: #{tpu_custom_call.1} parent=11 // pred_fallthru
          _
        // Predicated region
        $region21: #{tpu_custom_call.1} parent=11 // pred_check
          %p344 = pneg %p170
        $region22: #{tpu_custom_call.1} parent=11 // pred_check_branch
          %346 = sbr.rel (%p344) target = $region24
        $region23: #{tpu_custom_call.1} parent=11 // pred_region
          %348 = vsyncadd [#allocation10], 0
          %s349 = sshll.u32 %s5, 4
          %s350 = int_to_ptr.hbm [resolvable:$true] %s349
          %s351 = sshll.u32 [#allocation11], 4
          %s352 = int_to_ptr.vmem [resolvable:$true] %s351
          %357 = dma.hbm_to_vmem [thread:$0]  %s350, 4096, %s352, [#allocation10], 64, 64, 4
        $region24: #{tpu_custom_call.1} parent=11 // pred_fallthru
          _
        // Predicated region
        $region25: #{tpu_custom_call.1} parent=11 // pred_check
          %p358 = pneg %p191
        $region26: #{tpu_custom_call.1} parent=11 // pred_check_branch
          %360 = sbr.rel (%p358) target = $region28
        $region27: #{tpu_custom_call.1} parent=11 // pred_region
          _
        $region28: #{tpu_custom_call.1} parent=11 // pred_fallthru
          _
        // Predicated region
        $region29: #{tpu_custom_call.1} parent=11 // pred_check
          %p361 = pneg %p212
        $region30: #{tpu_custom_call.1} parent=11 // pred_check_branch
          %363 = sbr.rel (%p361) target = $region32
        $region31: #{tpu_custom_call.1} parent=11 // pred_region
          %365 = vsyncadd [#allocation13], 0
          %s366 = sshll.u32 %s7, 4
          %s367 = int_to_ptr.hbm [resolvable:$true] %s366
          %s368 = sshll.u32 [#allocation12], 4
          %s369 = int_to_ptr.vmem [resolvable:$true] %s368
          %374 = dma.hbm_to_vmem [thread:$0]  %s367, 1024, %s369, [#allocation13], 64, 64, 4
        $region32: #{tpu_custom_call.1} parent=11 // pred_fallthru
          _
        // Predicated region
        $region33: #{tpu_custom_call.1} parent=11 // pred_check
          %p375 = pneg %p233
        $region34: #{tpu_custom_call.1} parent=11 // pred_check_branch
          %377 = sbr.rel (%p375) target = $region36
        $region35: #{tpu_custom_call.1} parent=11 // pred_region
          _
        $region36: #{tpu_custom_call.1} parent=11 // pred_fallthru
          _
        // Predicated region
        $region37: #{tpu_custom_call.1} parent=11 // pred_check
          %p378 = pneg %p254
        $region38: #{tpu_custom_call.1} parent=11 // pred_check_branch
          %380 = sbr.rel (%p378) target = $region40
        $region39: #{tpu_custom_call.1} parent=11 // pred_region
          _
        $region40: #{tpu_custom_call.1} parent=11 // pred_fallthru
          _
        // Predicated region
        $region41: #{tpu_custom_call.1} parent=11 // pred_check
          %p381 = pneg %p275
        $region42: #{tpu_custom_call.1} parent=11 // pred_check_branch
          %383 = sbr.rel (%p381) target = $region44
        $region43: #{tpu_custom_call.1} parent=11 // pred_region
          _
        $region44: #{tpu_custom_call.1} parent=11 // pred_fallthru
          _
      $region12: #{tpu_custom_call.1} parent=5 // pred_fallthru
        _
      %p384 = scmp.lt.s32.totalorder %s29, 2
      // Predicated region
      $region45: #{tpu_custom_call.1} parent=5 // pred_check
        %p385 = pneg %p384
      $region46: #{tpu_custom_call.1} parent=5 // pred_check_branch
        %387 = sbr.rel (%p385) target = $region48
      $region47: #{tpu_custom_call.1} parent=5 // pred_region
        // Predicated region
        $region49: #{tpu_custom_call.1} parent=47 // pred_check
          %p388 = pneg %p49
        $region50: #{tpu_custom_call.1} parent=47 // pred_check_branch
          %390 = sbr.rel (%p388) target = $region52
        $region51: #{tpu_custom_call.1} parent=47 // pred_region
          %s391 = sand.u32 %s39, 1
          %s392 = scalar_lea.sflag [#allocation4], %s391
          %s393 = sand.u32 %s39, 1
          %s394 = smul.addr %s393, 48
          %s395 = scalar_lea.vmem [#allocation3], %s394
          %397 = vsyncadd %s392, 0
          %s398 = smul.addr %s29, 12
          %s399 = smul.addr %s398, 4
          %s400 = scalar_lea.hbm %s0, %s399
          %s401 = sshll.u32 %s400, 4
          %s402 = int_to_ptr.hbm [resolvable:$true] %s401
          %s403 = sshll.u32 %s395, 4
          %s404 = int_to_ptr.vmem [resolvable:$true] %s403
          %409 = dma.hbm_to_vmem [thread:$0]  %s402, 768, %s404, %s392, 64, 64, 4
        $region52: #{tpu_custom_call.1} parent=47 // pred_fallthru
          _
        // Predicated region
        $region53: #{tpu_custom_call.1} parent=47 // pred_check
          %p410 = pneg %p75
        $region54: #{tpu_custom_call.1} parent=47 // pred_check_branch
          %412 = sbr.rel (%p410) target = $region56
        $region55: #{tpu_custom_call.1} parent=47 // pred_region
          %s413 = sand.u32 %s29, 1
          %s414 = scalar_lea.sflag [#allocation7], %s413
          %s415 = sand.u32 %s65, 1
          %s416 = smul.addr %s415, 48
          %s417 = scalar_lea.vmem [#allocation6], %s416
          %419 = vsyncadd %s414, 0
          %s420 = smul.addr %s29, 12
          %s421 = smul.addr %s420, 4
          %s422 = scalar_lea.hbm %s1, %s421
          %s423 = sshll.u32 %s422, 4
          %s424 = int_to_ptr.hbm [resolvable:$true] %s423
          %s425 = sshll.u32 %s417, 4
          %s426 = int_to_ptr.vmem [resolvable:$true] %s425
          %431 = dma.hbm_to_vmem [thread:$0]  %s424, 768, %s426, %s414, 64, 64, 4
        $region56: #{tpu_custom_call.1} parent=47 // pred_fallthru
          _
        // Predicated region
        $region57: #{tpu_custom_call.1} parent=47 // pred_check
          %p432 = pneg %p101
        $region58: #{tpu_custom_call.1} parent=47 // pred_check_branch
          %434 = sbr.rel (%p432) target = $region60
        $region59: #{tpu_custom_call.1} parent=47 // pred_region
          %p435 = scmp.lt.s32.totalorder %s29, 1
          %s436 = scalar_select %p435, %s29, 1
          %s437 = scalar_lea.vmem %s2, %s436
        $region60: #{tpu_custom_call.1} parent=47 // pred_fallthru
          _
      $region48: #{tpu_custom_call.1} parent=5 // pred_fallthru
        _
      %p438 = scmp.le.s32.totalorder 1, %s29
      %p439 = scmp.lt.s32.totalorder %s29, 3
      %p440 = pnand %p438, %p439
      %p441 = pneg %p440
      // Predicated region
      $region61: #{tpu_custom_call.1} parent=5 // pred_check
        _
      $region62: #{tpu_custom_call.1} parent=5 // pred_check_branch
        %443 = sbr.rel (%p440) target = $region64
      $region63: #{tpu_custom_call.1} parent=5 // pred_region
        %s444 = ssub.s32 %s29, 1
        %s445 = sand.u32 %s42, 1
        %s446 = scalar_lea.sflag [#allocation4], %s445
        %s447 = sand.u32 %s42, 1
        %s448 = smul.addr %s447, 48
        %s449 = scalar_lea.vmem [#allocation3], %s448
        // Predicated region
        $region65: #{tpu_custom_call.1} parent=63 // pred_check
          %p450 = pneg %p55
        $region66: #{tpu_custom_call.1} parent=63 // pred_check_branch
          %452 = sbr.rel (%p450) target = $region68
        $region67: #{tpu_custom_call.1} parent=63 // pred_region
          %454 = dma.done %s446, 768
        $region68: #{tpu_custom_call.1} parent=63 // pred_fallthru
          _
        %s455 = sand.u32 %s34, 1
        %s456 = scalar_lea.sflag [#allocation7], %s455
        %s457 = sand.u32 %s68, 1
        %s458 = smul.addr %s457, 48
        %s459 = scalar_lea.vmem [#allocation6], %s458
        // Predicated region
        $region69: #{tpu_custom_call.1} parent=63 // pred_check
          %p460 = pneg %p81
        $region70: #{tpu_custom_call.1} parent=63 // pred_check_branch
          %462 = sbr.rel (%p460) target = $region72
        $region71: #{tpu_custom_call.1} parent=63 // pred_region
          %464 = dma.done %s456, 768
        $region72: #{tpu_custom_call.1} parent=63 // pred_fallthru
          _
        // Predicated region
        $region73: #{tpu_custom_call.1} parent=63 // pred_check
          %p465 = pneg %p128
        $region74: #{tpu_custom_call.1} parent=63 // pred_check_branch
          %467 = sbr.rel (%p465) target = $region76
        $region75: #{tpu_custom_call.1} parent=63 // pred_region
          %469 = dma.done [#allocation7], 8192
        $region76: #{tpu_custom_call.1} parent=63 // pred_fallthru
          _
        // Predicated region
        $region77: #{tpu_custom_call.1} parent=63 // pred_check
          %p470 = pneg %p149
        $region78: #{tpu_custom_call.1} parent=63 // pred_check_branch
          %472 = sbr.rel (%p470) target = $region80
        $region79: #{tpu_custom_call.1} parent=63 // pred_region
          %474 = dma.done [#allocation10], 128
        $region80: #{tpu_custom_call.1} parent=63 // pred_fallthru
          _
        // Predicated region
        $region81: #{tpu_custom_call.1} parent=63 // pred_check
          %p475 = pneg %p170
        $region82: #{tpu_custom_call.1} parent=63 // pred_check_branch
          %477 = sbr.rel (%p475) target = $region84
        $region83: #{tpu_custom_call.1} parent=63 // pred_region
          %479 = dma.done [#allocation10], 4096
        $region84: #{tpu_custom_call.1} parent=63 // pred_fallthru
          _
        // Predicated region
        $region85: #{tpu_custom_call.1} parent=63 // pred_check
          %p480 = pneg %p212
        $region86: #{tpu_custom_call.1} parent=63 // pred_check_branch
          %482 = sbr.rel (%p480) target = $region88
        $region87: #{tpu_custom_call.1} parent=63 // pred_region
          %484 = dma.done [#allocation13], 1024
        $region88: #{tpu_custom_call.1} parent=63 // pred_fallthru
          _
        %s485 = sand.u32 %s42, 1
        %s486 = scalar_lea.sflag [#allocation4], %s485
        %s487 = sand.u32 %s42, 1
        %s488 = smul.addr %s487, 48
        %s489 = scalar_lea.vmem [#allocation3], %s488
        %p490 = pneg %p55
        %p491 = pneg %p52
        %s492 = sand.u32 %s34, 1
        %s493 = scalar_lea.sflag [#allocation7], %s492
        %s494 = sand.u32 %s68, 1
        %s495 = smul.addr %s494, 48
        %s496 = scalar_lea.vmem [#allocation6], %s495
        %p497 = pneg %p81
        %p498 = pneg %p78
        %p499 = scmp.lt.s32.totalorder %s34, 1
        %s500 = scalar_select %p499, %s34, 1
        %s501 = scalar_lea.vmem %s2, %s500
        %p502 = pneg %p107
        %p503 = pneg %p104
        %p504 = pneg %p128
        %p505 = pneg %p125
        %p506 = pneg %p149
        %p507 = pneg %p146
        %p508 = pneg %p170
        %p509 = pneg %p167
        %p510 = pneg %p191
        %p511 = pneg %p188
        %p512 = pneg %p212
        %p513 = pneg %p209
        %p514 = pneg %p233
        %p515 = pneg %p230
        %p516 = pneg %p254
        %p517 = pneg %p251
        %p518 = pneg %p275
        %p519 = pneg %p272
        %p520 = pneg %p301
        %p521 = pneg %p298
        %s522 = sand.u32 %s288, 1
        %s523 = scalar_lea.sflag [#allocation5], %s522
        %s524 = sand.u32 %s288, 1
        %s525 = smul.addr %s524, 32
        %s526 = scalar_lea.vmem [#allocation14], %s525
        %p527 = scmp.lt.s32.totalorder %s34, 1
        %s528 = scalar_select %p527, %s34, 1
        %s529 = scalar_lea.vmem %s2, %s528
        %v531 = vld [vmem:[%s459] sm:$0xf]
        %v532 = vld [vmem:[%s459 + $0x4] sm:$0xf]
        %v533 = vld [vmem:[%s459 + $0x8] sm:$0xf]
        %v534 = vld [vmem:[%s459 + $0xc] sm:$0xf]
        %v535 = vld [vmem:[%s459 + $0x10] sm:$0xf]
        %v536 = vld [vmem:[%s459 + $0x14] sm:$0xf]
        %v537 = vld [vmem:[%s459 + $0x18] sm:$0xf]
        %v538 = vld [vmem:[%s459 + $0x1c] sm:$0xf]
        %v539 = vld [vmem:[%s459 + $0x20] sm:$0xf]
        %v540 = vld [vmem:[%s459 + $0x24] sm:$0xf]
        %v541 = vld [vmem:[%s459 + $0x28] sm:$0xf]
        %v542 = vld [vmem:[%s459 + $0x2c] sm:$0xf]
        %v543 = vlaneseq
        %v544 = vshrl.u32 %v543, 7
        %v545 = vadd.s32 %v544, 8
        %v546 = vadd.s32 %v544, 16
        %v547 = vadd.s32 %v544, 24
        %v548 = vadd.s32 %v544, 32
        %v549 = vadd.s32 %v544, 40
        %v550 = vadd.s32 %v544, 48
        %v551 = vadd.s32 %v544, 56
        %v552 = vadd.s32 %v544, 64
        %v553 = vadd.s32 %v544, 72
        %v554 = vadd.s32 %v544, 80
        %v555 = vadd.s32 %v544, 88
        %vm556 = vcmp.lt.s32.totalorder %v544, 64
        %vm557 = vcmp.lt.s32.totalorder %v545, 64
        %vm558 = vcmp.lt.s32.totalorder %v546, 64
        %vm559 = vcmp.lt.s32.totalorder %v547, 64
        %vm560 = vcmp.lt.s32.totalorder %v548, 64
        %vm561 = vcmp.lt.s32.totalorder %v549, 64
        %vm562 = vcmp.lt.s32.totalorder %v550, 64
        %vm563 = vcmp.lt.s32.totalorder %v551, 64
        %vm564 = vcmp.lt.s32.totalorder %v552, 64
        %vm565 = vcmp.lt.s32.totalorder %v553, 64
        %vm566 = vcmp.lt.s32.totalorder %v554, 64
        %vm567 = vcmp.lt.s32.totalorder %v555, 64
        %v568 = vsel %vm556, 1.0, 0.0
        %v569 = vsel %vm557, 1.0, 0.0
        %v570 = vsel %vm558, 1.0, 0.0
        %v571 = vsel %vm559, 1.0, 0.0
        %v572 = vsel %vm560, 1.0, 0.0
        %v573 = vsel %vm561, 1.0, 0.0
        %v574 = vsel %vm562, 1.0, 0.0
        %v575 = vsel %vm563, 1.0, 0.0
        %v576 = vsel %vm564, 1.0, 0.0
        %v577 = vsel %vm565, 1.0, 0.0
        %v578 = vsel %vm566, 1.0, 0.0
        %v579 = vsel %vm567, 1.0, 0.0
        %v580 = vpack.c.bf16 %v568, %v568
        %v581 = vpack.c.bf16 %v569, %v569
        %v582 = vpack.c.bf16 %v570, %v570
        %v583 = vpack.c.bf16 %v571, %v571
        %v584 = vpack.c.bf16 %v572, %v572
        %v585 = vpack.c.bf16 %v573, %v573
        %v586 = vpack.c.bf16 %v574, %v574
        %v587 = vpack.c.bf16 %v575, %v575
        %v588 = vpack.c.bf16 %v576, %v576
        %v589 = vpack.c.bf16 %v577, %v577
        %v590 = vpack.c.bf16 %v578, %v578
        %v591 = vpack.c.bf16 %v579, %v579
        %v592 = vsel %vm556, 0.0, 1.0
        %v593 = vsel %vm557, 0.0, 1.0
        %v594 = vsel %vm558, 0.0, 1.0
        %v595 = vsel %vm559, 0.0, 1.0
        %v596 = vsel %vm560, 0.0, 1.0
        %v597 = vsel %vm561, 0.0, 1.0
        %v598 = vsel %vm562, 0.0, 1.0
        %v599 = vsel %vm563, 0.0, 1.0
        %v600 = vsel %vm564, 0.0, 1.0
        %v601 = vsel %vm565, 0.0, 1.0
        %v602 = vsel %vm566, 0.0, 1.0
        %v603 = vsel %vm567, 0.0, 1.0
        %v604 = vpack.c.bf16 %v592, %v592
        %v605 = vpack.c.bf16 %v593, %v593
        %v606 = vpack.c.bf16 %v594, %v594
        %v607 = vpack.c.bf16 %v595, %v595
        %v608 = vpack.c.bf16 %v596, %v596
        %v609 = vpack.c.bf16 %v597, %v597
        %v610 = vpack.c.bf16 %v598, %v598
        %v611 = vpack.c.bf16 %v599, %v599
        %v612 = vpack.c.bf16 %v600, %v600
        %v613 = vpack.c.bf16 %v601, %v601
        %v614 = vpack.c.bf16 %v602, %v602
        %v615 = vpack.c.bf16 %v603, %v603
        %v616 = vlaneseq
        %v617 = vand.u32 %v616, 127
        %v618 = vld [vmem:[%s529] sm:$0x1]
        %vm619 = vcmp.eq.s32.totalorder %v544, %v617
        %vm620 = vcmp.eq.s32.totalorder %v545, %v617
        %vm621 = vcmp.eq.s32.totalorder %v546, %v617
        %vm622 = vcmp.eq.s32.totalorder %v547, %v617
        %vm623 = vcmp.eq.s32.totalorder %v548, %v617
        %vm624 = vcmp.eq.s32.totalorder %v549, %v617
        %vm625 = vcmp.eq.s32.totalorder %v550, %v617
        %vm626 = vcmp.eq.s32.totalorder %v551, %v617
        %vm627 = vcmp.eq.s32.totalorder %v552, %v617
        %vm628 = vcmp.eq.s32.totalorder %v553, %v617
        %vm629 = vcmp.eq.s32.totalorder %v554, %v617
        %vm630 = vcmp.eq.s32.totalorder %v555, %v617
        %v631 = vadd.s32 %v618, 64
        %v632 = vperm.slane %v631, 0
        %vm633 = vcmp.eq.s32.totalorder %v544, %v632
        %vm634 = vcmp.eq.s32.totalorder %v545, %v632
        %vm635 = vcmp.eq.s32.totalorder %v546, %v632
        %vm636 = vcmp.eq.s32.totalorder %v547, %v632
        %vm637 = vcmp.eq.s32.totalorder %v548, %v632
        %vm638 = vcmp.eq.s32.totalorder %v549, %v632
        %vm639 = vcmp.eq.s32.totalorder %v550, %v632
        %vm640 = vcmp.eq.s32.totalorder %v551, %v632
        %vm641 = vcmp.eq.s32.totalorder %v552, %v632
        %vm642 = vcmp.eq.s32.totalorder %v553, %v632
        %vm643 = vcmp.eq.s32.totalorder %v554, %v632
        %vm644 = vcmp.eq.s32.totalorder %v555, %v632
        %vm645 = vmor %vm619, %vm633
        %vm646 = vmor %vm620, %vm634
        %vm647 = vmor %vm621, %vm635
        %vm648 = vmor %vm622, %vm636
        %vm649 = vmor %vm623, %vm637
        %vm650 = vmor %vm624, %vm638
        %vm651 = vmor %vm625, %vm639
        %vm652 = vmor %vm626, %vm640
        %vm653 = vmor %vm627, %vm641
        %vm654 = vmor %vm628, %vm642
        %vm655 = vmor %vm629, %vm643
        %vm656 = vmor %vm630, %vm644
        %v657 = vsel %vm645, 1, 0
        %v658 = vsel %vm646, 1, 0
        %v659 = vsel %vm647, 1, 0
        %v660 = vsel %vm648, 1, 0
        %v661 = vsel %vm649, 1, 0
        %v662 = vsel %vm650, 1, 0
        %v663 = vsel %vm651, 1, 0
        %v664 = vsel %vm652, 1, 0
        %v665 = vsel %vm653, 1, 0
        %v666 = vsel %vm654, 1, 0
        %v667 = vsel %vm655, 1, 0
        %v668 = vsel %vm656, 1, 0
        %v669 = vcvt.s32.f32 %v657
        %v670 = vcvt.s32.f32 %v658
        %v671 = vcvt.s32.f32 %v659
        %v672 = vcvt.s32.f32 %v660
        %v673 = vcvt.s32.f32 %v661
        %v674 = vcvt.s32.f32 %v662
        %v675 = vcvt.s32.f32 %v663
        %v676 = vcvt.s32.f32 %v664
        %v677 = vcvt.s32.f32 %v665
        %v678 = vcvt.s32.f32 %v666
        %v679 = vcvt.s32.f32 %v667
        %v680 = vcvt.s32.f32 %v668
        %v681 = vpack.c.bf16 %v670, %v669
        %v682 = vpack.c.bf16 %v672, %v671
        %v683 = vpack.c.bf16 %v674, %v673
        %v684 = vpack.c.bf16 %v676, %v675
        %v685 = vpack.c.bf16 %v678, %v677
        %v686 = vpack.c.bf16 %v680, %v679
        %v687 = vld [vmem:[%s449] sm:$0xf]
        %v688 = vld [vmem:[%s449 + $0x4] sm:$0xf]
        %v689 = vld [vmem:[%s449 + $0x8] sm:$0xf]
        %v690 = vld [vmem:[%s449 + $0xc] sm:$0xf]
        %v691 = vld [vmem:[%s449 + $0x10] sm:$0xf]
        %v692 = vld [vmem:[%s449 + $0x14] sm:$0xf]
        %v693 = vld [vmem:[%s449 + $0x18] sm:$0xf]
        %v694 = vld [vmem:[%s449 + $0x1c] sm:$0xf]
        %v695 = vld [vmem:[%s449 + $0x20] sm:$0xf]
        %v696 = vld [vmem:[%s449 + $0x24] sm:$0xf]
        %v697 = vld [vmem:[%s449 + $0x28] sm:$0xf]
        %v698 = vld [vmem:[%s449 + $0x2c] sm:$0xf]
        %v711 = vunpack.c.l.b16 %v531
        %v712 = vunpack.c.l.b16 %v532
        %v713 = vunpack.c.l.b16 %v533
        %v714 = vunpack.c.l.b16 %v534
        %v715 = vunpack.c.l.b16 %v535
        %v716 = vunpack.c.l.b16 %v536
        %v717 = vunpack.c.l.b16 %v537
        %v718 = vunpack.c.l.b16 %v538
        %v719 = vunpack.c.l.b16 %v539
        %v720 = vunpack.c.l.b16 %v540
        %v721 = vunpack.c.l.b16 %v541
        %v722 = vunpack.c.l.b16 %v542
        %v723 = vpack.c.b16 %v712, %v711
        %v724 = vpack.c.b16 %v714, %v713
        %v725 = vpack.c.b16 %v716, %v715
        %v726 = vpack.c.b16 %v718, %v717
        %v727 = vpack.c.b16 %v720, %v719
        %v728 = vpack.c.b16 %v722, %v721
        %v741 = vunpack.c.l.b16 %v687
        %v742 = vunpack.c.l.b16 %v688
        %v743 = vunpack.c.l.b16 %v689
        %v744 = vunpack.c.l.b16 %v690
        %v745 = vunpack.c.l.b16 %v691
        %v746 = vunpack.c.l.b16 %v692
        %v747 = vunpack.c.l.b16 %v693
        %v748 = vunpack.c.l.b16 %v694
        %v749 = vunpack.c.l.b16 %v695
        %v750 = vunpack.c.l.b16 %v696
        %v751 = vunpack.c.l.b16 %v697
        %v752 = vunpack.c.l.b16 %v698
        %v753 = vpack.c.b16 %v742, %v741
        %v754 = vpack.c.b16 %v744, %v743
        %v755 = vpack.c.b16 %v746, %v745
        %v756 = vpack.c.b16 %v748, %v747
        %v757 = vpack.c.b16 %v750, %v749
        %v758 = vpack.c.b16 %v752, %v751
        %vm765 = vcmask 785408
        %v767 = vsel %vm765, %v723, 0
        %v770 = vsel %vm765, %v724, 0
        %v773 = vsel %vm765, %v725, 0
        %v776 = vsel %vm765, %v726, 0
        %v779 = vsel %vm765, %v727, 0
        %v782 = vsel %vm765, %v728, 0
        %784 = vmatpush.bf16.msra.mxu0 0
        %785 = vmatpush.bf16.msra.mxu0 0
        %786 = vmatpush.bf16.msra.mxu0 %v758
        %787 = vmatpush.bf16.msra.mxu0 %v757
        %788 = vmatpush.bf16.msra.mxu0 %v756
        %789 = vmatpush.bf16.msra.mxu0 %v755
        %790 = vmatpush.bf16.msra.mxu0 %v754
        %791 = vmatpush.bf16.msra.mxu0 %v753
        %792 = vmatmul.bf16.gmra.mxu0 %v767
        %v793 = vpop.f32.mrf.mxu0
        %v794 = vadd.f32 0.0, %v793
        %v795 = vpop.f32.mrf.mxu0
        %v796 = vadd.f32 0.0, %v795
        %797 = vmatmul.bf16.gmra.mxu0 %v770
        %v798 = vpop.f32.mrf.mxu0
        %v799 = vadd.f32 0.0, %v798
        %v800 = vpop.f32.mrf.mxu0
        %v801 = vadd.f32 0.0, %v800
        %802 = vmatmul.bf16.gmra.mxu0 %v773
        %v803 = vpop.f32.mrf.mxu0
        %v804 = vadd.f32 0.0, %v803
        %v805 = vpop.f32.mrf.mxu0
        %v806 = vadd.f32 0.0, %v805
        %807 = vmatmul.bf16.gmra.mxu0 %v776
        %v808 = vpop.f32.mrf.mxu0
        %v809 = vadd.f32 0.0, %v808
        %v810 = vpop.f32.mrf.mxu0
        %v811 = vadd.f32 0.0, %v810
        %812 = vmatmul.bf16.gmra.mxu0 %v779
        %v813 = vpop.f32.mrf.mxu0
        %v814 = vadd.f32 0.0, %v813
        %v815 = vpop.f32.mrf.mxu0
        %v816 = vadd.f32 0.0, %v815
        %817 = vmatmul.bf16.gmra.mxu0 %v782
        %v818 = vpop.f32.mrf.mxu0
        %v819 = vadd.f32 0.0, %v818
        %v820 = vpop.f32.mrf.mxu0
        %v821 = vadd.f32 0.0, %v820
        %822 = vdwg.mxu0
        %v823 = vpack.c.bf16 %v794, %v794
        %v824 = vpack.c.bf16 %v796, %v796
        %v825 = vpack.c.bf16 %v799, %v799
        %v826 = vpack.c.bf16 %v801, %v801
        %v827 = vpack.c.bf16 %v804, %v804
        %v828 = vpack.c.bf16 %v806, %v806
        %v829 = vpack.c.bf16 %v809, %v809
        %v830 = vpack.c.bf16 %v811, %v811
        %v831 = vpack.c.bf16 %v814, %v814
        %v832 = vpack.c.bf16 %v816, %v816
        %v833 = vpack.c.bf16 %v819, %v819
        %v834 = vpack.c.bf16 %v821, %v821
        %v835 = vunpack.c.l.bf16 %v823
        %v836 = vunpack.c.l.bf16 %v824
        %v837 = vunpack.c.l.bf16 %v825
        %v838 = vunpack.c.l.bf16 %v826
        %v839 = vunpack.c.l.bf16 %v827
        %v840 = vunpack.c.l.bf16 %v828
        %v841 = vunpack.c.l.bf16 %v829
        %v842 = vunpack.c.l.bf16 %v830
        %v843 = vunpack.c.l.bf16 %v831
        %v844 = vunpack.c.l.bf16 %v832
        %v845 = vunpack.c.l.bf16 %v833
        %v846 = vunpack.c.l.bf16 %v834
        %v847 = vunpack.c.l.bf16 %v580
        %v848 = vunpack.c.l.bf16 %v581
        %v849 = vunpack.c.l.bf16 %v582
        %v850 = vunpack.c.l.bf16 %v583
        %v851 = vunpack.c.l.bf16 %v584
        %v852 = vunpack.c.l.bf16 %v585
        %v853 = vunpack.c.l.bf16 %v586
        %v854 = vunpack.c.l.bf16 %v587
        %v855 = vunpack.c.l.bf16 %v588
        %v856 = vunpack.c.l.bf16 %v589
        %v857 = vunpack.c.l.bf16 %v590
        %v858 = vunpack.c.l.bf16 %v591
        %v859 = vmul.f32 %v835, %v847
        %v860 = vmul.f32 %v836, %v848
        %v861 = vmul.f32 %v837, %v849
        %v862 = vmul.f32 %v838, %v850
        %v863 = vmul.f32 %v839, %v851
        %v864 = vmul.f32 %v840, %v852
        %v865 = vmul.f32 %v841, %v853
        %v866 = vmul.f32 %v842, %v854
        %v867 = vmul.f32 %v843, %v855
        %v868 = vmul.f32 %v844, %v856
        %v869 = vmul.f32 %v845, %v857
        %v870 = vmul.f32 %v846, %v858
        %v871 = vpack.c.bf16 %v859, %v859
        %v872 = vpack.c.bf16 %v860, %v860
        %v873 = vpack.c.bf16 %v861, %v861
        %v874 = vpack.c.bf16 %v862, %v862
        %v875 = vpack.c.bf16 %v863, %v863
        %v876 = vpack.c.bf16 %v864, %v864
        %v877 = vpack.c.bf16 %v865, %v865
        %v878 = vpack.c.bf16 %v866, %v866
        %v879 = vpack.c.bf16 %v867, %v867
        %v880 = vpack.c.bf16 %v868, %v868
        %v881 = vpack.c.bf16 %v869, %v869
        %v882 = vpack.c.bf16 %v870, %v870
        %v883 = vunpack.c.l.bf16 %v604
        %v884 = vunpack.c.l.bf16 %v605
        %v885 = vunpack.c.l.bf16 %v606
        %v886 = vunpack.c.l.bf16 %v607
        %v887 = vunpack.c.l.bf16 %v608
        %v888 = vunpack.c.l.bf16 %v609
        %v889 = vunpack.c.l.bf16 %v610
        %v890 = vunpack.c.l.bf16 %v611
        %v891 = vunpack.c.l.bf16 %v612
        %v892 = vunpack.c.l.bf16 %v613
        %v893 = vunpack.c.l.bf16 %v614
        %v894 = vunpack.c.l.bf16 %v615
        %v895 = vmul.f32 %v835, %v883
        %v896 = vmul.f32 %v836, %v884
        %v897 = vmul.f32 %v837, %v885
        %v898 = vmul.f32 %v838, %v886
        %v899 = vmul.f32 %v839, %v887
        %v900 = vmul.f32 %v840, %v888
        %v901 = vmul.f32 %v841, %v889
        %v902 = vmul.f32 %v842, %v890
        %v903 = vmul.f32 %v843, %v891
        %v904 = vmul.f32 %v844, %v892
        %v905 = vmul.f32 %v845, %v893
        %v906 = vmul.f32 %v846, %v894
        %v907 = vpack.c.bf16 %v895, %v895
        %v908 = vpack.c.bf16 %v896, %v896
        %v909 = vpack.c.bf16 %v897, %v897
        %v910 = vpack.c.bf16 %v898, %v898
        %v911 = vpack.c.bf16 %v899, %v899
        %v912 = vpack.c.bf16 %v900, %v900
        %v913 = vpack.c.bf16 %v901, %v901
        %v914 = vpack.c.bf16 %v902, %v902
        %v915 = vpack.c.bf16 %v903, %v903
        %v916 = vpack.c.bf16 %v904, %v904
        %v917 = vpack.c.bf16 %v905, %v905
        %v918 = vpack.c.bf16 %v906, %v906
        %v931 = vunpack.c.l.b16 %v871
        %v932 = vunpack.c.l.b16 %v872
        %v933 = vunpack.c.l.b16 %v873
        %v934 = vunpack.c.l.b16 %v874
        %v935 = vunpack.c.l.b16 %v875
        %v936 = vunpack.c.l.b16 %v876
        %v937 = vunpack.c.l.b16 %v877
        %v938 = vunpack.c.l.b16 %v878
        %v939 = vunpack.c.l.b16 %v879
        %v940 = vunpack.c.l.b16 %v880
        %v941 = vunpack.c.l.b16 %v881
        %v942 = vunpack.c.l.b16 %v882
        %v943 = vpack.c.b16 %v932, %v931
        %v944 = vpack.c.b16 %v934, %v933
        %v945 = vpack.c.b16 %v936, %v935
        %v946 = vpack.c.b16 %v938, %v937
        %v947 = vpack.c.b16 %v940, %v939
        %v948 = vpack.c.b16 %v942, %v941
        %v967 = vunpack.c.l.b16 %v907
        %v968 = vunpack.c.l.b16 %v908
        %v969 = vunpack.c.l.b16 %v909
        %v970 = vunpack.c.l.b16 %v910
        %v971 = vunpack.c.l.b16 %v911
        %v972 = vunpack.c.l.b16 %v912
        %v973 = vunpack.c.l.b16 %v913
        %v974 = vunpack.c.l.b16 %v914
        %v975 = vunpack.c.l.b16 %v915
        %v976 = vunpack.c.l.b16 %v916
        %v977 = vunpack.c.l.b16 %v917
        %v978 = vunpack.c.l.b16 %v918
        %v979 = vpack.c.b16 %v968, %v967
        %v980 = vpack.c.b16 %v970, %v969
        %v981 = vpack.c.b16 %v972, %v971
        %v982 = vpack.c.b16 %v974, %v973
        %v983 = vpack.c.b16 %v976, %v975
        %v984 = vpack.c.b16 %v978, %v977
        %v991 = vld [vmem:[#allocation8] sm:$0xf]
        %v992 = vld [vmem:[#allocation8 + $0x4] sm:$0xf]
        %v993 = vld [vmem:[#allocation8 + $0x8] sm:$0xf]
        %v994 = vld [vmem:[#allocation8 + $0xc] sm:$0xf]
        %v995 = vld [vmem:[#allocation8 + $0x10] sm:$0xf]
        %v996 = vld [vmem:[#allocation8 + $0x14] sm:$0xf]
        %v997 = vld [vmem:[#allocation8 + $0x18] sm:$0xf]
        %v998 = vld [vmem:[#allocation8 + $0x1c] sm:$0xf]
        %v999 = vld [vmem:[#allocation8 + $0x20] sm:$0xf]
        %v1000 = vld [vmem:[#allocation8 + $0x24] sm:$0xf]
        %v1001 = vld [vmem:[#allocation8 + $0x28] sm:$0xf]
        %v1002 = vld [vmem:[#allocation8 + $0x2c] sm:$0xf]
        %v1003 = vld [vmem:[#allocation8 + $0x30] sm:$0xf]
        %v1004 = vld [vmem:[#allocation8 + $0x34] sm:$0xf]
        %v1005 = vld [vmem:[#allocation8 + $0x38] sm:$0xf]
        %v1006 = vld [vmem:[#allocation8 + $0x3c] sm:$0xf]
        %v1007 = vld [vmem:[#allocation8 + $0x40] sm:$0xf]
        %v1008 = vld [vmem:[#allocation8 + $0x44] sm:$0xf]
        %v1009 = vld [vmem:[#allocation8 + $0x48] sm:$0xf]
        %v1010 = vld [vmem:[#allocation8 + $0x4c] sm:$0xf]
        %v1011 = vld [vmem:[#allocation8 + $0x50] sm:$0xf]
        %v1012 = vld [vmem:[#allocation8 + $0x54] sm:$0xf]
        %v1013 = vld [vmem:[#allocation8 + $0x58] sm:$0xf]
        %v1014 = vld [vmem:[#allocation8 + $0x5c] sm:$0xf]
        %v1015 = vld [vmem:[#allocation8 + $0x60] sm:$0xf]
        %v1016 = vld [vmem:[#allocation8 + $0x64] sm:$0xf]
        %v1017 = vld [vmem:[#allocation8 + $0x68] sm:$0xf]
        %v1018 = vld [vmem:[#allocation8 + $0x6c] sm:$0xf]
        %v1019 = vld [vmem:[#allocation8 + $0x70] sm:$0xf]
        %v1020 = vld [vmem:[#allocation8 + $0x74] sm:$0xf]
        %v1021 = vld [vmem:[#allocation8 + $0x78] sm:$0xf]
        %v1022 = vld [vmem:[#allocation8 + $0x7c] sm:$0xf]
        %v1023 = vld [vmem:[#allocation9] sm:$0x3]
        %v1024 = vsel %vm556, 1, 0
        %v1025 = vsel %vm557, 1, 0
        %v1026 = vsel %vm558, 1, 0
        %v1027 = vsel %vm559, 1, 0
        %v1028 = vsel %vm560, 1, 0
        %v1029 = vsel %vm561, 1, 0
        %v1030 = vsel %vm562, 1, 0
        %v1031 = vsel %vm563, 1, 0
        %v1032 = vsel %vm564, 1, 0
        %v1033 = vsel %vm565, 1, 0
        %v1034 = vsel %vm566, 1, 0
        %v1035 = vsel %vm567, 1, 0
        %vm1036 = vcmp.eq.s32.totalorder %v1024, 1
        %vm1037 = vcmp.eq.s32.totalorder %v1025, 1
        %vm1038 = vcmp.eq.s32.totalorder %v1026, 1
        %vm1039 = vcmp.eq.s32.totalorder %v1027, 1
        %vm1040 = vcmp.eq.s32.totalorder %v1028, 1
        %vm1041 = vcmp.eq.s32.totalorder %v1029, 1
        %vm1042 = vcmp.eq.s32.totalorder %v1030, 1
        %vm1043 = vcmp.eq.s32.totalorder %v1031, 1
        %vm1044 = vcmp.eq.s32.totalorder %v1032, 1
        %vm1045 = vcmp.eq.s32.totalorder %v1033, 1
        %vm1046 = vcmp.eq.s32.totalorder %v1034, 1
        %vm1047 = vcmp.eq.s32.totalorder %v1035, 1
        %v1048 = vperm.slane %v1023, 0
        %v1049 = vperm.slane %v1023, 1
        %v1050 = vsel %vm1036, %v1048, %v1049
        %v1051 = vsel %vm1037, %v1048, %v1049
        %v1052 = vsel %vm1038, %v1048, %v1049
        %v1053 = vsel %vm1039, %v1048, %v1049
        %v1054 = vsel %vm1040, %v1048, %v1049
        %v1055 = vsel %vm1041, %v1048, %v1049
        %v1056 = vsel %vm1042, %v1048, %v1049
        %v1057 = vsel %vm1043, %v1048, %v1049
        %v1058 = vsel %vm1044, %v1048, %v1049
        %v1059 = vsel %vm1045, %v1048, %v1049
        %v1060 = vsel %vm1046, %v1048, %v1049
        %v1061 = vsel %vm1047, %v1048, %v1049
        %v1094 = vunpack.c.l.b16 %v991
        %v1095 = vunpack.c.l.b16 %v992
        %v1096 = vunpack.c.l.b16 %v993
        %v1097 = vunpack.c.l.b16 %v994
        %v1098 = vunpack.c.l.b16 %v995
        %v1099 = vunpack.c.l.b16 %v996
        %v1100 = vunpack.c.l.b16 %v997
        %v1101 = vunpack.c.l.b16 %v998
        %v1102 = vunpack.c.l.b16 %v999
        %v1103 = vunpack.c.l.b16 %v1000
        %v1104 = vunpack.c.l.b16 %v1001
        %v1105 = vunpack.c.l.b16 %v1002
        %v1106 = vunpack.c.l.b16 %v1003
        %v1107 = vunpack.c.l.b16 %v1004
        %v1108 = vunpack.c.l.b16 %v1005
        %v1109 = vunpack.c.l.b16 %v1006
        %v1110 = vunpack.c.l.b16 %v1007
        %v1111 = vunpack.c.l.b16 %v1008
        %v1112 = vunpack.c.l.b16 %v1009
        %v1113 = vunpack.c.l.b16 %v1010
        %v1114 = vunpack.c.l.b16 %v1011
        %v1115 = vunpack.c.l.b16 %v1012
        %v1116 = vunpack.c.l.b16 %v1013
        %v1117 = vunpack.c.l.b16 %v1014
        %v1118 = vunpack.c.l.b16 %v1015
        %v1119 = vunpack.c.l.b16 %v1016
        %v1120 = vunpack.c.l.b16 %v1017
        %v1121 = vunpack.c.l.b16 %v1018
        %v1122 = vunpack.c.l.b16 %v1019
        %v1123 = vunpack.c.l.b16 %v1020
        %v1124 = vunpack.c.l.b16 %v1021
        %v1125 = vunpack.c.l.b16 %v1022
        %v1126 = vpack.c.b16 %v1095, %v1094
        %v1127 = vpack.c.b16 %v1097, %v1096
        %v1128 = vpack.c.b16 %v1099, %v1098
        %v1129 = vpack.c.b16 %v1101, %v1100
        %v1130 = vpack.c.b16 %v1103, %v1102
        %v1131 = vpack.c.b16 %v1105, %v1104
        %v1132 = vpack.c.b16 %v1107, %v1106
        %v1133 = vpack.c.b16 %v1109, %v1108
        %v1134 = vpack.c.b16 %v1111, %v1110
        %v1135 = vpack.c.b16 %v1113, %v1112
        %v1136 = vpack.c.b16 %v1115, %v1114
        %v1137 = vpack.c.b16 %v1117, %v1116
        %v1138 = vpack.c.b16 %v1119, %v1118
        %v1139 = vpack.c.b16 %v1121, %v1120
        %v1140 = vpack.c.b16 %v1123, %v1122
        %v1141 = vpack.c.b16 %v1125, %v1124
        %1158 = vmatpush.bf16.msra.mxu0 %v1133
        %1159 = vmatpush.bf16.msra.mxu0 %v1132
        %1160 = vmatpush.bf16.msra.mxu0 %v1131
        %1161 = vmatpush.bf16.msra.mxu0 %v1130
        %1162 = vmatpush.bf16.msra.mxu0 %v1129
        %1163 = vmatpush.bf16.msra.mxu0 %v1128
        %1164 = vmatpush.bf16.msra.mxu0 %v1127
        %1165 = vmatpush.bf16.msra.mxu0 %v1126
        %1166 = vmatmul.bf16.gmra.mxu0 %v943
        %v1167 = vpop.f32.mrf.mxu0
        %v1168 = vadd.f32 %v1050, %v1167
        %v1169 = vpop.f32.mrf.mxu0
        %v1170 = vadd.f32 %v1051, %v1169
        %1171 = vmatmul.bf16.gmra.mxu0 %v944
        %v1172 = vpop.f32.mrf.mxu0
        %v1173 = vadd.f32 %v1052, %v1172
        %v1174 = vpop.f32.mrf.mxu0
        %v1175 = vadd.f32 %v1053, %v1174
        %1176 = vmatmul.bf16.gmra.mxu0 %v945
        %v1177 = vpop.f32.mrf.mxu0
        %v1178 = vadd.f32 %v1054, %v1177
        %v1179 = vpop.f32.mrf.mxu0
        %v1180 = vadd.f32 %v1055, %v1179
        %1181 = vmatmul.bf16.gmra.mxu0 %v946
        %v1182 = vpop.f32.mrf.mxu0
        %v1183 = vadd.f32 %v1056, %v1182
        %v1184 = vpop.f32.mrf.mxu0
        %v1185 = vadd.f32 %v1057, %v1184
        %1186 = vmatmul.bf16.gmra.mxu0 %v947
        %v1187 = vpop.f32.mrf.mxu0
        %v1188 = vadd.f32 %v1058, %v1187
        %v1189 = vpop.f32.mrf.mxu0
        %v1190 = vadd.f32 %v1059, %v1189
        %1191 = vmatmul.bf16.gmra.mxu0 %v948
        %v1192 = vpop.f32.mrf.mxu0
        %v1193 = vadd.f32 %v1060, %v1192
        %v1194 = vpop.f32.mrf.mxu0
        %v1195 = vadd.f32 %v1061, %v1194
        %1196 = vdwg.mxu0
        %1197 = vmatpush.bf16.msra.mxu0 %v1141
        %1198 = vmatpush.bf16.msra.mxu0 %v1140
        %1199 = vmatpush.bf16.msra.mxu0 %v1139
        %1200 = vmatpush.bf16.msra.mxu0 %v1138
        %1201 = vmatpush.bf16.msra.mxu0 %v1137
        %1202 = vmatpush.bf16.msra.mxu0 %v1136
        %1203 = vmatpush.bf16.msra.mxu0 %v1135
        %1204 = vmatpush.bf16.msra.mxu0 %v1134
        %1205 = vmatmul.bf16.gmra.mxu0 %v979
        %v1206 = vpop.f32.mrf.mxu0
        %v1207 = vadd.f32 %v1168, %v1206
        %v1208 = vpop.f32.mrf.mxu0
        %v1209 = vadd.f32 %v1170, %v1208
        %1210 = vmatmul.bf16.gmra.mxu0 %v980
        %v1211 = vpop.f32.mrf.mxu0
        %v1212 = vadd.f32 %v1173, %v1211
        %v1213 = vpop.f32.mrf.mxu0
        %v1214 = vadd.f32 %v1175, %v1213
        %1215 = vmatmul.bf16.gmra.mxu0 %v981
        %v1216 = vpop.f32.mrf.mxu0
        %v1217 = vadd.f32 %v1178, %v1216
        %v1218 = vpop.f32.mrf.mxu0
        %v1219 = vadd.f32 %v1180, %v1218
        %1220 = vmatmul.bf16.gmra.mxu0 %v982
        %v1221 = vpop.f32.mrf.mxu0
        %v1222 = vadd.f32 %v1183, %v1221
        %v1223 = vpop.f32.mrf.mxu0
        %v1224 = vadd.f32 %v1185, %v1223
        %1225 = vmatmul.bf16.gmra.mxu0 %v983
        %v1226 = vpop.f32.mrf.mxu0
        %v1227 = vadd.f32 %v1188, %v1226
        %v1228 = vpop.f32.mrf.mxu0
        %v1229 = vadd.f32 %v1190, %v1228
        %1230 = vmatmul.bf16.gmra.mxu0 %v984
        %v1231 = vpop.f32.mrf.mxu0
        %v1232 = vadd.f32 %v1193, %v1231
        %v1233 = vpop.f32.mrf.mxu0
        %v1234 = vadd.f32 %v1195, %v1233
        %1235 = vdwg.mxu0
        %v1236 = vmax.f32 %v1207, 0.0
        %v1237 = vmax.f32 %v1209, 0.0
        %v1238 = vmax.f32 %v1212, 0.0
        %v1239 = vmax.f32 %v1214, 0.0
        %v1240 = vmax.f32 %v1217, 0.0
        %v1241 = vmax.f32 %v1219, 0.0
        %v1242 = vmax.f32 %v1222, 0.0
        %v1243 = vmax.f32 %v1224, 0.0
        %v1244 = vmax.f32 %v1227, 0.0
        %v1245 = vmax.f32 %v1229, 0.0
        %v1246 = vmax.f32 %v1232, 0.0
        %v1247 = vmax.f32 %v1234, 0.0
        %v1248 = vpack.c.bf16 %v1237, %v1236
        %v1249 = vpack.c.bf16 %v1239, %v1238
        %v1250 = vpack.c.bf16 %v1241, %v1240
        %v1251 = vpack.c.bf16 %v1243, %v1242
        %v1252 = vpack.c.bf16 %v1245, %v1244
        %v1253 = vpack.c.bf16 %v1247, %v1246
        %1254 = vmatpush.bf16.msra.mxu0 0
        %1255 = vmatpush.bf16.msra.mxu0 0
        %1256 = vmatpush.bf16.msra.mxu0 %v1253
        %1257 = vmatpush.bf16.msra.mxu0 %v1252
        %1258 = vmatpush.bf16.msra.mxu0 %v1251
        %1259 = vmatpush.bf16.msra.mxu0 %v1250
        %1260 = vmatpush.bf16.msra.mxu0 %v1249
        %1261 = vmatpush.bf16.msra.mxu0 %v1248
        %1262 = vmatmul.bf16.gmra.mxu0 %v767
        %v1263 = vpop.f32.mrf.mxu0
        %v1264 = vadd.f32 0.0, %v1263
        %v1265 = vpop.f32.mrf.mxu0
        %v1266 = vadd.f32 0.0, %v1265
        %1267 = vmatmul.bf16.gmra.mxu0 %v770
        %v1268 = vpop.f32.mrf.mxu0
        %v1269 = vadd.f32 0.0, %v1268
        %v1270 = vpop.f32.mrf.mxu0
        %v1271 = vadd.f32 0.0, %v1270
        %1272 = vmatmul.bf16.gmra.mxu0 %v773
        %v1273 = vpop.f32.mrf.mxu0
        %v1274 = vadd.f32 0.0, %v1273
        %v1275 = vpop.f32.mrf.mxu0
        %v1276 = vadd.f32 0.0, %v1275
        %1277 = vmatmul.bf16.gmra.mxu0 %v776
        %v1278 = vpop.f32.mrf.mxu0
        %v1279 = vadd.f32 0.0, %v1278
        %v1280 = vpop.f32.mrf.mxu0
        %v1281 = vadd.f32 0.0, %v1280
        %1282 = vmatmul.bf16.gmra.mxu0 %v779
        %v1283 = vpop.f32.mrf.mxu0
        %v1284 = vadd.f32 0.0, %v1283
        %v1285 = vpop.f32.mrf.mxu0
        %v1286 = vadd.f32 0.0, %v1285
        %1287 = vmatmul.bf16.gmra.mxu0 %v782
        %v1288 = vpop.f32.mrf.mxu0
        %v1289 = vadd.f32 0.0, %v1288
        %v1290 = vpop.f32.mrf.mxu0
        %v1291 = vadd.f32 0.0, %v1290
        %1292 = vdwg.mxu0
        %v1293 = vpack.c.bf16 %v1264, %v1264
        %v1294 = vpack.c.bf16 %v1266, %v1266
        %v1295 = vpack.c.bf16 %v1269, %v1269
        %v1296 = vpack.c.bf16 %v1271, %v1271
        %v1297 = vpack.c.bf16 %v1274, %v1274
        %v1298 = vpack.c.bf16 %v1276, %v1276
        %v1299 = vpack.c.bf16 %v1279, %v1279
        %v1300 = vpack.c.bf16 %v1281, %v1281
        %v1301 = vpack.c.bf16 %v1284, %v1284
        %v1302 = vpack.c.bf16 %v1286, %v1286
        %v1303 = vpack.c.bf16 %v1289, %v1289
        %v1304 = vpack.c.bf16 %v1291, %v1291
        %v1305 = vunpack.c.l.bf16 %v1293
        %v1306 = vunpack.c.l.bf16 %v1294
        %v1307 = vunpack.c.l.bf16 %v1295
        %v1308 = vunpack.c.l.bf16 %v1296
        %v1309 = vunpack.c.l.bf16 %v1297
        %v1310 = vunpack.c.l.bf16 %v1298
        %v1311 = vunpack.c.l.bf16 %v1299
        %v1312 = vunpack.c.l.bf16 %v1300
        %v1313 = vunpack.c.l.bf16 %v1301
        %v1314 = vunpack.c.l.bf16 %v1302
        %v1315 = vunpack.c.l.bf16 %v1303
        %v1316 = vunpack.c.l.bf16 %v1304
        %v1317 = vmul.f32 %v1305, %v847
        %v1318 = vmul.f32 %v1306, %v848
        %v1319 = vmul.f32 %v1307, %v849
        %v1320 = vmul.f32 %v1308, %v850
        %v1321 = vmul.f32 %v1309, %v851
        %v1322 = vmul.f32 %v1310, %v852
        %v1323 = vmul.f32 %v1311, %v853
        %v1324 = vmul.f32 %v1312, %v854
        %v1325 = vmul.f32 %v1313, %v855
        %v1326 = vmul.f32 %v1314, %v856
        %v1327 = vmul.f32 %v1315, %v857
        %v1328 = vmul.f32 %v1316, %v858
        %v1329 = vpack.c.bf16 %v1317, %v1317
        %v1330 = vpack.c.bf16 %v1318, %v1318
        %v1331 = vpack.c.bf16 %v1319, %v1319
        %v1332 = vpack.c.bf16 %v1320, %v1320
        %v1333 = vpack.c.bf16 %v1321, %v1321
        %v1334 = vpack.c.bf16 %v1322, %v1322
        %v1335 = vpack.c.bf16 %v1323, %v1323
        %v1336 = vpack.c.bf16 %v1324, %v1324
        %v1337 = vpack.c.bf16 %v1325, %v1325
        %v1338 = vpack.c.bf16 %v1326, %v1326
        %v1339 = vpack.c.bf16 %v1327, %v1327
        %v1340 = vpack.c.bf16 %v1328, %v1328
        %v1341 = vmul.f32 %v1305, %v883
        %v1342 = vmul.f32 %v1306, %v884
        %v1343 = vmul.f32 %v1307, %v885
        %v1344 = vmul.f32 %v1308, %v886
        %v1345 = vmul.f32 %v1309, %v887
        %v1346 = vmul.f32 %v1310, %v888
        %v1347 = vmul.f32 %v1311, %v889
        %v1348 = vmul.f32 %v1312, %v890
        %v1349 = vmul.f32 %v1313, %v891
        %v1350 = vmul.f32 %v1314, %v892
        %v1351 = vmul.f32 %v1315, %v893
        %v1352 = vmul.f32 %v1316, %v894
        %v1353 = vpack.c.bf16 %v1341, %v1341
        %v1354 = vpack.c.bf16 %v1342, %v1342
        %v1355 = vpack.c.bf16 %v1343, %v1343
        %v1356 = vpack.c.bf16 %v1344, %v1344
        %v1357 = vpack.c.bf16 %v1345, %v1345
        %v1358 = vpack.c.bf16 %v1346, %v1346
        %v1359 = vpack.c.bf16 %v1347, %v1347
        %v1360 = vpack.c.bf16 %v1348, %v1348
        %v1361 = vpack.c.bf16 %v1349, %v1349
        %v1362 = vpack.c.bf16 %v1350, %v1350
        %v1363 = vpack.c.bf16 %v1351, %v1351
        %v1364 = vpack.c.bf16 %v1352, %v1352
        %v1377 = vunpack.c.l.b16 %v1329
        %v1378 = vunpack.c.l.b16 %v1330
        %v1379 = vunpack.c.l.b16 %v1331
        %v1380 = vunpack.c.l.b16 %v1332
        %v1381 = vunpack.c.l.b16 %v1333
        %v1382 = vunpack.c.l.b16 %v1334
        %v1383 = vunpack.c.l.b16 %v1335
        %v1384 = vunpack.c.l.b16 %v1336
        %v1385 = vunpack.c.l.b16 %v1337
        %v1386 = vunpack.c.l.b16 %v1338
        %v1387 = vunpack.c.l.b16 %v1339
        %v1388 = vunpack.c.l.b16 %v1340
        %v1389 = vpack.c.b16 %v1378, %v1377
        %v1390 = vpack.c.b16 %v1380, %v1379
        %v1391 = vpack.c.b16 %v1382, %v1381
        %v1392 = vpack.c.b16 %v1384, %v1383
        %v1393 = vpack.c.b16 %v1386, %v1385
        %v1394 = vpack.c.b16 %v1388, %v1387
        %v1413 = vunpack.c.l.b16 %v1353
        %v1414 = vunpack.c.l.b16 %v1354
        %v1415 = vunpack.c.l.b16 %v1355
        %v1416 = vunpack.c.l.b16 %v1356
        %v1417 = vunpack.c.l.b16 %v1357
        %v1418 = vunpack.c.l.b16 %v1358
        %v1419 = vunpack.c.l.b16 %v1359
        %v1420 = vunpack.c.l.b16 %v1360
        %v1421 = vunpack.c.l.b16 %v1361
        %v1422 = vunpack.c.l.b16 %v1362
        %v1423 = vunpack.c.l.b16 %v1363
        %v1424 = vunpack.c.l.b16 %v1364
        %v1425 = vpack.c.b16 %v1414, %v1413
        %v1426 = vpack.c.b16 %v1416, %v1415
        %v1427 = vpack.c.b16 %v1418, %v1417
        %v1428 = vpack.c.b16 %v1420, %v1419
        %v1429 = vpack.c.b16 %v1422, %v1421
        %v1430 = vpack.c.b16 %v1424, %v1423
        %s1437 = scalar_lea.vmem [#allocation8], 128
        %v1438 = vld [vmem:[%s1437] sm:$0xf]
        %v1439 = vld [vmem:[%s1437 + $0x4] sm:$0xf]
        %v1440 = vld [vmem:[%s1437 + $0x8] sm:$0xf]
        %v1441 = vld [vmem:[%s1437 + $0xc] sm:$0xf]
        %v1442 = vld [vmem:[%s1437 + $0x10] sm:$0xf]
        %v1443 = vld [vmem:[%s1437 + $0x14] sm:$0xf]
        %v1444 = vld [vmem:[%s1437 + $0x18] sm:$0xf]
        %v1445 = vld [vmem:[%s1437 + $0x1c] sm:$0xf]
        %v1446 = vld [vmem:[%s1437 + $0x20] sm:$0xf]
        %v1447 = vld [vmem:[%s1437 + $0x24] sm:$0xf]
        %v1448 = vld [vmem:[%s1437 + $0x28] sm:$0xf]
        %v1449 = vld [vmem:[%s1437 + $0x2c] sm:$0xf]
        %v1450 = vld [vmem:[%s1437 + $0x30] sm:$0xf]
        %v1451 = vld [vmem:[%s1437 + $0x34] sm:$0xf]
        %v1452 = vld [vmem:[%s1437 + $0x38] sm:$0xf]
        %v1453 = vld [vmem:[%s1437 + $0x3c] sm:$0xf]
        %v1454 = vld [vmem:[%s1437 + $0x40] sm:$0xf]
        %v1455 = vld [vmem:[%s1437 + $0x44] sm:$0xf]
        %v1456 = vld [vmem:[%s1437 + $0x48] sm:$0xf]
        %v1457 = vld [vmem:[%s1437 + $0x4c] sm:$0xf]
        %v1458 = vld [vmem:[%s1437 + $0x50] sm:$0xf]
        %v1459 = vld [vmem:[%s1437 + $0x54] sm:$0xf]
        %v1460 = vld [vmem:[%s1437 + $0x58] sm:$0xf]
        %v1461 = vld [vmem:[%s1437 + $0x5c] sm:$0xf]
        %v1462 = vld [vmem:[%s1437 + $0x60] sm:$0xf]
        %v1463 = vld [vmem:[%s1437 + $0x64] sm:$0xf]
        %v1464 = vld [vmem:[%s1437 + $0x68] sm:$0xf]
        %v1465 = vld [vmem:[%s1437 + $0x6c] sm:$0xf]
        %v1466 = vld [vmem:[%s1437 + $0x70] sm:$0xf]
        %v1467 = vld [vmem:[%s1437 + $0x74] sm:$0xf]
        %v1468 = vld [vmem:[%s1437 + $0x78] sm:$0xf]
        %v1469 = vld [vmem:[%s1437 + $0x7c] sm:$0xf]
        %s1470 = scalar_lea.vmem [#allocation9], 2
        %v1471 = vld [vmem:[%s1470] sm:$0x3]
        %v1472 = vperm.slane %v1471, 0
        %v1473 = vperm.slane %v1471, 1
        %v1474 = vsel %vm1036, %v1472, %v1473
        %v1475 = vsel %vm1037, %v1472, %v1473
        %v1476 = vsel %vm1038, %v1472, %v1473
        %v1477 = vsel %vm1039, %v1472, %v1473
        %v1478 = vsel %vm1040, %v1472, %v1473
        %v1479 = vsel %vm1041, %v1472, %v1473
        %v1480 = vsel %vm1042, %v1472, %v1473
        %v1481 = vsel %vm1043, %v1472, %v1473
        %v1482 = vsel %vm1044, %v1472, %v1473
        %v1483 = vsel %vm1045, %v1472, %v1473
        %v1484 = vsel %vm1046, %v1472, %v1473
        %v1485 = vsel %vm1047, %v1472, %v1473
        %v1518 = vunpack.c.l.b16 %v1438
        %v1519 = vunpack.c.l.b16 %v1439
        %v1520 = vunpack.c.l.b16 %v1440
        %v1521 = vunpack.c.l.b16 %v1441
        %v1522 = vunpack.c.l.b16 %v1442
        %v1523 = vunpack.c.l.b16 %v1443
        %v1524 = vunpack.c.l.b16 %v1444
        %v1525 = vunpack.c.l.b16 %v1445
        %v1526 = vunpack.c.l.b16 %v1446
        %v1527 = vunpack.c.l.b16 %v1447
        %v1528 = vunpack.c.l.b16 %v1448
        %v1529 = vunpack.c.l.b16 %v1449
        %v1530 = vunpack.c.l.b16 %v1450
        %v1531 = vunpack.c.l.b16 %v1451
        %v1532 = vunpack.c.l.b16 %v1452
        %v1533 = vunpack.c.l.b16 %v1453
        %v1534 = vunpack.c.l.b16 %v1454
        %v1535 = vunpack.c.l.b16 %v1455
        %v1536 = vunpack.c.l.b16 %v1456
        %v1537 = vunpack.c.l.b16 %v1457
        %v1538 = vunpack.c.l.b16 %v1458
        %v1539 = vunpack.c.l.b16 %v1459
        %v1540 = vunpack.c.l.b16 %v1460
        %v1541 = vunpack.c.l.b16 %v1461
        %v1542 = vunpack.c.l.b16 %v1462
        %v1543 = vunpack.c.l.b16 %v1463
        %v1544 = vunpack.c.l.b16 %v1464
        %v1545 = vunpack.c.l.b16 %v1465
        %v1546 = vunpack.c.l.b16 %v1466
        %v1547 = vunpack.c.l.b16 %v1467
        %v1548 = vunpack.c.l.b16 %v1468
        %v1549 = vunpack.c.l.b16 %v1469
        %v1550 = vpack.c.b16 %v1519, %v1518
        %v1551 = vpack.c.b16 %v1521, %v1520
        %v1552 = vpack.c.b16 %v1523, %v1522
        %v1553 = vpack.c.b16 %v1525, %v1524
        %v1554 = vpack.c.b16 %v1527, %v1526
        %v1555 = vpack.c.b16 %v1529, %v1528
        %v1556 = vpack.c.b16 %v1531, %v1530
        %v1557 = vpack.c.b16 %v1533, %v1532
        %v1558 = vpack.c.b16 %v1535, %v1534
        %v1559 = vpack.c.b16 %v1537, %v1536
        %v1560 = vpack.c.b16 %v1539, %v1538
        %v1561 = vpack.c.b16 %v1541, %v1540
        %v1562 = vpack.c.b16 %v1543, %v1542
        %v1563 = vpack.c.b16 %v1545, %v1544
        %v1564 = vpack.c.b16 %v1547, %v1546
        %v1565 = vpack.c.b16 %v1549, %v1548
        %1582 = vmatpush.bf16.msra.mxu0 %v1557
        %1583 = vmatpush.bf16.msra.mxu0 %v1556
        %1584 = vmatpush.bf16.msra.mxu0 %v1555
        %1585 = vmatpush.bf16.msra.mxu0 %v1554
        %1586 = vmatpush.bf16.msra.mxu0 %v1553
        %1587 = vmatpush.bf16.msra.mxu0 %v1552
        %1588 = vmatpush.bf16.msra.mxu0 %v1551
        %1589 = vmatpush.bf16.msra.mxu0 %v1550
        %1590 = vmatmul.bf16.gmra.mxu0 %v1389
        %v1591 = vpop.f32.mrf.mxu0
        %v1592 = vadd.f32 %v1474, %v1591
        %v1593 = vpop.f32.mrf.mxu0
        %v1594 = vadd.f32 %v1475, %v1593
        %1595 = vmatmul.bf16.gmra.mxu0 %v1390
        %v1596 = vpop.f32.mrf.mxu0
        %v1597 = vadd.f32 %v1476, %v1596
        %v1598 = vpop.f32.mrf.mxu0
        %v1599 = vadd.f32 %v1477, %v1598
        %1600 = vmatmul.bf16.gmra.mxu0 %v1391
        %v1601 = vpop.f32.mrf.mxu0
        %v1602 = vadd.f32 %v1478, %v1601
        %v1603 = vpop.f32.mrf.mxu0
        %v1604 = vadd.f32 %v1479, %v1603
        %1605 = vmatmul.bf16.gmra.mxu0 %v1392
        %v1606 = vpop.f32.mrf.mxu0
        %v1607 = vadd.f32 %v1480, %v1606
        %v1608 = vpop.f32.mrf.mxu0
        %v1609 = vadd.f32 %v1481, %v1608
        %1610 = vmatmul.bf16.gmra.mxu0 %v1393
        %v1611 = vpop.f32.mrf.mxu0
        %v1612 = vadd.f32 %v1482, %v1611
        %v1613 = vpop.f32.mrf.mxu0
        %v1614 = vadd.f32 %v1483, %v1613
        %1615 = vmatmul.bf16.gmra.mxu0 %v1394
        %v1616 = vpop.f32.mrf.mxu0
        %v1617 = vadd.f32 %v1484, %v1616
        %v1618 = vpop.f32.mrf.mxu0
        %v1619 = vadd.f32 %v1485, %v1618
        %1620 = vdwg.mxu0
        %1621 = vmatpush.bf16.msra.mxu0 %v1565
        %1622 = vmatpush.bf16.msra.mxu0 %v1564
        %1623 = vmatpush.bf16.msra.mxu0 %v1563
        %1624 = vmatpush.bf16.msra.mxu0 %v1562
        %1625 = vmatpush.bf16.msra.mxu0 %v1561
        %1626 = vmatpush.bf16.msra.mxu0 %v1560
        %1627 = vmatpush.bf16.msra.mxu0 %v1559
        %1628 = vmatpush.bf16.msra.mxu0 %v1558
        %1629 = vmatmul.bf16.gmra.mxu0 %v1425
        %v1630 = vpop.f32.mrf.mxu0
        %v1631 = vadd.f32 %v1592, %v1630
        %v1632 = vpop.f32.mrf.mxu0
        %v1633 = vadd.f32 %v1594, %v1632
        %1634 = vmatmul.bf16.gmra.mxu0 %v1426
        %v1635 = vpop.f32.mrf.mxu0
        %v1636 = vadd.f32 %v1597, %v1635
        %v1637 = vpop.f32.mrf.mxu0
        %v1638 = vadd.f32 %v1599, %v1637
        %1639 = vmatmul.bf16.gmra.mxu0 %v1427
        %v1640 = vpop.f32.mrf.mxu0
        %v1641 = vadd.f32 %v1602, %v1640
        %v1642 = vpop.f32.mrf.mxu0
        %v1643 = vadd.f32 %v1604, %v1642
        %1644 = vmatmul.bf16.gmra.mxu0 %v1428
        %v1645 = vpop.f32.mrf.mxu0
        %v1646 = vadd.f32 %v1607, %v1645
        %v1647 = vpop.f32.mrf.mxu0
        %v1648 = vadd.f32 %v1609, %v1647
        %1649 = vmatmul.bf16.gmra.mxu0 %v1429
        %v1650 = vpop.f32.mrf.mxu0
        %v1651 = vadd.f32 %v1612, %v1650
        %v1652 = vpop.f32.mrf.mxu0
        %v1653 = vadd.f32 %v1614, %v1652
        %1654 = vmatmul.bf16.gmra.mxu0 %v1430
        %v1655 = vpop.f32.mrf.mxu0
        %v1656 = vadd.f32 %v1617, %v1655
        %v1657 = vpop.f32.mrf.mxu0
        %v1658 = vadd.f32 %v1619, %v1657
        %1659 = vdwg.mxu0
        %v1660 = vmax.f32 %v1631, 0.0
        %v1661 = vmax.f32 %v1633, 0.0
        %v1662 = vmax.f32 %v1636, 0.0
        %v1663 = vmax.f32 %v1638, 0.0
        %v1664 = vmax.f32 %v1641, 0.0
        %v1665 = vmax.f32 %v1643, 0.0
        %v1666 = vmax.f32 %v1646, 0.0
        %v1667 = vmax.f32 %v1648, 0.0
        %v1668 = vmax.f32 %v1651, 0.0
        %v1669 = vmax.f32 %v1653, 0.0
        %v1670 = vmax.f32 %v1656, 0.0
        %v1671 = vmax.f32 %v1658, 0.0
        %v1672 = vpack.c.bf16 %v1660, %v1660
        %v1673 = vpack.c.bf16 %v1661, %v1661
        %v1674 = vpack.c.bf16 %v1662, %v1662
        %v1675 = vpack.c.bf16 %v1663, %v1663
        %v1676 = vpack.c.bf16 %v1664, %v1664
        %v1677 = vpack.c.bf16 %v1665, %v1665
        %v1678 = vpack.c.bf16 %v1666, %v1666
        %v1679 = vpack.c.bf16 %v1667, %v1667
        %v1680 = vpack.c.bf16 %v1668, %v1668
        %v1681 = vpack.c.bf16 %v1669, %v1669
        %v1682 = vpack.c.bf16 %v1670, %v1670
        %v1683 = vpack.c.bf16 %v1671, %v1671
        %v1684 = vunpack.c.l.bf16 %v1672
        %v1685 = vunpack.c.l.bf16 %v1673
        %v1686 = vunpack.c.l.bf16 %v1674
        %v1687 = vunpack.c.l.bf16 %v1675
        %v1688 = vunpack.c.l.bf16 %v1676
        %v1689 = vunpack.c.l.bf16 %v1677
        %v1690 = vunpack.c.l.bf16 %v1678
        %v1691 = vunpack.c.l.bf16 %v1679
        %v1692 = vunpack.c.l.bf16 %v1680
        %v1693 = vunpack.c.l.bf16 %v1681
        %v1694 = vunpack.c.l.bf16 %v1682
        %v1695 = vunpack.c.l.bf16 %v1683
        %v1696 = vmul.f32 %v1684, %v847
        %v1697 = vmul.f32 %v1685, %v848
        %v1698 = vmul.f32 %v1686, %v849
        %v1699 = vmul.f32 %v1687, %v850
        %v1700 = vmul.f32 %v1688, %v851
        %v1701 = vmul.f32 %v1689, %v852
        %v1702 = vmul.f32 %v1690, %v853
        %v1703 = vmul.f32 %v1691, %v854
        %v1704 = vmul.f32 %v1692, %v855
        %v1705 = vmul.f32 %v1693, %v856
        %v1706 = vmul.f32 %v1694, %v857
        %v1707 = vmul.f32 %v1695, %v858
        %v1708 = vpack.c.bf16 %v1696, %v1696
        %v1709 = vpack.c.bf16 %v1697, %v1697
        %v1710 = vpack.c.bf16 %v1698, %v1698
        %v1711 = vpack.c.bf16 %v1699, %v1699
        %v1712 = vpack.c.bf16 %v1700, %v1700
        %v1713 = vpack.c.bf16 %v1701, %v1701
        %v1714 = vpack.c.bf16 %v1702, %v1702
        %v1715 = vpack.c.bf16 %v1703, %v1703
        %v1716 = vpack.c.bf16 %v1704, %v1704
        %v1717 = vpack.c.bf16 %v1705, %v1705
        %v1718 = vpack.c.bf16 %v1706, %v1706
        %v1719 = vpack.c.bf16 %v1707, %v1707
        %v1720 = vmul.f32 %v1684, %v883
        %v1721 = vmul.f32 %v1685, %v884
        %v1722 = vmul.f32 %v1686, %v885
        %v1723 = vmul.f32 %v1687, %v886
        %v1724 = vmul.f32 %v1688, %v887
        %v1725 = vmul.f32 %v1689, %v888
        %v1726 = vmul.f32 %v1690, %v889
        %v1727 = vmul.f32 %v1691, %v890
        %v1728 = vmul.f32 %v1692, %v891
        %v1729 = vmul.f32 %v1693, %v892
        %v1730 = vmul.f32 %v1694, %v893
        %v1731 = vmul.f32 %v1695, %v894
        %v1732 = vpack.c.bf16 %v1720, %v1720
        %v1733 = vpack.c.bf16 %v1721, %v1721
        %v1734 = vpack.c.bf16 %v1722, %v1722
        %v1735 = vpack.c.bf16 %v1723, %v1723
        %v1736 = vpack.c.bf16 %v1724, %v1724
        %v1737 = vpack.c.bf16 %v1725, %v1725
        %v1738 = vpack.c.bf16 %v1726, %v1726
        %v1739 = vpack.c.bf16 %v1727, %v1727
        %v1740 = vpack.c.bf16 %v1728, %v1728
        %v1741 = vpack.c.bf16 %v1729, %v1729
        %v1742 = vpack.c.bf16 %v1730, %v1730
        %v1743 = vpack.c.bf16 %v1731, %v1731
        %v1756 = vunpack.c.l.b16 %v1708
        %v1757 = vunpack.c.l.b16 %v1709
        %v1758 = vunpack.c.l.b16 %v1710
        %v1759 = vunpack.c.l.b16 %v1711
        %v1760 = vunpack.c.l.b16 %v1712
        %v1761 = vunpack.c.l.b16 %v1713
        %v1762 = vunpack.c.l.b16 %v1714
        %v1763 = vunpack.c.l.b16 %v1715
        %v1764 = vunpack.c.l.b16 %v1716
        %v1765 = vunpack.c.l.b16 %v1717
        %v1766 = vunpack.c.l.b16 %v1718
        %v1767 = vunpack.c.l.b16 %v1719
        %v1768 = vpack.c.b16 %v1757, %v1756
        %v1769 = vpack.c.b16 %v1759, %v1758
        %v1770 = vpack.c.b16 %v1761, %v1760
        %v1771 = vpack.c.b16 %v1763, %v1762
        %v1772 = vpack.c.b16 %v1765, %v1764
        %v1773 = vpack.c.b16 %v1767, %v1766
        %v1792 = vunpack.c.l.b16 %v1732
        %v1793 = vunpack.c.l.b16 %v1733
        %v1794 = vunpack.c.l.b16 %v1734
        %v1795 = vunpack.c.l.b16 %v1735
        %v1796 = vunpack.c.l.b16 %v1736
        %v1797 = vunpack.c.l.b16 %v1737
        %v1798 = vunpack.c.l.b16 %v1738
        %v1799 = vunpack.c.l.b16 %v1739
        %v1800 = vunpack.c.l.b16 %v1740
        %v1801 = vunpack.c.l.b16 %v1741
        %v1802 = vunpack.c.l.b16 %v1742
        %v1803 = vunpack.c.l.b16 %v1743
        %v1804 = vpack.c.b16 %v1793, %v1792
        %v1805 = vpack.c.b16 %v1795, %v1794
        %v1806 = vpack.c.b16 %v1797, %v1796
        %v1807 = vpack.c.b16 %v1799, %v1798
        %v1808 = vpack.c.b16 %v1801, %v1800
        %v1809 = vpack.c.b16 %v1803, %v1802
        %v1816 = vld [vmem:[#allocation11] sm:$0xf]
        %v1817 = vld [vmem:[#allocation11 + $0x4] sm:$0xf]
        %v1818 = vld [vmem:[#allocation11 + $0x8] sm:$0xf]
        %v1819 = vld [vmem:[#allocation11 + $0xc] sm:$0xf]
        %v1820 = vld [vmem:[#allocation11 + $0x10] sm:$0xf]
        %v1821 = vld [vmem:[#allocation11 + $0x14] sm:$0xf]
        %v1822 = vld [vmem:[#allocation11 + $0x18] sm:$0xf]
        %v1823 = vld [vmem:[#allocation11 + $0x1c] sm:$0xf]
        %v1824 = vld [vmem:[#allocation11 + $0x20] sm:$0xf]
        %v1825 = vld [vmem:[#allocation11 + $0x24] sm:$0xf]
        %v1826 = vld [vmem:[#allocation11 + $0x28] sm:$0xf]
        %v1827 = vld [vmem:[#allocation11 + $0x2c] sm:$0xf]
        %v1828 = vld [vmem:[#allocation11 + $0x30] sm:$0xf]
        %v1829 = vld [vmem:[#allocation11 + $0x34] sm:$0xf]
        %v1830 = vld [vmem:[#allocation11 + $0x38] sm:$0xf]
        %v1831 = vld [vmem:[#allocation11 + $0x3c] sm:$0xf]
        %v1832 = vld [vmem:[#allocation11 + $0x40] sm:$0xf]
        %v1833 = vld [vmem:[#allocation11 + $0x44] sm:$0xf]
        %v1834 = vld [vmem:[#allocation11 + $0x48] sm:$0xf]
        %v1835 = vld [vmem:[#allocation11 + $0x4c] sm:$0xf]
        %v1836 = vld [vmem:[#allocation11 + $0x50] sm:$0xf]
        %v1837 = vld [vmem:[#allocation11 + $0x54] sm:$0xf]
        %v1838 = vld [vmem:[#allocation11 + $0x58] sm:$0xf]
        %v1839 = vld [vmem:[#allocation11 + $0x5c] sm:$0xf]
        %v1840 = vld [vmem:[#allocation11 + $0x60] sm:$0xf]
        %v1841 = vld [vmem:[#allocation11 + $0x64] sm:$0xf]
        %v1842 = vld [vmem:[#allocation11 + $0x68] sm:$0xf]
        %v1843 = vld [vmem:[#allocation11 + $0x6c] sm:$0xf]
        %v1844 = vld [vmem:[#allocation11 + $0x70] sm:$0xf]
        %v1845 = vld [vmem:[#allocation11 + $0x74] sm:$0xf]
        %v1846 = vld [vmem:[#allocation11 + $0x78] sm:$0xf]
        %v1847 = vld [vmem:[#allocation11 + $0x7c] sm:$0xf]
        %v1848 = vld [vmem:[%s6] sm:$0x3]
        %v1849 = vperm.slane %v1848, 0
        %v1850 = vperm.slane %v1848, 1
        %v1851 = vsel %vm1036, %v1849, %v1850
        %v1852 = vsel %vm1037, %v1849, %v1850
        %v1853 = vsel %vm1038, %v1849, %v1850
        %v1854 = vsel %vm1039, %v1849, %v1850
        %v1855 = vsel %vm1040, %v1849, %v1850
        %v1856 = vsel %vm1041, %v1849, %v1850
        %v1857 = vsel %vm1042, %v1849, %v1850
        %v1858 = vsel %vm1043, %v1849, %v1850
        %v1859 = vsel %vm1044, %v1849, %v1850
        %v1860 = vsel %vm1045, %v1849, %v1850
        %v1861 = vsel %vm1046, %v1849, %v1850
        %v1862 = vsel %vm1047, %v1849, %v1850
        %v1895 = vunpack.c.l.b16 %v1816
        %v1896 = vunpack.c.l.b16 %v1817
        %v1897 = vunpack.c.l.b16 %v1818
        %v1898 = vunpack.c.l.b16 %v1819
        %v1899 = vunpack.c.l.b16 %v1820
        %v1900 = vunpack.c.l.b16 %v1821
        %v1901 = vunpack.c.l.b16 %v1822
        %v1902 = vunpack.c.l.b16 %v1823
        %v1903 = vunpack.c.l.b16 %v1824
        %v1904 = vunpack.c.l.b16 %v1825
        %v1905 = vunpack.c.l.b16 %v1826
        %v1906 = vunpack.c.l.b16 %v1827
        %v1907 = vunpack.c.l.b16 %v1828
        %v1908 = vunpack.c.l.b16 %v1829
        %v1909 = vunpack.c.l.b16 %v1830
        %v1910 = vunpack.c.l.b16 %v1831
        %v1911 = vunpack.c.l.b16 %v1832
        %v1912 = vunpack.c.l.b16 %v1833
        %v1913 = vunpack.c.l.b16 %v1834
        %v1914 = vunpack.c.l.b16 %v1835
        %v1915 = vunpack.c.l.b16 %v1836
        %v1916 = vunpack.c.l.b16 %v1837
        %v1917 = vunpack.c.l.b16 %v1838
        %v1918 = vunpack.c.l.b16 %v1839
        %v1919 = vunpack.c.l.b16 %v1840
        %v1920 = vunpack.c.l.b16 %v1841
        %v1921 = vunpack.c.l.b16 %v1842
        %v1922 = vunpack.c.l.b16 %v1843
        %v1923 = vunpack.c.l.b16 %v1844
        %v1924 = vunpack.c.l.b16 %v1845
        %v1925 = vunpack.c.l.b16 %v1846
        %v1926 = vunpack.c.l.b16 %v1847
        %v1927 = vpack.c.b16 %v1896, %v1895
        %v1928 = vpack.c.b16 %v1898, %v1897
        %v1929 = vpack.c.b16 %v1900, %v1899
        %v1930 = vpack.c.b16 %v1902, %v1901
        %v1931 = vpack.c.b16 %v1904, %v1903
        %v1932 = vpack.c.b16 %v1906, %v1905
        %v1933 = vpack.c.b16 %v1908, %v1907
        %v1934 = vpack.c.b16 %v1910, %v1909
        %v1935 = vpack.c.b16 %v1912, %v1911
        %v1936 = vpack.c.b16 %v1914, %v1913
        %v1937 = vpack.c.b16 %v1916, %v1915
        %v1938 = vpack.c.b16 %v1918, %v1917
        %v1939 = vpack.c.b16 %v1920, %v1919
        %v1940 = vpack.c.b16 %v1922, %v1921
        %v1941 = vpack.c.b16 %v1924, %v1923
        %v1942 = vpack.c.b16 %v1926, %v1925
        %1959 = vmatpush.bf16.msra.mxu0 %v1934
        %1960 = vmatpush.bf16.msra.mxu0 %v1933
        %1961 = vmatpush.bf16.msra.mxu0 %v1932
        %1962 = vmatpush.bf16.msra.mxu0 %v1931
        %1963 = vmatpush.bf16.msra.mxu0 %v1930
        %1964 = vmatpush.bf16.msra.mxu0 %v1929
        %1965 = vmatpush.bf16.msra.mxu0 %v1928
        %1966 = vmatpush.bf16.msra.mxu0 %v1927
        %1967 = vmatmul.bf16.gmra.mxu0 %v1768
        %v1968 = vpop.f32.mrf.mxu0
        %v1969 = vadd.f32 %v1851, %v1968
        %v1970 = vpop.f32.mrf.mxu0
        %v1971 = vadd.f32 %v1852, %v1970
        %1972 = vmatmul.bf16.gmra.mxu0 %v1769
        %v1973 = vpop.f32.mrf.mxu0
        %v1974 = vadd.f32 %v1853, %v1973
        %v1975 = vpop.f32.mrf.mxu0
        %v1976 = vadd.f32 %v1854, %v1975
        %1977 = vmatmul.bf16.gmra.mxu0 %v1770
        %v1978 = vpop.f32.mrf.mxu0
        %v1979 = vadd.f32 %v1855, %v1978
        %v1980 = vpop.f32.mrf.mxu0
        %v1981 = vadd.f32 %v1856, %v1980
        %1982 = vmatmul.bf16.gmra.mxu0 %v1771
        %v1983 = vpop.f32.mrf.mxu0
        %v1984 = vadd.f32 %v1857, %v1983
        %v1985 = vpop.f32.mrf.mxu0
        %v1986 = vadd.f32 %v1858, %v1985
        %1987 = vmatmul.bf16.gmra.mxu0 %v1772
        %v1988 = vpop.f32.mrf.mxu0
        %v1989 = vadd.f32 %v1859, %v1988
        %v1990 = vpop.f32.mrf.mxu0
        %v1991 = vadd.f32 %v1860, %v1990
        %1992 = vmatmul.bf16.gmra.mxu0 %v1773
        %v1993 = vpop.f32.mrf.mxu0
        %v1994 = vadd.f32 %v1861, %v1993
        %v1995 = vpop.f32.mrf.mxu0
        %v1996 = vadd.f32 %v1862, %v1995
        %1997 = vdwg.mxu0
        %1998 = vmatpush.bf16.msra.mxu0 %v1942
        %1999 = vmatpush.bf16.msra.mxu0 %v1941
        %2000 = vmatpush.bf16.msra.mxu0 %v1940
        %2001 = vmatpush.bf16.msra.mxu0 %v1939
        %2002 = vmatpush.bf16.msra.mxu0 %v1938
        %2003 = vmatpush.bf16.msra.mxu0 %v1937
        %2004 = vmatpush.bf16.msra.mxu0 %v1936
        %2005 = vmatpush.bf16.msra.mxu0 %v1935
        %2006 = vmatmul.bf16.gmra.mxu0 %v1804
        %v2007 = vpop.f32.mrf.mxu0
        %v2008 = vadd.f32 %v1969, %v2007
        %v2009 = vpop.f32.mrf.mxu0
        %v2010 = vadd.f32 %v1971, %v2009
        %2011 = vmatmul.bf16.gmra.mxu0 %v1805
        %v2012 = vpop.f32.mrf.mxu0
        %v2013 = vadd.f32 %v1974, %v2012
        %v2014 = vpop.f32.mrf.mxu0
        %v2015 = vadd.f32 %v1976, %v2014
        %2016 = vmatmul.bf16.gmra.mxu0 %v1806
        %v2017 = vpop.f32.mrf.mxu0
        %v2018 = vadd.f32 %v1979, %v2017
        %v2019 = vpop.f32.mrf.mxu0
        %v2020 = vadd.f32 %v1981, %v2019
        %2021 = vmatmul.bf16.gmra.mxu0 %v1807
        %v2022 = vpop.f32.mrf.mxu0
        %v2023 = vadd.f32 %v1984, %v2022
        %v2024 = vpop.f32.mrf.mxu0
        %v2025 = vadd.f32 %v1986, %v2024
        %2026 = vmatmul.bf16.gmra.mxu0 %v1808
        %v2027 = vpop.f32.mrf.mxu0
        %v2028 = vadd.f32 %v1989, %v2027
        %v2029 = vpop.f32.mrf.mxu0
        %v2030 = vadd.f32 %v1991, %v2029
        %2031 = vmatmul.bf16.gmra.mxu0 %v1809
        %v2032 = vpop.f32.mrf.mxu0
        %v2033 = vadd.f32 %v1994, %v2032
        %v2034 = vpop.f32.mrf.mxu0
        %v2035 = vadd.f32 %v1996, %v2034
        %2036 = vdwg.mxu0
        %v2037 = vpack.c.bf16 %v2010, %v2008
        %v2038 = vpack.c.bf16 %v2015, %v2013
        %v2039 = vpack.c.bf16 %v2020, %v2018
        %v2040 = vpack.c.bf16 %v2025, %v2023
        %v2041 = vpack.c.bf16 %v2030, %v2028
        %v2042 = vpack.c.bf16 %v2035, %v2033
        %v2044 = vsel %vm765, %v681, 0
        %v2047 = vsel %vm765, %v682, 0
        %v2050 = vsel %vm765, %v683, 0
        %v2053 = vsel %vm765, %v684, 0
        %v2056 = vsel %vm765, %v685, 0
        %v2059 = vsel %vm765, %v686, 0
        %2061 = vmatpush.bf16.msra.mxu0 0
        %2062 = vmatpush.bf16.msra.mxu0 0
        %2063 = vmatpush.bf16.msra.mxu0 %v2042
        %2064 = vmatpush.bf16.msra.mxu0 %v2041
        %2065 = vmatpush.bf16.msra.mxu0 %v2040
        %2066 = vmatpush.bf16.msra.mxu0 %v2039
        %2067 = vmatpush.bf16.msra.mxu0 %v2038
        %2068 = vmatpush.bf16.msra.mxu0 %v2037
        %2069 = vmatmul.bf16.gmra.mxu0 %v2044
        %v2070 = vpop.f32.mrf.mxu0
        %v2071 = vadd.f32 0.0, %v2070
        %v2072 = vpop.f32.mrf.mxu0
        %v2073 = vadd.f32 0.0, %v2072
        %2074 = vmatmul.bf16.gmra.mxu0 %v2047
        %v2075 = vpop.f32.mrf.mxu0
        %v2076 = vadd.f32 0.0, %v2075
        %v2077 = vpop.f32.mrf.mxu0
        %v2078 = vadd.f32 0.0, %v2077
        %2079 = vmatmul.bf16.gmra.mxu0 %v2050
        %v2080 = vpop.f32.mrf.mxu0
        %v2081 = vadd.f32 0.0, %v2080
        %v2082 = vpop.f32.mrf.mxu0
        %v2083 = vadd.f32 0.0, %v2082
        %2084 = vmatmul.bf16.gmra.mxu0 %v2053
        %v2085 = vpop.f32.mrf.mxu0
        %v2086 = vadd.f32 0.0, %v2085
        %v2087 = vpop.f32.mrf.mxu0
        %v2088 = vadd.f32 0.0, %v2087
        %2089 = vmatmul.bf16.gmra.mxu0 %v2056
        %v2090 = vpop.f32.mrf.mxu0
        %v2091 = vadd.f32 0.0, %v2090
        %v2092 = vpop.f32.mrf.mxu0
        %v2093 = vadd.f32 0.0, %v2092
        %2094 = vmatmul.bf16.gmra.mxu0 %v2059
        %v2095 = vpop.f32.mrf.mxu0
        %v2096 = vadd.f32 0.0, %v2095
        %v2097 = vpop.f32.mrf.mxu0
        %v2098 = vadd.f32 0.0, %v2097
        %2099 = vdwg.mxu0
        %v2100 = vpack.c.bf16 %v2073, %v2071
        %v2101 = vpack.c.bf16 %v2078, %v2076
        %v2102 = vpack.c.bf16 %v2083, %v2081
        %v2103 = vpack.c.bf16 %v2088, %v2086
        %v2104 = vpack.c.bf16 %v2093, %v2091
        %v2105 = vpack.c.bf16 %v2098, %v2096
        %2106 = vmatpush.bf16.msra.mxu0 0
        %2107 = vmatpush.bf16.msra.mxu0 0
        %2108 = vmatpush.bf16.msra.mxu0 %v2105
        %2109 = vmatpush.bf16.msra.mxu0 %v2104
        %2110 = vmatpush.bf16.msra.mxu0 %v2103
        %2111 = vmatpush.bf16.msra.mxu0 %v2102
        %2112 = vmatpush.bf16.msra.mxu0 %v2101
        %2113 = vmatpush.bf16.msra.mxu0 %v2100
        %2114 = vmatmul.bf16.gmra.mxu0 %v767
        %v2115 = vpop.f32.mrf.mxu0
        %v2116 = vadd.f32 0.0, %v2115
        %v2117 = vpop.f32.mrf.mxu0
        %v2118 = vadd.f32 0.0, %v2117
        %2119 = vmatmul.bf16.gmra.mxu0 %v770
        %v2120 = vpop.f32.mrf.mxu0
        %v2121 = vadd.f32 0.0, %v2120
        %v2122 = vpop.f32.mrf.mxu0
        %v2123 = vadd.f32 0.0, %v2122
        %2124 = vmatmul.bf16.gmra.mxu0 %v773
        %v2125 = vpop.f32.mrf.mxu0
        %v2126 = vadd.f32 0.0, %v2125
        %v2127 = vpop.f32.mrf.mxu0
        %v2128 = vadd.f32 0.0, %v2127
        %2129 = vmatmul.bf16.gmra.mxu0 %v776
        %v2130 = vpop.f32.mrf.mxu0
        %v2131 = vadd.f32 0.0, %v2130
        %v2132 = vpop.f32.mrf.mxu0
        %v2133 = vadd.f32 0.0, %v2132
        %2134 = vmatmul.bf16.gmra.mxu0 %v779
        %v2135 = vpop.f32.mrf.mxu0
        %v2136 = vadd.f32 0.0, %v2135
        %v2137 = vpop.f32.mrf.mxu0
        %v2138 = vadd.f32 0.0, %v2137
        %2139 = vmatmul.bf16.gmra.mxu0 %v782
        %v2140 = vpop.f32.mrf.mxu0
        %v2141 = vadd.f32 0.0, %v2140
        %v2142 = vpop.f32.mrf.mxu0
        %v2143 = vadd.f32 0.0, %v2142
        %2144 = vdwg.mxu0
        %v2145 = vpack.c.bf16 %v2116, %v2116
        %v2146 = vpack.c.bf16 %v2118, %v2118
        %v2147 = vpack.c.bf16 %v2121, %v2121
        %v2148 = vpack.c.bf16 %v2123, %v2123
        %v2149 = vpack.c.bf16 %v2126, %v2126
        %v2150 = vpack.c.bf16 %v2128, %v2128
        %v2151 = vpack.c.bf16 %v2131, %v2131
        %v2152 = vpack.c.bf16 %v2133, %v2133
        %v2153 = vpack.c.bf16 %v2136, %v2136
        %v2154 = vpack.c.bf16 %v2138, %v2138
        %v2155 = vpack.c.bf16 %v2141, %v2141
        %v2156 = vpack.c.bf16 %v2143, %v2143
        %v2157 = vunpack.c.l.bf16 %v2145
        %v2158 = vunpack.c.l.bf16 %v2146
        %v2159 = vunpack.c.l.bf16 %v2147
        %v2160 = vunpack.c.l.bf16 %v2148
        %v2161 = vunpack.c.l.bf16 %v2149
        %v2162 = vunpack.c.l.bf16 %v2150
        %v2163 = vunpack.c.l.bf16 %v2151
        %v2164 = vunpack.c.l.bf16 %v2152
        %v2165 = vunpack.c.l.bf16 %v2153
        %v2166 = vunpack.c.l.bf16 %v2154
        %v2167 = vunpack.c.l.bf16 %v2155
        %v2168 = vunpack.c.l.bf16 %v2156
        %v2169 = vmul.f32 %v2157, %v847
        %v2170 = vmul.f32 %v2158, %v848
        %v2171 = vmul.f32 %v2159, %v849
        %v2172 = vmul.f32 %v2160, %v850
        %v2173 = vmul.f32 %v2161, %v851
        %v2174 = vmul.f32 %v2162, %v852
        %v2175 = vmul.f32 %v2163, %v853
        %v2176 = vmul.f32 %v2164, %v854
        %v2177 = vmul.f32 %v2165, %v855
        %v2178 = vmul.f32 %v2166, %v856
        %v2179 = vmul.f32 %v2167, %v857
        %v2180 = vmul.f32 %v2168, %v858
        %v2181 = vpack.c.bf16 %v2169, %v2169
        %v2182 = vpack.c.bf16 %v2170, %v2170
        %v2183 = vpack.c.bf16 %v2171, %v2171
        %v2184 = vpack.c.bf16 %v2172, %v2172
        %v2185 = vpack.c.bf16 %v2173, %v2173
        %v2186 = vpack.c.bf16 %v2174, %v2174
        %v2187 = vpack.c.bf16 %v2175, %v2175
        %v2188 = vpack.c.bf16 %v2176, %v2176
        %v2189 = vpack.c.bf16 %v2177, %v2177
        %v2190 = vpack.c.bf16 %v2178, %v2178
        %v2191 = vpack.c.bf16 %v2179, %v2179
        %v2192 = vpack.c.bf16 %v2180, %v2180
        %v2193 = vmul.f32 %v2157, %v883
        %v2194 = vmul.f32 %v2158, %v884
        %v2195 = vmul.f32 %v2159, %v885
        %v2196 = vmul.f32 %v2160, %v886
        %v2197 = vmul.f32 %v2161, %v887
        %v2198 = vmul.f32 %v2162, %v888
        %v2199 = vmul.f32 %v2163, %v889
        %v2200 = vmul.f32 %v2164, %v890
        %v2201 = vmul.f32 %v2165, %v891
        %v2202 = vmul.f32 %v2166, %v892
        %v2203 = vmul.f32 %v2167, %v893
        %v2204 = vmul.f32 %v2168, %v894
        %v2205 = vpack.c.bf16 %v2193, %v2193
        %v2206 = vpack.c.bf16 %v2194, %v2194
        %v2207 = vpack.c.bf16 %v2195, %v2195
        %v2208 = vpack.c.bf16 %v2196, %v2196
        %v2209 = vpack.c.bf16 %v2197, %v2197
        %v2210 = vpack.c.bf16 %v2198, %v2198
        %v2211 = vpack.c.bf16 %v2199, %v2199
        %v2212 = vpack.c.bf16 %v2200, %v2200
        %v2213 = vpack.c.bf16 %v2201, %v2201
        %v2214 = vpack.c.bf16 %v2202, %v2202
        %v2215 = vpack.c.bf16 %v2203, %v2203
        %v2216 = vpack.c.bf16 %v2204, %v2204
        %v2229 = vunpack.c.l.b16 %v2181
        %v2230 = vunpack.c.l.b16 %v2182
        %v2231 = vunpack.c.l.b16 %v2183
        %v2232 = vunpack.c.l.b16 %v2184
        %v2233 = vunpack.c.l.b16 %v2185
        %v2234 = vunpack.c.l.b16 %v2186
        %v2235 = vunpack.c.l.b16 %v2187
        %v2236 = vunpack.c.l.b16 %v2188
        %v2237 = vunpack.c.l.b16 %v2189
        %v2238 = vunpack.c.l.b16 %v2190
        %v2239 = vunpack.c.l.b16 %v2191
        %v2240 = vunpack.c.l.b16 %v2192
        %v2241 = vpack.c.b16 %v2230, %v2229
        %v2242 = vpack.c.b16 %v2232, %v2231
        %v2243 = vpack.c.b16 %v2234, %v2233
        %v2244 = vpack.c.b16 %v2236, %v2235
        %v2245 = vpack.c.b16 %v2238, %v2237
        %v2246 = vpack.c.b16 %v2240, %v2239
        %v2265 = vunpack.c.l.b16 %v2205
        %v2266 = vunpack.c.l.b16 %v2206
        %v2267 = vunpack.c.l.b16 %v2207
        %v2268 = vunpack.c.l.b16 %v2208
        %v2269 = vunpack.c.l.b16 %v2209
        %v2270 = vunpack.c.l.b16 %v2210
        %v2271 = vunpack.c.l.b16 %v2211
        %v2272 = vunpack.c.l.b16 %v2212
        %v2273 = vunpack.c.l.b16 %v2213
        %v2274 = vunpack.c.l.b16 %v2214
        %v2275 = vunpack.c.l.b16 %v2215
        %v2276 = vunpack.c.l.b16 %v2216
        %v2277 = vpack.c.b16 %v2266, %v2265
        %v2278 = vpack.c.b16 %v2268, %v2267
        %v2279 = vpack.c.b16 %v2270, %v2269
        %v2280 = vpack.c.b16 %v2272, %v2271
        %v2281 = vpack.c.b16 %v2274, %v2273
        %v2282 = vpack.c.b16 %v2276, %v2275
        %s2289 = scalar_lea.vmem [#allocation8], 256
        %v2290 = vld [vmem:[%s2289] sm:$0xf]
        %v2291 = vld [vmem:[%s2289 + $0x4] sm:$0xf]
        %v2292 = vld [vmem:[%s2289 + $0x8] sm:$0xf]
        %v2293 = vld [vmem:[%s2289 + $0xc] sm:$0xf]
        %v2294 = vld [vmem:[%s2289 + $0x10] sm:$0xf]
        %v2295 = vld [vmem:[%s2289 + $0x14] sm:$0xf]
        %v2296 = vld [vmem:[%s2289 + $0x18] sm:$0xf]
        %v2297 = vld [vmem:[%s2289 + $0x1c] sm:$0xf]
        %v2298 = vld [vmem:[%s2289 + $0x20] sm:$0xf]
        %v2299 = vld [vmem:[%s2289 + $0x24] sm:$0xf]
        %v2300 = vld [vmem:[%s2289 + $0x28] sm:$0xf]
        %v2301 = vld [vmem:[%s2289 + $0x2c] sm:$0xf]
        %v2302 = vld [vmem:[%s2289 + $0x30] sm:$0xf]
        %v2303 = vld [vmem:[%s2289 + $0x34] sm:$0xf]
        %v2304 = vld [vmem:[%s2289 + $0x38] sm:$0xf]
        %v2305 = vld [vmem:[%s2289 + $0x3c] sm:$0xf]
        %v2306 = vld [vmem:[%s2289 + $0x40] sm:$0xf]
        %v2307 = vld [vmem:[%s2289 + $0x44] sm:$0xf]
        %v2308 = vld [vmem:[%s2289 + $0x48] sm:$0xf]
        %v2309 = vld [vmem:[%s2289 + $0x4c] sm:$0xf]
        %v2310 = vld [vmem:[%s2289 + $0x50] sm:$0xf]
        %v2311 = vld [vmem:[%s2289 + $0x54] sm:$0xf]
        %v2312 = vld [vmem:[%s2289 + $0x58] sm:$0xf]
        %v2313 = vld [vmem:[%s2289 + $0x5c] sm:$0xf]
        %v2314 = vld [vmem:[%s2289 + $0x60] sm:$0xf]
        %v2315 = vld [vmem:[%s2289 + $0x64] sm:$0xf]
        %v2316 = vld [vmem:[%s2289 + $0x68] sm:$0xf]
        %v2317 = vld [vmem:[%s2289 + $0x6c] sm:$0xf]
        %v2318 = vld [vmem:[%s2289 + $0x70] sm:$0xf]
        %v2319 = vld [vmem:[%s2289 + $0x74] sm:$0xf]
        %v2320 = vld [vmem:[%s2289 + $0x78] sm:$0xf]
        %v2321 = vld [vmem:[%s2289 + $0x7c] sm:$0xf]
        %s2322 = scalar_lea.vmem [#allocation9], 4
        %v2323 = vld [vmem:[%s2322] sm:$0x3]
        %v2324 = vperm.slane %v2323, 0
        %v2325 = vperm.slane %v2323, 1
        %v2326 = vsel %vm1036, %v2324, %v2325
        %v2327 = vsel %vm1037, %v2324, %v2325
        %v2328 = vsel %vm1038, %v2324, %v2325
        %v2329 = vsel %vm1039, %v2324, %v2325
        %v2330 = vsel %vm1040, %v2324, %v2325
        %v2331 = vsel %vm1041, %v2324, %v2325
        %v2332 = vsel %vm1042, %v2324, %v2325
        %v2333 = vsel %vm1043, %v2324, %v2325
        %v2334 = vsel %vm1044, %v2324, %v2325
        %v2335 = vsel %vm1045, %v2324, %v2325
        %v2336 = vsel %vm1046, %v2324, %v2325
        %v2337 = vsel %vm1047, %v2324, %v2325
        %v2370 = vunpack.c.l.b16 %v2290
        %v2371 = vunpack.c.l.b16 %v2291
        %v2372 = vunpack.c.l.b16 %v2292
        %v2373 = vunpack.c.l.b16 %v2293
        %v2374 = vunpack.c.l.b16 %v2294
        %v2375 = vunpack.c.l.b16 %v2295
        %v2376 = vunpack.c.l.b16 %v2296
        %v2377 = vunpack.c.l.b16 %v2297
        %v2378 = vunpack.c.l.b16 %v2298
        %v2379 = vunpack.c.l.b16 %v2299
        %v2380 = vunpack.c.l.b16 %v2300
        %v2381 = vunpack.c.l.b16 %v2301
        %v2382 = vunpack.c.l.b16 %v2302
        %v2383 = vunpack.c.l.b16 %v2303
        %v2384 = vunpack.c.l.b16 %v2304
        %v2385 = vunpack.c.l.b16 %v2305
        %v2386 = vunpack.c.l.b16 %v2306
        %v2387 = vunpack.c.l.b16 %v2307
        %v2388 = vunpack.c.l.b16 %v2308
        %v2389 = vunpack.c.l.b16 %v2309
        %v2390 = vunpack.c.l.b16 %v2310
        %v2391 = vunpack.c.l.b16 %v2311
        %v2392 = vunpack.c.l.b16 %v2312
        %v2393 = vunpack.c.l.b16 %v2313
        %v2394 = vunpack.c.l.b16 %v2314
        %v2395 = vunpack.c.l.b16 %v2315
        %v2396 = vunpack.c.l.b16 %v2316
        %v2397 = vunpack.c.l.b16 %v2317
        %v2398 = vunpack.c.l.b16 %v2318
        %v2399 = vunpack.c.l.b16 %v2319
        %v2400 = vunpack.c.l.b16 %v2320
        %v2401 = vunpack.c.l.b16 %v2321
        %v2402 = vpack.c.b16 %v2371, %v2370
        %v2403 = vpack.c.b16 %v2373, %v2372
        %v2404 = vpack.c.b16 %v2375, %v2374
        %v2405 = vpack.c.b16 %v2377, %v2376
        %v2406 = vpack.c.b16 %v2379, %v2378
        %v2407 = vpack.c.b16 %v2381, %v2380
        %v2408 = vpack.c.b16 %v2383, %v2382
        %v2409 = vpack.c.b16 %v2385, %v2384
        %v2410 = vpack.c.b16 %v2387, %v2386
        %v2411 = vpack.c.b16 %v2389, %v2388
        %v2412 = vpack.c.b16 %v2391, %v2390
        %v2413 = vpack.c.b16 %v2393, %v2392
        %v2414 = vpack.c.b16 %v2395, %v2394
        %v2415 = vpack.c.b16 %v2397, %v2396
        %v2416 = vpack.c.b16 %v2399, %v2398
        %v2417 = vpack.c.b16 %v2401, %v2400
        %2434 = vmatpush.bf16.msra.mxu0 %v2409
        %2435 = vmatpush.bf16.msra.mxu0 %v2408
        %2436 = vmatpush.bf16.msra.mxu0 %v2407
        %2437 = vmatpush.bf16.msra.mxu0 %v2406
        %2438 = vmatpush.bf16.msra.mxu0 %v2405
        %2439 = vmatpush.bf16.msra.mxu0 %v2404
        %2440 = vmatpush.bf16.msra.mxu0 %v2403
        %2441 = vmatpush.bf16.msra.mxu0 %v2402
        %2442 = vmatmul.bf16.gmra.mxu0 %v2241
        %v2443 = vpop.f32.mrf.mxu0
        %v2444 = vadd.f32 %v2326, %v2443
        %v2445 = vpop.f32.mrf.mxu0
        %v2446 = vadd.f32 %v2327, %v2445
        %2447 = vmatmul.bf16.gmra.mxu0 %v2242
        %v2448 = vpop.f32.mrf.mxu0
        %v2449 = vadd.f32 %v2328, %v2448
        %v2450 = vpop.f32.mrf.mxu0
        %v2451 = vadd.f32 %v2329, %v2450
        %2452 = vmatmul.bf16.gmra.mxu0 %v2243
        %v2453 = vpop.f32.mrf.mxu0
        %v2454 = vadd.f32 %v2330, %v2453
        %v2455 = vpop.f32.mrf.mxu0
        %v2456 = vadd.f32 %v2331, %v2455
        %2457 = vmatmul.bf16.gmra.mxu0 %v2244
        %v2458 = vpop.f32.mrf.mxu0
        %v2459 = vadd.f32 %v2332, %v2458
        %v2460 = vpop.f32.mrf.mxu0
        %v2461 = vadd.f32 %v2333, %v2460
        %2462 = vmatmul.bf16.gmra.mxu0 %v2245
        %v2463 = vpop.f32.mrf.mxu0
        %v2464 = vadd.f32 %v2334, %v2463
        %v2465 = vpop.f32.mrf.mxu0
        %v2466 = vadd.f32 %v2335, %v2465
        %2467 = vmatmul.bf16.gmra.mxu0 %v2246
        %v2468 = vpop.f32.mrf.mxu0
        %v2469 = vadd.f32 %v2336, %v2468
        %v2470 = vpop.f32.mrf.mxu0
        %v2471 = vadd.f32 %v2337, %v2470
        %2472 = vdwg.mxu0
        %2473 = vmatpush.bf16.msra.mxu0 %v2417
        %2474 = vmatpush.bf16.msra.mxu0 %v2416
        %2475 = vmatpush.bf16.msra.mxu0 %v2415
        %2476 = vmatpush.bf16.msra.mxu0 %v2414
        %2477 = vmatpush.bf16.msra.mxu0 %v2413
        %2478 = vmatpush.bf16.msra.mxu0 %v2412
        %2479 = vmatpush.bf16.msra.mxu0 %v2411
        %2480 = vmatpush.bf16.msra.mxu0 %v2410
        %2481 = vmatmul.bf16.gmra.mxu0 %v2277
        %v2482 = vpop.f32.mrf.mxu0
        %v2483 = vadd.f32 %v2444, %v2482
        %v2484 = vpop.f32.mrf.mxu0
        %v2485 = vadd.f32 %v2446, %v2484
        %2486 = vmatmul.bf16.gmra.mxu0 %v2278
        %v2487 = vpop.f32.mrf.mxu0
        %v2488 = vadd.f32 %v2449, %v2487
        %v2489 = vpop.f32.mrf.mxu0
        %v2490 = vadd.f32 %v2451, %v2489
        %2491 = vmatmul.bf16.gmra.mxu0 %v2279
        %v2492 = vpop.f32.mrf.mxu0
        %v2493 = vadd.f32 %v2454, %v2492
        %v2494 = vpop.f32.mrf.mxu0
        %v2495 = vadd.f32 %v2456, %v2494
        %2496 = vmatmul.bf16.gmra.mxu0 %v2280
        %v2497 = vpop.f32.mrf.mxu0
        %v2498 = vadd.f32 %v2459, %v2497
        %v2499 = vpop.f32.mrf.mxu0
        %v2500 = vadd.f32 %v2461, %v2499
        %2501 = vmatmul.bf16.gmra.mxu0 %v2281
        %v2502 = vpop.f32.mrf.mxu0
        %v2503 = vadd.f32 %v2464, %v2502
        %v2504 = vpop.f32.mrf.mxu0
        %v2505 = vadd.f32 %v2466, %v2504
        %2506 = vmatmul.bf16.gmra.mxu0 %v2282
        %v2507 = vpop.f32.mrf.mxu0
        %v2508 = vadd.f32 %v2469, %v2507
        %v2509 = vpop.f32.mrf.mxu0
        %v2510 = vadd.f32 %v2471, %v2509
        %2511 = vdwg.mxu0
        %v2512 = vmax.f32 %v2483, 0.0
        %v2513 = vmax.f32 %v2485, 0.0
        %v2514 = vmax.f32 %v2488, 0.0
        %v2515 = vmax.f32 %v2490, 0.0
        %v2516 = vmax.f32 %v2493, 0.0
        %v2517 = vmax.f32 %v2495, 0.0
        %v2518 = vmax.f32 %v2498, 0.0
        %v2519 = vmax.f32 %v2500, 0.0
        %v2520 = vmax.f32 %v2503, 0.0
        %v2521 = vmax.f32 %v2505, 0.0
        %v2522 = vmax.f32 %v2508, 0.0
        %v2523 = vmax.f32 %v2510, 0.0
        %v2524 = vpack.c.bf16 %v2513, %v2512
        %v2525 = vpack.c.bf16 %v2515, %v2514
        %v2526 = vpack.c.bf16 %v2517, %v2516
        %v2527 = vpack.c.bf16 %v2519, %v2518
        %v2528 = vpack.c.bf16 %v2521, %v2520
        %v2529 = vpack.c.bf16 %v2523, %v2522
        %2530 = vmatpush.bf16.msra.mxu0 0
        %2531 = vmatpush.bf16.msra.mxu0 0
        %2532 = vmatpush.bf16.msra.mxu0 %v2529
        %2533 = vmatpush.bf16.msra.mxu0 %v2528
        %2534 = vmatpush.bf16.msra.mxu0 %v2527
        %2535 = vmatpush.bf16.msra.mxu0 %v2526
        %2536 = vmatpush.bf16.msra.mxu0 %v2525
        %2537 = vmatpush.bf16.msra.mxu0 %v2524
        %2538 = vmatmul.bf16.gmra.mxu0 %v767
        %v2539 = vpop.f32.mrf.mxu0
        %v2540 = vadd.f32 0.0, %v2539
        %v2541 = vpop.f32.mrf.mxu0
        %v2542 = vadd.f32 0.0, %v2541
        %2543 = vmatmul.bf16.gmra.mxu0 %v770
        %v2544 = vpop.f32.mrf.mxu0
        %v2545 = vadd.f32 0.0, %v2544
        %v2546 = vpop.f32.mrf.mxu0
        %v2547 = vadd.f32 0.0, %v2546
        %2548 = vmatmul.bf16.gmra.mxu0 %v773
        %v2549 = vpop.f32.mrf.mxu0
        %v2550 = vadd.f32 0.0, %v2549
        %v2551 = vpop.f32.mrf.mxu0
        %v2552 = vadd.f32 0.0, %v2551
        %2553 = vmatmul.bf16.gmra.mxu0 %v776
        %v2554 = vpop.f32.mrf.mxu0
        %v2555 = vadd.f32 0.0, %v2554
        %v2556 = vpop.f32.mrf.mxu0
        %v2557 = vadd.f32 0.0, %v2556
        %2558 = vmatmul.bf16.gmra.mxu0 %v779
        %v2559 = vpop.f32.mrf.mxu0
        %v2560 = vadd.f32 0.0, %v2559
        %v2561 = vpop.f32.mrf.mxu0
        %v2562 = vadd.f32 0.0, %v2561
        %2563 = vmatmul.bf16.gmra.mxu0 %v782
        %v2564 = vpop.f32.mrf.mxu0
        %v2565 = vadd.f32 0.0, %v2564
        %v2566 = vpop.f32.mrf.mxu0
        %v2567 = vadd.f32 0.0, %v2566
        %2568 = vdwg.mxu0
        %v2569 = vpack.c.bf16 %v2540, %v2540
        %v2570 = vpack.c.bf16 %v2542, %v2542
        %v2571 = vpack.c.bf16 %v2545, %v2545
        %v2572 = vpack.c.bf16 %v2547, %v2547
        %v2573 = vpack.c.bf16 %v2550, %v2550
        %v2574 = vpack.c.bf16 %v2552, %v2552
        %v2575 = vpack.c.bf16 %v2555, %v2555
        %v2576 = vpack.c.bf16 %v2557, %v2557
        %v2577 = vpack.c.bf16 %v2560, %v2560
        %v2578 = vpack.c.bf16 %v2562, %v2562
        %v2579 = vpack.c.bf16 %v2565, %v2565
        %v2580 = vpack.c.bf16 %v2567, %v2567
        %v2581 = vunpack.c.l.bf16 %v2569
        %v2582 = vunpack.c.l.bf16 %v2570
        %v2583 = vunpack.c.l.bf16 %v2571
        %v2584 = vunpack.c.l.bf16 %v2572
        %v2585 = vunpack.c.l.bf16 %v2573
        %v2586 = vunpack.c.l.bf16 %v2574
        %v2587 = vunpack.c.l.bf16 %v2575
        %v2588 = vunpack.c.l.bf16 %v2576
        %v2589 = vunpack.c.l.bf16 %v2577
        %v2590 = vunpack.c.l.bf16 %v2578
        %v2591 = vunpack.c.l.bf16 %v2579
        %v2592 = vunpack.c.l.bf16 %v2580
        %v2593 = vmul.f32 %v2581, %v847
        %v2594 = vmul.f32 %v2582, %v848
        %v2595 = vmul.f32 %v2583, %v849
        %v2596 = vmul.f32 %v2584, %v850
        %v2597 = vmul.f32 %v2585, %v851
        %v2598 = vmul.f32 %v2586, %v852
        %v2599 = vmul.f32 %v2587, %v853
        %v2600 = vmul.f32 %v2588, %v854
        %v2601 = vmul.f32 %v2589, %v855
        %v2602 = vmul.f32 %v2590, %v856
        %v2603 = vmul.f32 %v2591, %v857
        %v2604 = vmul.f32 %v2592, %v858
        %v2605 = vpack.c.bf16 %v2593, %v2593
        %v2606 = vpack.c.bf16 %v2594, %v2594
        %v2607 = vpack.c.bf16 %v2595, %v2595
        %v2608 = vpack.c.bf16 %v2596, %v2596
        %v2609 = vpack.c.bf16 %v2597, %v2597
        %v2610 = vpack.c.bf16 %v2598, %v2598
        %v2611 = vpack.c.bf16 %v2599, %v2599
        %v2612 = vpack.c.bf16 %v2600, %v2600
        %v2613 = vpack.c.bf16 %v2601, %v2601
        %v2614 = vpack.c.bf16 %v2602, %v2602
        %v2615 = vpack.c.bf16 %v2603, %v2603
        %v2616 = vpack.c.bf16 %v2604, %v2604
        %v2617 = vmul.f32 %v2581, %v883
        %v2618 = vmul.f32 %v2582, %v884
        %v2619 = vmul.f32 %v2583, %v885
        %v2620 = vmul.f32 %v2584, %v886
        %v2621 = vmul.f32 %v2585, %v887
        %v2622 = vmul.f32 %v2586, %v888
        %v2623 = vmul.f32 %v2587, %v889
        %v2624 = vmul.f32 %v2588, %v890
        %v2625 = vmul.f32 %v2589, %v891
        %v2626 = vmul.f32 %v2590, %v892
        %v2627 = vmul.f32 %v2591, %v893
        %v2628 = vmul.f32 %v2592, %v894
        %v2629 = vpack.c.bf16 %v2617, %v2617
        %v2630 = vpack.c.bf16 %v2618, %v2618
        %v2631 = vpack.c.bf16 %v2619, %v2619
        %v2632 = vpack.c.bf16 %v2620, %v2620
        %v2633 = vpack.c.bf16 %v2621, %v2621
        %v2634 = vpack.c.bf16 %v2622, %v2622
        %v2635 = vpack.c.bf16 %v2623, %v2623
        %v2636 = vpack.c.bf16 %v2624, %v2624
        %v2637 = vpack.c.bf16 %v2625, %v2625
        %v2638 = vpack.c.bf16 %v2626, %v2626
        %v2639 = vpack.c.bf16 %v2627, %v2627
        %v2640 = vpack.c.bf16 %v2628, %v2628
        %v2653 = vunpack.c.l.b16 %v2605
        %v2654 = vunpack.c.l.b16 %v2606
        %v2655 = vunpack.c.l.b16 %v2607
        %v2656 = vunpack.c.l.b16 %v2608
        %v2657 = vunpack.c.l.b16 %v2609
        %v2658 = vunpack.c.l.b16 %v2610
        %v2659 = vunpack.c.l.b16 %v2611
        %v2660 = vunpack.c.l.b16 %v2612
        %v2661 = vunpack.c.l.b16 %v2613
        %v2662 = vunpack.c.l.b16 %v2614
        %v2663 = vunpack.c.l.b16 %v2615
        %v2664 = vunpack.c.l.b16 %v2616
        %v2665 = vpack.c.b16 %v2654, %v2653
        %v2666 = vpack.c.b16 %v2656, %v2655
        %v2667 = vpack.c.b16 %v2658, %v2657
        %v2668 = vpack.c.b16 %v2660, %v2659
        %v2669 = vpack.c.b16 %v2662, %v2661
        %v2670 = vpack.c.b16 %v2664, %v2663
        %v2689 = vunpack.c.l.b16 %v2629
        %v2690 = vunpack.c.l.b16 %v2630
        %v2691 = vunpack.c.l.b16 %v2631
        %v2692 = vunpack.c.l.b16 %v2632
        %v2693 = vunpack.c.l.b16 %v2633
        %v2694 = vunpack.c.l.b16 %v2634
        %v2695 = vunpack.c.l.b16 %v2635
        %v2696 = vunpack.c.l.b16 %v2636
        %v2697 = vunpack.c.l.b16 %v2637
        %v2698 = vunpack.c.l.b16 %v2638
        %v2699 = vunpack.c.l.b16 %v2639
        %v2700 = vunpack.c.l.b16 %v2640
        %v2701 = vpack.c.b16 %v2690, %v2689
        %v2702 = vpack.c.b16 %v2692, %v2691
        %v2703 = vpack.c.b16 %v2694, %v2693
        %v2704 = vpack.c.b16 %v2696, %v2695
        %v2705 = vpack.c.b16 %v2698, %v2697
        %v2706 = vpack.c.b16 %v2700, %v2699
        %s2713 = scalar_lea.vmem [#allocation8], 384
        %v2714 = vld [vmem:[%s2713] sm:$0xf]
        %v2715 = vld [vmem:[%s2713 + $0x4] sm:$0xf]
        %v2716 = vld [vmem:[%s2713 + $0x8] sm:$0xf]
        %v2717 = vld [vmem:[%s2713 + $0xc] sm:$0xf]
        %v2718 = vld [vmem:[%s2713 + $0x10] sm:$0xf]
        %v2719 = vld [vmem:[%s2713 + $0x14] sm:$0xf]
        %v2720 = vld [vmem:[%s2713 + $0x18] sm:$0xf]
        %v2721 = vld [vmem:[%s2713 + $0x1c] sm:$0xf]
        %v2722 = vld [vmem:[%s2713 + $0x20] sm:$0xf]
        %v2723 = vld [vmem:[%s2713 + $0x24] sm:$0xf]
        %v2724 = vld [vmem:[%s2713 + $0x28] sm:$0xf]
        %v2725 = vld [vmem:[%s2713 + $0x2c] sm:$0xf]
        %v2726 = vld [vmem:[%s2713 + $0x30] sm:$0xf]
        %v2727 = vld [vmem:[%s2713 + $0x34] sm:$0xf]
        %v2728 = vld [vmem:[%s2713 + $0x38] sm:$0xf]
        %v2729 = vld [vmem:[%s2713 + $0x3c] sm:$0xf]
        %v2730 = vld [vmem:[%s2713 + $0x40] sm:$0xf]
        %v2731 = vld [vmem:[%s2713 + $0x44] sm:$0xf]
        %v2732 = vld [vmem:[%s2713 + $0x48] sm:$0xf]
        %v2733 = vld [vmem:[%s2713 + $0x4c] sm:$0xf]
        %v2734 = vld [vmem:[%s2713 + $0x50] sm:$0xf]
        %v2735 = vld [vmem:[%s2713 + $0x54] sm:$0xf]
        %v2736 = vld [vmem:[%s2713 + $0x58] sm:$0xf]
        %v2737 = vld [vmem:[%s2713 + $0x5c] sm:$0xf]
        %v2738 = vld [vmem:[%s2713 + $0x60] sm:$0xf]
        %v2739 = vld [vmem:[%s2713 + $0x64] sm:$0xf]
        %v2740 = vld [vmem:[%s2713 + $0x68] sm:$0xf]
        %v2741 = vld [vmem:[%s2713 + $0x6c] sm:$0xf]
        %v2742 = vld [vmem:[%s2713 + $0x70] sm:$0xf]
        %v2743 = vld [vmem:[%s2713 + $0x74] sm:$0xf]
        %v2744 = vld [vmem:[%s2713 + $0x78] sm:$0xf]
        %v2745 = vld [vmem:[%s2713 + $0x7c] sm:$0xf]
        %s2746 = scalar_lea.vmem [#allocation9], 6
        %v2747 = vld [vmem:[%s2746] sm:$0x3]
        %v2748 = vperm.slane %v2747, 0
        %v2749 = vperm.slane %v2747, 1
        %v2750 = vsel %vm1036, %v2748, %v2749
        %v2751 = vsel %vm1037, %v2748, %v2749
        %v2752 = vsel %vm1038, %v2748, %v2749
        %v2753 = vsel %vm1039, %v2748, %v2749
        %v2754 = vsel %vm1040, %v2748, %v2749
        %v2755 = vsel %vm1041, %v2748, %v2749
        %v2756 = vsel %vm1042, %v2748, %v2749
        %v2757 = vsel %vm1043, %v2748, %v2749
        %v2758 = vsel %vm1044, %v2748, %v2749
        %v2759 = vsel %vm1045, %v2748, %v2749
        %v2760 = vsel %vm1046, %v2748, %v2749
        %v2761 = vsel %vm1047, %v2748, %v2749
        %v2794 = vunpack.c.l.b16 %v2714
        %v2795 = vunpack.c.l.b16 %v2715
        %v2796 = vunpack.c.l.b16 %v2716
        %v2797 = vunpack.c.l.b16 %v2717
        %v2798 = vunpack.c.l.b16 %v2718
        %v2799 = vunpack.c.l.b16 %v2719
        %v2800 = vunpack.c.l.b16 %v2720
        %v2801 = vunpack.c.l.b16 %v2721
        %v2802 = vunpack.c.l.b16 %v2722
        %v2803 = vunpack.c.l.b16 %v2723
        %v2804 = vunpack.c.l.b16 %v2724
        %v2805 = vunpack.c.l.b16 %v2725
        %v2806 = vunpack.c.l.b16 %v2726
        %v2807 = vunpack.c.l.b16 %v2727
        %v2808 = vunpack.c.l.b16 %v2728
        %v2809 = vunpack.c.l.b16 %v2729
        %v2810 = vunpack.c.l.b16 %v2730
        %v2811 = vunpack.c.l.b16 %v2731
        %v2812 = vunpack.c.l.b16 %v2732
        %v2813 = vunpack.c.l.b16 %v2733
        %v2814 = vunpack.c.l.b16 %v2734
        %v2815 = vunpack.c.l.b16 %v2735
        %v2816 = vunpack.c.l.b16 %v2736
        %v2817 = vunpack.c.l.b16 %v2737
        %v2818 = vunpack.c.l.b16 %v2738
        %v2819 = vunpack.c.l.b16 %v2739
        %v2820 = vunpack.c.l.b16 %v2740
        %v2821 = vunpack.c.l.b16 %v2741
        %v2822 = vunpack.c.l.b16 %v2742
        %v2823 = vunpack.c.l.b16 %v2743
        %v2824 = vunpack.c.l.b16 %v2744
        %v2825 = vunpack.c.l.b16 %v2745
        %v2826 = vpack.c.b16 %v2795, %v2794
        %v2827 = vpack.c.b16 %v2797, %v2796
        %v2828 = vpack.c.b16 %v2799, %v2798
        %v2829 = vpack.c.b16 %v2801, %v2800
        %v2830 = vpack.c.b16 %v2803, %v2802
        %v2831 = vpack.c.b16 %v2805, %v2804
        %v2832 = vpack.c.b16 %v2807, %v2806
        %v2833 = vpack.c.b16 %v2809, %v2808
        %v2834 = vpack.c.b16 %v2811, %v2810
        %v2835 = vpack.c.b16 %v2813, %v2812
        %v2836 = vpack.c.b16 %v2815, %v2814
        %v2837 = vpack.c.b16 %v2817, %v2816
        %v2838 = vpack.c.b16 %v2819, %v2818
        %v2839 = vpack.c.b16 %v2821, %v2820
        %v2840 = vpack.c.b16 %v2823, %v2822
        %v2841 = vpack.c.b16 %v2825, %v2824
        %2858 = vmatpush.bf16.msra.mxu0 %v2833
        %2859 = vmatpush.bf16.msra.mxu0 %v2832
        %2860 = vmatpush.bf16.msra.mxu0 %v2831
        %2861 = vmatpush.bf16.msra.mxu0 %v2830
        %2862 = vmatpush.bf16.msra.mxu0 %v2829
        %2863 = vmatpush.bf16.msra.mxu0 %v2828
        %2864 = vmatpush.bf16.msra.mxu0 %v2827
        %2865 = vmatpush.bf16.msra.mxu0 %v2826
        %2866 = vmatmul.bf16.gmra.mxu0 %v2665
        %v2867 = vpop.f32.mrf.mxu0
        %v2868 = vadd.f32 %v2750, %v2867
        %v2869 = vpop.f32.mrf.mxu0
        %v2870 = vadd.f32 %v2751, %v2869
        %2871 = vmatmul.bf16.gmra.mxu0 %v2666
        %v2872 = vpop.f32.mrf.mxu0
        %v2873 = vadd.f32 %v2752, %v2872
        %v2874 = vpop.f32.mrf.mxu0
        %v2875 = vadd.f32 %v2753, %v2874
        %2876 = vmatmul.bf16.gmra.mxu0 %v2667
        %v2877 = vpop.f32.mrf.mxu0
        %v2878 = vadd.f32 %v2754, %v2877
        %v2879 = vpop.f32.mrf.mxu0
        %v2880 = vadd.f32 %v2755, %v2879
        %2881 = vmatmul.bf16.gmra.mxu0 %v2668
        %v2882 = vpop.f32.mrf.mxu0
        %v2883 = vadd.f32 %v2756, %v2882
        %v2884 = vpop.f32.mrf.mxu0
        %v2885 = vadd.f32 %v2757, %v2884
        %2886 = vmatmul.bf16.gmra.mxu0 %v2669
        %v2887 = vpop.f32.mrf.mxu0
        %v2888 = vadd.f32 %v2758, %v2887
        %v2889 = vpop.f32.mrf.mxu0
        %v2890 = vadd.f32 %v2759, %v2889
        %2891 = vmatmul.bf16.gmra.mxu0 %v2670
        %v2892 = vpop.f32.mrf.mxu0
        %v2893 = vadd.f32 %v2760, %v2892
        %v2894 = vpop.f32.mrf.mxu0
        %v2895 = vadd.f32 %v2761, %v2894
        %2896 = vdwg.mxu0
        %2897 = vmatpush.bf16.msra.mxu0 %v2841
        %2898 = vmatpush.bf16.msra.mxu0 %v2840
        %2899 = vmatpush.bf16.msra.mxu0 %v2839
        %2900 = vmatpush.bf16.msra.mxu0 %v2838
        %2901 = vmatpush.bf16.msra.mxu0 %v2837
        %2902 = vmatpush.bf16.msra.mxu0 %v2836
        %2903 = vmatpush.bf16.msra.mxu0 %v2835
        %2904 = vmatpush.bf16.msra.mxu0 %v2834
        %2905 = vmatmul.bf16.gmra.mxu0 %v2701
        %v2906 = vpop.f32.mrf.mxu0
        %v2907 = vadd.f32 %v2868, %v2906
        %v2908 = vpop.f32.mrf.mxu0
        %v2909 = vadd.f32 %v2870, %v2908
        %2910 = vmatmul.bf16.gmra.mxu0 %v2702
        %v2911 = vpop.f32.mrf.mxu0
        %v2912 = vadd.f32 %v2873, %v2911
        %v2913 = vpop.f32.mrf.mxu0
        %v2914 = vadd.f32 %v2875, %v2913
        %2915 = vmatmul.bf16.gmra.mxu0 %v2703
        %v2916 = vpop.f32.mrf.mxu0
        %v2917 = vadd.f32 %v2878, %v2916
        %v2918 = vpop.f32.mrf.mxu0
        %v2919 = vadd.f32 %v2880, %v2918
        %2920 = vmatmul.bf16.gmra.mxu0 %v2704
        %v2921 = vpop.f32.mrf.mxu0
        %v2922 = vadd.f32 %v2883, %v2921
        %v2923 = vpop.f32.mrf.mxu0
        %v2924 = vadd.f32 %v2885, %v2923
        %2925 = vmatmul.bf16.gmra.mxu0 %v2705
        %v2926 = vpop.f32.mrf.mxu0
        %v2927 = vadd.f32 %v2888, %v2926
        %v2928 = vpop.f32.mrf.mxu0
        %v2929 = vadd.f32 %v2890, %v2928
        %2930 = vmatmul.bf16.gmra.mxu0 %v2706
        %v2931 = vpop.f32.mrf.mxu0
        %v2932 = vadd.f32 %v2893, %v2931
        %v2933 = vpop.f32.mrf.mxu0
        %v2934 = vadd.f32 %v2895, %v2933
        %2935 = vdwg.mxu0
        %v2936 = vmax.f32 %v2907, 0.0
        %v2937 = vmax.f32 %v2909, 0.0
        %v2938 = vmax.f32 %v2912, 0.0
        %v2939 = vmax.f32 %v2914, 0.0
        %v2940 = vmax.f32 %v2917, 0.0
        %v2941 = vmax.f32 %v2919, 0.0
        %v2942 = vmax.f32 %v2922, 0.0
        %v2943 = vmax.f32 %v2924, 0.0
        %v2944 = vmax.f32 %v2927, 0.0
        %v2945 = vmax.f32 %v2929, 0.0
        %v2946 = vmax.f32 %v2932, 0.0
        %v2947 = vmax.f32 %v2934, 0.0
        %v2948 = vpack.c.bf16 %v2936, %v2936
        %v2949 = vpack.c.bf16 %v2937, %v2937
        %v2950 = vpack.c.bf16 %v2938, %v2938
        %v2951 = vpack.c.bf16 %v2939, %v2939
        %v2952 = vpack.c.bf16 %v2940, %v2940
        %v2953 = vpack.c.bf16 %v2941, %v2941
        %v2954 = vpack.c.bf16 %v2942, %v2942
        %v2955 = vpack.c.bf16 %v2943, %v2943
        %v2956 = vpack.c.bf16 %v2944, %v2944
        %v2957 = vpack.c.bf16 %v2945, %v2945
        %v2958 = vpack.c.bf16 %v2946, %v2946
        %v2959 = vpack.c.bf16 %v2947, %v2947
        %v2960 = vunpack.c.l.bf16 %v2948
        %v2961 = vunpack.c.l.bf16 %v2949
        %v2962 = vunpack.c.l.bf16 %v2950
        %v2963 = vunpack.c.l.bf16 %v2951
        %v2964 = vunpack.c.l.bf16 %v2952
        %v2965 = vunpack.c.l.bf16 %v2953
        %v2966 = vunpack.c.l.bf16 %v2954
        %v2967 = vunpack.c.l.bf16 %v2955
        %v2968 = vunpack.c.l.bf16 %v2956
        %v2969 = vunpack.c.l.bf16 %v2957
        %v2970 = vunpack.c.l.bf16 %v2958
        %v2971 = vunpack.c.l.bf16 %v2959
        %v2972 = vmul.f32 %v2960, %v847
        %v2973 = vmul.f32 %v2961, %v848
        %v2974 = vmul.f32 %v2962, %v849
        %v2975 = vmul.f32 %v2963, %v850
        %v2976 = vmul.f32 %v2964, %v851
        %v2977 = vmul.f32 %v2965, %v852
        %v2978 = vmul.f32 %v2966, %v853
        %v2979 = vmul.f32 %v2967, %v854
        %v2980 = vmul.f32 %v2968, %v855
        %v2981 = vmul.f32 %v2969, %v856
        %v2982 = vmul.f32 %v2970, %v857
        %v2983 = vmul.f32 %v2971, %v858
        %v2984 = vpack.c.bf16 %v2972, %v2972
        %v2985 = vpack.c.bf16 %v2973, %v2973
        %v2986 = vpack.c.bf16 %v2974, %v2974
        %v2987 = vpack.c.bf16 %v2975, %v2975
        %v2988 = vpack.c.bf16 %v2976, %v2976
        %v2989 = vpack.c.bf16 %v2977, %v2977
        %v2990 = vpack.c.bf16 %v2978, %v2978
        %v2991 = vpack.c.bf16 %v2979, %v2979
        %v2992 = vpack.c.bf16 %v2980, %v2980
        %v2993 = vpack.c.bf16 %v2981, %v2981
        %v2994 = vpack.c.bf16 %v2982, %v2982
        %v2995 = vpack.c.bf16 %v2983, %v2983
        %v2996 = vmul.f32 %v2960, %v883
        %v2997 = vmul.f32 %v2961, %v884
        %v2998 = vmul.f32 %v2962, %v885
        %v2999 = vmul.f32 %v2963, %v886
        %v3000 = vmul.f32 %v2964, %v887
        %v3001 = vmul.f32 %v2965, %v888
        %v3002 = vmul.f32 %v2966, %v889
        %v3003 = vmul.f32 %v2967, %v890
        %v3004 = vmul.f32 %v2968, %v891
        %v3005 = vmul.f32 %v2969, %v892
        %v3006 = vmul.f32 %v2970, %v893
        %v3007 = vmul.f32 %v2971, %v894
        %v3008 = vpack.c.bf16 %v2996, %v2996
        %v3009 = vpack.c.bf16 %v2997, %v2997
        %v3010 = vpack.c.bf16 %v2998, %v2998
        %v3011 = vpack.c.bf16 %v2999, %v2999
        %v3012 = vpack.c.bf16 %v3000, %v3000
        %v3013 = vpack.c.bf16 %v3001, %v3001
        %v3014 = vpack.c.bf16 %v3002, %v3002
        %v3015 = vpack.c.bf16 %v3003, %v3003
        %v3016 = vpack.c.bf16 %v3004, %v3004
        %v3017 = vpack.c.bf16 %v3005, %v3005
        %v3018 = vpack.c.bf16 %v3006, %v3006
        %v3019 = vpack.c.bf16 %v3007, %v3007
        %v3032 = vunpack.c.l.b16 %v2984
        %v3033 = vunpack.c.l.b16 %v2985
        %v3034 = vunpack.c.l.b16 %v2986
        %v3035 = vunpack.c.l.b16 %v2987
        %v3036 = vunpack.c.l.b16 %v2988
        %v3037 = vunpack.c.l.b16 %v2989
        %v3038 = vunpack.c.l.b16 %v2990
        %v3039 = vunpack.c.l.b16 %v2991
        %v3040 = vunpack.c.l.b16 %v2992
        %v3041 = vunpack.c.l.b16 %v2993
        %v3042 = vunpack.c.l.b16 %v2994
        %v3043 = vunpack.c.l.b16 %v2995
        %v3044 = vpack.c.b16 %v3033, %v3032
        %v3045 = vpack.c.b16 %v3035, %v3034
        %v3046 = vpack.c.b16 %v3037, %v3036
        %v3047 = vpack.c.b16 %v3039, %v3038
        %v3048 = vpack.c.b16 %v3041, %v3040
        %v3049 = vpack.c.b16 %v3043, %v3042
        %v3068 = vunpack.c.l.b16 %v3008
        %v3069 = vunpack.c.l.b16 %v3009
        %v3070 = vunpack.c.l.b16 %v3010
        %v3071 = vunpack.c.l.b16 %v3011
        %v3072 = vunpack.c.l.b16 %v3012
        %v3073 = vunpack.c.l.b16 %v3013
        %v3074 = vunpack.c.l.b16 %v3014
        %v3075 = vunpack.c.l.b16 %v3015
        %v3076 = vunpack.c.l.b16 %v3016
        %v3077 = vunpack.c.l.b16 %v3017
        %v3078 = vunpack.c.l.b16 %v3018
        %v3079 = vunpack.c.l.b16 %v3019
        %v3080 = vpack.c.b16 %v3069, %v3068
        %v3081 = vpack.c.b16 %v3071, %v3070
        %v3082 = vpack.c.b16 %v3073, %v3072
        %v3083 = vpack.c.b16 %v3075, %v3074
        %v3084 = vpack.c.b16 %v3077, %v3076
        %v3085 = vpack.c.b16 %v3079, %v3078
        %s3092 = scalar_lea.vmem [#allocation11], 128
        %v3093 = vld [vmem:[%s3092] sm:$0xf]
        %v3094 = vld [vmem:[%s3092 + $0x4] sm:$0xf]
        %v3095 = vld [vmem:[%s3092 + $0x8] sm:$0xf]
        %v3096 = vld [vmem:[%s3092 + $0xc] sm:$0xf]
        %v3097 = vld [vmem:[%s3092 + $0x10] sm:$0xf]
        %v3098 = vld [vmem:[%s3092 + $0x14] sm:$0xf]
        %v3099 = vld [vmem:[%s3092 + $0x18] sm:$0xf]
        %v3100 = vld [vmem:[%s3092 + $0x1c] sm:$0xf]
        %v3101 = vld [vmem:[%s3092 + $0x20] sm:$0xf]
        %v3102 = vld [vmem:[%s3092 + $0x24] sm:$0xf]
        %v3103 = vld [vmem:[%s3092 + $0x28] sm:$0xf]
        %v3104 = vld [vmem:[%s3092 + $0x2c] sm:$0xf]
        %v3105 = vld [vmem:[%s3092 + $0x30] sm:$0xf]
        %v3106 = vld [vmem:[%s3092 + $0x34] sm:$0xf]
        %v3107 = vld [vmem:[%s3092 + $0x38] sm:$0xf]
        %v3108 = vld [vmem:[%s3092 + $0x3c] sm:$0xf]
        %v3109 = vld [vmem:[%s3092 + $0x40] sm:$0xf]
        %v3110 = vld [vmem:[%s3092 + $0x44] sm:$0xf]
        %v3111 = vld [vmem:[%s3092 + $0x48] sm:$0xf]
        %v3112 = vld [vmem:[%s3092 + $0x4c] sm:$0xf]
        %v3113 = vld [vmem:[%s3092 + $0x50] sm:$0xf]
        %v3114 = vld [vmem:[%s3092 + $0x54] sm:$0xf]
        %v3115 = vld [vmem:[%s3092 + $0x58] sm:$0xf]
        %v3116 = vld [vmem:[%s3092 + $0x5c] sm:$0xf]
        %v3117 = vld [vmem:[%s3092 + $0x60] sm:$0xf]
        %v3118 = vld [vmem:[%s3092 + $0x64] sm:$0xf]
        %v3119 = vld [vmem:[%s3092 + $0x68] sm:$0xf]
        %v3120 = vld [vmem:[%s3092 + $0x6c] sm:$0xf]
        %v3121 = vld [vmem:[%s3092 + $0x70] sm:$0xf]
        %v3122 = vld [vmem:[%s3092 + $0x74] sm:$0xf]
        %v3123 = vld [vmem:[%s3092 + $0x78] sm:$0xf]
        %v3124 = vld [vmem:[%s3092 + $0x7c] sm:$0xf]
        %s3125 = scalar_lea.vmem %s6, 2
        %v3126 = vld [vmem:[%s3125] sm:$0x3]
        %v3127 = vperm.slane %v3126, 0
        %v3128 = vperm.slane %v3126, 1
        %v3129 = vsel %vm1036, %v3127, %v3128
        %v3130 = vsel %vm1037, %v3127, %v3128
        %v3131 = vsel %vm1038, %v3127, %v3128
        %v3132 = vsel %vm1039, %v3127, %v3128
        %v3133 = vsel %vm1040, %v3127, %v3128
        %v3134 = vsel %vm1041, %v3127, %v3128
        %v3135 = vsel %vm1042, %v3127, %v3128
        %v3136 = vsel %vm1043, %v3127, %v3128
        %v3137 = vsel %vm1044, %v3127, %v3128
        %v3138 = vsel %vm1045, %v3127, %v3128
        %v3139 = vsel %vm1046, %v3127, %v3128
        %v3140 = vsel %vm1047, %v3127, %v3128
        %v3173 = vunpack.c.l.b16 %v3093
        %v3174 = vunpack.c.l.b16 %v3094
        %v3175 = vunpack.c.l.b16 %v3095
        %v3176 = vunpack.c.l.b16 %v3096
        %v3177 = vunpack.c.l.b16 %v3097
        %v3178 = vunpack.c.l.b16 %v3098
        %v3179 = vunpack.c.l.b16 %v3099
        %v3180 = vunpack.c.l.b16 %v3100
        %v3181 = vunpack.c.l.b16 %v3101
        %v3182 = vunpack.c.l.b16 %v3102
        %v3183 = vunpack.c.l.b16 %v3103
        %v3184 = vunpack.c.l.b16 %v3104
        %v3185 = vunpack.c.l.b16 %v3105
        %v3186 = vunpack.c.l.b16 %v3106
        %v3187 = vunpack.c.l.b16 %v3107
        %v3188 = vunpack.c.l.b16 %v3108
        %v3189 = vunpack.c.l.b16 %v3109
        %v3190 = vunpack.c.l.b16 %v3110
        %v3191 = vunpack.c.l.b16 %v3111
        %v3192 = vunpack.c.l.b16 %v3112
        %v3193 = vunpack.c.l.b16 %v3113
        %v3194 = vunpack.c.l.b16 %v3114
        %v3195 = vunpack.c.l.b16 %v3115
        %v3196 = vunpack.c.l.b16 %v3116
        %v3197 = vunpack.c.l.b16 %v3117
        %v3198 = vunpack.c.l.b16 %v3118
        %v3199 = vunpack.c.l.b16 %v3119
        %v3200 = vunpack.c.l.b16 %v3120
        %v3201 = vunpack.c.l.b16 %v3121
        %v3202 = vunpack.c.l.b16 %v3122
        %v3203 = vunpack.c.l.b16 %v3123
        %v3204 = vunpack.c.l.b16 %v3124
        %v3205 = vpack.c.b16 %v3174, %v3173
        %v3206 = vpack.c.b16 %v3176, %v3175
        %v3207 = vpack.c.b16 %v3178, %v3177
        %v3208 = vpack.c.b16 %v3180, %v3179
        %v3209 = vpack.c.b16 %v3182, %v3181
        %v3210 = vpack.c.b16 %v3184, %v3183
        %v3211 = vpack.c.b16 %v3186, %v3185
        %v3212 = vpack.c.b16 %v3188, %v3187
        %v3213 = vpack.c.b16 %v3190, %v3189
        %v3214 = vpack.c.b16 %v3192, %v3191
        %v3215 = vpack.c.b16 %v3194, %v3193
        %v3216 = vpack.c.b16 %v3196, %v3195
        %v3217 = vpack.c.b16 %v3198, %v3197
        %v3218 = vpack.c.b16 %v3200, %v3199
        %v3219 = vpack.c.b16 %v3202, %v3201
        %v3220 = vpack.c.b16 %v3204, %v3203
        %3237 = vmatpush.bf16.msra.mxu0 %v3212
        %3238 = vmatpush.bf16.msra.mxu0 %v3211
        %3239 = vmatpush.bf16.msra.mxu0 %v3210
        %3240 = vmatpush.bf16.msra.mxu0 %v3209
        %3241 = vmatpush.bf16.msra.mxu0 %v3208
        %3242 = vmatpush.bf16.msra.mxu0 %v3207
        %3243 = vmatpush.bf16.msra.mxu0 %v3206
        %3244 = vmatpush.bf16.msra.mxu0 %v3205
        %3245 = vmatmul.bf16.gmra.mxu0 %v3044
        %v3246 = vpop.f32.mrf.mxu0
        %v3247 = vadd.f32 %v3129, %v3246
        %v3248 = vpop.f32.mrf.mxu0
        %v3249 = vadd.f32 %v3130, %v3248
        %3250 = vmatmul.bf16.gmra.mxu0 %v3045
        %v3251 = vpop.f32.mrf.mxu0
        %v3252 = vadd.f32 %v3131, %v3251
        %v3253 = vpop.f32.mrf.mxu0
        %v3254 = vadd.f32 %v3132, %v3253
        %3255 = vmatmul.bf16.gmra.mxu0 %v3046
        %v3256 = vpop.f32.mrf.mxu0
        %v3257 = vadd.f32 %v3133, %v3256
        %v3258 = vpop.f32.mrf.mxu0
        %v3259 = vadd.f32 %v3134, %v3258
        %3260 = vmatmul.bf16.gmra.mxu0 %v3047
        %v3261 = vpop.f32.mrf.mxu0
        %v3262 = vadd.f32 %v3135, %v3261
        %v3263 = vpop.f32.mrf.mxu0
        %v3264 = vadd.f32 %v3136, %v3263
        %3265 = vmatmul.bf16.gmra.mxu0 %v3048
        %v3266 = vpop.f32.mrf.mxu0
        %v3267 = vadd.f32 %v3137, %v3266
        %v3268 = vpop.f32.mrf.mxu0
        %v3269 = vadd.f32 %v3138, %v3268
        %3270 = vmatmul.bf16.gmra.mxu0 %v3049
        %v3271 = vpop.f32.mrf.mxu0
        %v3272 = vadd.f32 %v3139, %v3271
        %v3273 = vpop.f32.mrf.mxu0
        %v3274 = vadd.f32 %v3140, %v3273
        %3275 = vdwg.mxu0
        %3276 = vmatpush.bf16.msra.mxu0 %v3220
        %3277 = vmatpush.bf16.msra.mxu0 %v3219
        %3278 = vmatpush.bf16.msra.mxu0 %v3218
        %3279 = vmatpush.bf16.msra.mxu0 %v3217
        %3280 = vmatpush.bf16.msra.mxu0 %v3216
        %3281 = vmatpush.bf16.msra.mxu0 %v3215
        %3282 = vmatpush.bf16.msra.mxu0 %v3214
        %3283 = vmatpush.bf16.msra.mxu0 %v3213
        %3284 = vmatmul.bf16.gmra.mxu0 %v3080
        %v3285 = vpop.f32.mrf.mxu0
        %v3286 = vadd.f32 %v3247, %v3285
        %v3287 = vpop.f32.mrf.mxu0
        %v3288 = vadd.f32 %v3249, %v3287
        %3289 = vmatmul.bf16.gmra.mxu0 %v3081
        %v3290 = vpop.f32.mrf.mxu0
        %v3291 = vadd.f32 %v3252, %v3290
        %v3292 = vpop.f32.mrf.mxu0
        %v3293 = vadd.f32 %v3254, %v3292
        %3294 = vmatmul.bf16.gmra.mxu0 %v3082
        %v3295 = vpop.f32.mrf.mxu0
        %v3296 = vadd.f32 %v3257, %v3295
        %v3297 = vpop.f32.mrf.mxu0
        %v3298 = vadd.f32 %v3259, %v3297
        %3299 = vmatmul.bf16.gmra.mxu0 %v3083
        %v3300 = vpop.f32.mrf.mxu0
        %v3301 = vadd.f32 %v3262, %v3300
        %v3302 = vpop.f32.mrf.mxu0
        %v3303 = vadd.f32 %v3264, %v3302
        %3304 = vmatmul.bf16.gmra.mxu0 %v3084
        %v3305 = vpop.f32.mrf.mxu0
        %v3306 = vadd.f32 %v3267, %v3305
        %v3307 = vpop.f32.mrf.mxu0
        %v3308 = vadd.f32 %v3269, %v3307
        %3309 = vmatmul.bf16.gmra.mxu0 %v3085
        %v3310 = vpop.f32.mrf.mxu0
        %v3311 = vadd.f32 %v3272, %v3310
        %v3312 = vpop.f32.mrf.mxu0
        %v3313 = vadd.f32 %v3274, %v3312
        %3314 = vdwg.mxu0
        %v3315 = vpack.c.bf16 %v3288, %v3286
        %v3316 = vpack.c.bf16 %v3293, %v3291
        %v3317 = vpack.c.bf16 %v3298, %v3296
        %v3318 = vpack.c.bf16 %v3303, %v3301
        %v3319 = vpack.c.bf16 %v3308, %v3306
        %v3320 = vpack.c.bf16 %v3313, %v3311
        %3321 = vmatpush.bf16.msra.mxu0 0
        %3322 = vmatpush.bf16.msra.mxu0 0
        %3323 = vmatpush.bf16.msra.mxu0 %v3320
        %3324 = vmatpush.bf16.msra.mxu0 %v3319
        %3325 = vmatpush.bf16.msra.mxu0 %v3318
        %3326 = vmatpush.bf16.msra.mxu0 %v3317
        %3327 = vmatpush.bf16.msra.mxu0 %v3316
        %3328 = vmatpush.bf16.msra.mxu0 %v3315
        %3329 = vmatmul.bf16.gmra.mxu0 %v2044
        %v3330 = vpop.f32.mrf.mxu0
        %v3331 = vpop.f32.mrf.mxu0
        %3332 = vmatmul.bf16.gmra.mxu0 %v2047
        %v3333 = vpop.f32.mrf.mxu0
        %v3334 = vpop.f32.mrf.mxu0
        %3335 = vmatmul.bf16.gmra.mxu0 %v2050
        %v3336 = vpop.f32.mrf.mxu0
        %v3337 = vpop.f32.mrf.mxu0
        %3338 = vmatmul.bf16.gmra.mxu0 %v2053
        %v3339 = vpop.f32.mrf.mxu0
        %v3340 = vpop.f32.mrf.mxu0
        %3341 = vmatmul.bf16.gmra.mxu0 %v2056
        %v3342 = vpop.f32.mrf.mxu0
        %v3343 = vadd.f32 0.0, %v3342
        %v3344 = vpop.f32.mrf.mxu0
        %v3345 = vadd.f32 0.0, %v3344
        %3346 = vmatmul.bf16.gmra.mxu0 %v2059
        %v3347 = vpop.f32.mrf.mxu0
        %v3348 = vadd.f32 0.0, %v3347
        %v3349 = vpop.f32.mrf.mxu0
        %v3350 = vadd.f32 0.0, %v3349
        %3351 = vdwg.mxu0
        %v3352 = vadd.f32 %v2091, %v3343
        %v3353 = vadd.f32 %v2093, %v3345
        %v3354 = vadd.f32 %v2096, %v3348
        %v3355 = vadd.f32 %v2098, %v3350
        %v3356 = vpack.c.bf16 %v3353, %v3352
        %v3357 = vpack.c.bf16 %v3355, %v3354
        %v3358 = vld [vmem:[#allocation12] sm:$0xf]
        %v3359 = vld [vmem:[#allocation12 + $0x4] sm:$0xf]
        %v3360 = vld [vmem:[#allocation12 + $0x8] sm:$0xf]
        %v3361 = vld [vmem:[#allocation12 + $0xc] sm:$0xf]
        %v3362 = vld [vmem:[#allocation12 + $0x10] sm:$0xf]
        %v3363 = vld [vmem:[#allocation12 + $0x14] sm:$0xf]
        %v3364 = vld [vmem:[#allocation12 + $0x18] sm:$0xf]
        %v3365 = vld [vmem:[#allocation12 + $0x1c] sm:$0xf]
        %v3366 = vld [vmem:[#allocation12 + $0x20] sm:$0xf]
        %v3367 = vld [vmem:[#allocation12 + $0x24] sm:$0xf]
        %v3368 = vld [vmem:[#allocation12 + $0x28] sm:$0xf]
        %v3369 = vld [vmem:[#allocation12 + $0x2c] sm:$0xf]
        %v3370 = vld [vmem:[#allocation12 + $0x30] sm:$0xf]
        %v3371 = vld [vmem:[#allocation12 + $0x34] sm:$0xf]
        %v3372 = vld [vmem:[#allocation12 + $0x38] sm:$0xf]
        %v3373 = vld [vmem:[#allocation12 + $0x3c] sm:$0xf]
        %v3374 = vld [vmem:[%s8] sm:$0x1]
        %v3376 = vperm.slane %v3374, 0
        %v3394 = vunpack.c.l.b16 %v3358
        %v3395 = vunpack.c.l.b16 %v3359
        %v3396 = vunpack.c.l.b16 %v3360
        %v3397 = vunpack.c.l.b16 %v3361
        %v3398 = vunpack.c.l.b16 %v3362
        %v3399 = vunpack.c.l.b16 %v3363
        %v3400 = vunpack.c.l.b16 %v3364
        %v3401 = vunpack.c.l.b16 %v3365
        %v3402 = vunpack.c.l.b16 %v3366
        %v3403 = vunpack.c.l.b16 %v3367
        %v3404 = vunpack.c.l.b16 %v3368
        %v3405 = vunpack.c.l.b16 %v3369
        %v3406 = vunpack.c.l.b16 %v3370
        %v3407 = vunpack.c.l.b16 %v3371
        %v3408 = vunpack.c.l.b16 %v3372
        %v3409 = vunpack.c.l.b16 %v3373
        %v3410 = vpack.c.b16 %v3395, %v3394
        %v3411 = vpack.c.b16 %v3397, %v3396
        %v3412 = vpack.c.b16 %v3399, %v3398
        %v3413 = vpack.c.b16 %v3401, %v3400
        %v3414 = vpack.c.b16 %v3403, %v3402
        %v3415 = vpack.c.b16 %v3405, %v3404
        %v3416 = vpack.c.b16 %v3407, %v3406
        %v3417 = vpack.c.b16 %v3409, %v3408
        %3426 = vmatpush.bf16.msra.mxu0 %v3417
        %3427 = vmatpush.bf16.msra.mxu0 %v3416
        %3428 = vmatpush.bf16.msra.mxu0 %v3415
        %3429 = vmatpush.bf16.msra.mxu0 %v3414
        %3430 = vmatpush.bf16.msra.mxu0 %v3413
        %3431 = vmatpush.bf16.msra.mxu0 %v3412
        %3432 = vmatpush.bf16.msra.mxu0 %v3411
        %3433 = vmatpush.bf16.msra.mxu0 %v3410
        %3434 = vmatmul.bf16.gmra.mxu0 %v3356
        %v3435 = vpop.f32.mrf.mxu0
        %v3436 = vadd.f32 %v3376, %v3435
        %v3437 = vpop.f32.mrf.mxu0
        %v3438 = vadd.f32 %v3376, %v3437
        %3439 = vmatmul.bf16.gmra.mxu0 %v3357
        %v3440 = vpop.f32.mrf.mxu0
        %v3441 = vadd.f32 %v3376, %v3440
        %v3442 = vpop.f32.mrf.mxu0
        %v3443 = vadd.f32 %v3376, %v3442
        %3444 = vdwg.mxu0
        %v3445 = vmax.f32 %v3436, 0.0
        %v3446 = vmax.f32 %v3438, 0.0
        %v3447 = vmax.f32 %v3441, 0.0
        %v3448 = vmax.f32 %v3443, 0.0
        %v3449 = vld [vmem:[%s9] sm:$0x1]
        %v3451 = vperm.slane %v3449, 0
        %v3453 = vmul.f32 %v3445, %v3451
        %v3454 = vmul.f32 %v3446, %v3451
        %v3455 = vmul.f32 %v3447, %v3451
        %v3456 = vmul.f32 %v3448, %v3451
        %3457 = vadd.xlane.f32.xlu0 %v3453
        %v3458 = vpop.xlane.xlu0 %3457
        %3459 = vadd.xlane.f32.xlu0 %v3454
        %v3460 = vpop.xlane.xlu0 %3459
        %3461 = vadd.xlane.f32.xlu0 %v3455
        %v3462 = vpop.xlane.xlu0 %3461
        %3463 = vadd.xlane.f32.xlu0 %v3456
        %v3464 = vpop.xlane.xlu0 %3463
        %s3465 = sld [smem:[#allocation2]]
        %v3466 = vstv %s3465
        %v3467 = vadd.f32 %v3458, %v3466
        %v3468 = vadd.f32 %v3460, %v3466
        %v3469 = vadd.f32 %v3462, %v3466
        %v3470 = vadd.f32 %v3464, %v3466
        %v3471 = vxor.u32 %v3467, 2147483648
        %v3472 = vxor.u32 %v3468, 2147483648
        %v3473 = vxor.u32 %v3469, 2147483648
        %v3474 = vxor.u32 %v3470, 2147483648
        %v3475 = vmul.f32 %v3471, 1.442695
        %v3476 = vpow.pop %v3475
        %v3477 = vmul.f32 %v3472, 1.442695
        %v3478 = vpow.pop %v3477
        %v3479 = vmul.f32 %v3473, 1.442695
        %v3480 = vpow.pop %v3479
        %v3481 = vmul.f32 %v3474, 1.442695
        %v3482 = vpow.pop %v3481
        %v3483 = vadd.f32 %v3476, 1.0
        %v3484 = vadd.f32 %v3478, 1.0
        %v3485 = vadd.f32 %v3480, 1.0
        %v3486 = vadd.f32 %v3482, 1.0
        %v3487 = vrcp.pop %v3483
        %v3488 = vmul.f32 %v3483, %v3487
        %v3489 = vsub.f32 1.0, %v3488
        %v3490 = vmul.f32 %v3487, %v3489
        %v3491 = vadd.f32 %v3487, %v3490
        %vm3492 = vweird.f32 %v3483
        %vm3493 = vweird.f32 %v3487
        %vm3494 = vmor %vm3492, %vm3493
        %v3495 = vsel %vm3494, %v3487, %v3491
        %v3496 = vand.u32 2147483647, %v3483
        %vm3497 = vcmp.eq.f32.partialorder %v3496, 8.507059e+37
        %v3498 = vand.u32 %v3483, 2147483648
        %v3499 = vor.u32 1.1754944e-38, %v3498
        %v3500 = vsel %vm3497, %v3499, %v3495
        %v3501 = vmul.f32 1.0, %v3500
        %v3502 = vrcp.pop %v3484
        %v3503 = vmul.f32 %v3484, %v3502
        %v3504 = vsub.f32 1.0, %v3503
        %v3505 = vmul.f32 %v3502, %v3504
        %v3506 = vadd.f32 %v3502, %v3505
        %vm3507 = vweird.f32 %v3484
        %vm3508 = vweird.f32 %v3502
        %vm3509 = vmor %vm3507, %vm3508
        %v3510 = vsel %vm3509, %v3502, %v3506
        %v3511 = vand.u32 2147483647, %v3484
        %vm3512 = vcmp.eq.f32.partialorder %v3511, 8.507059e+37
        %v3513 = vand.u32 %v3484, 2147483648
        %v3514 = vor.u32 1.1754944e-38, %v3513
        %v3515 = vsel %vm3512, %v3514, %v3510
        %v3516 = vmul.f32 1.0, %v3515
        %v3517 = vrcp.pop %v3485
        %v3518 = vmul.f32 %v3485, %v3517
        %v3519 = vsub.f32 1.0, %v3518
        %v3520 = vmul.f32 %v3517, %v3519
        %v3521 = vadd.f32 %v3517, %v3520
        %vm3522 = vweird.f32 %v3485
        %vm3523 = vweird.f32 %v3517
        %vm3524 = vmor %vm3522, %vm3523
        %v3525 = vsel %vm3524, %v3517, %v3521
        %v3526 = vand.u32 2147483647, %v3485
        %vm3527 = vcmp.eq.f32.partialorder %v3526, 8.507059e+37
        %v3528 = vand.u32 %v3485, 2147483648
        %v3529 = vor.u32 1.1754944e-38, %v3528
        %v3530 = vsel %vm3527, %v3529, %v3525
        %v3531 = vmul.f32 1.0, %v3530
        %v3532 = vrcp.pop %v3486
        %v3533 = vmul.f32 %v3486, %v3532
        %v3534 = vsub.f32 1.0, %v3533
        %v3535 = vmul.f32 %v3532, %v3534
        %v3536 = vadd.f32 %v3532, %v3535
        %vm3537 = vweird.f32 %v3486
        %vm3538 = vweird.f32 %v3532
        %vm3539 = vmor %vm3537, %vm3538
        %v3540 = vsel %vm3539, %v3532, %v3536
        %v3541 = vand.u32 2147483647, %v3486
        %vm3542 = vcmp.eq.f32.partialorder %v3541, 8.507059e+37
        %v3543 = vand.u32 %v3486, 2147483648
        %v3544 = vor.u32 1.1754944e-38, %v3543
        %v3545 = vsel %vm3542, %v3544, %v3540
        %v3546 = vmul.f32 1.0, %v3545
        %3547 = vst [vmem:[%s526] sm:$0xff] %v3501
        %3548 = vst [vmem:[%s526 + $0x8] sm:$0xff] %v3516
        %3549 = vst [vmem:[%s526 + $0x10] sm:$0xff] %v3531
        %3550 = vst [vmem:[%s526 + $0x18] sm:$0xff] %v3546
        %s3551 = sand.u32 %s288, 1
        %s3552 = scalar_lea.sflag [#allocation5], %s3551
        %s3553 = sand.u32 %s288, 1
        %s3554 = smul.addr %s3553, 32
        %s3555 = scalar_lea.vmem [#allocation14], %s3554
        // Predicated region
        $region89: #{tpu_custom_call.1} parent=63 // pred_check
          %p3556 = pneg %p298
        $region90: #{tpu_custom_call.1} parent=63 // pred_check_branch
          %3558 = sbr.rel (%p3556) target = $region92
        $region91: #{tpu_custom_call.1} parent=63 // pred_region
          %3560 = vsyncadd %s3552, 0
          %s3561 = smul.addr %s34, 4
          %s3562 = smul.addr %s3561, 8
          %s3563 = scalar_lea.hbm %s11, %s3562
          %s3564 = sshll.u32 %s3555, 4
          %s3565 = int_to_ptr.vmem [resolvable:$true] %s3564
          %s3566 = sshll.u32 %s3563, 4
          %s3567 = int_to_ptr.hbm [resolvable:$true] %s3566
          %3572 = dma.vmem_to_hbm [thread:$0]  %s3565, 512, %s3567, %s3552, 128, 128, 8
        $region92: #{tpu_custom_call.1} parent=63 // pred_fallthru
          _
      $region64: #{tpu_custom_call.1} parent=5 // pred_fallthru
        _
      %p3573 = scmp.le.s32.totalorder 2, %s29
      // Predicated region
      $region93: #{tpu_custom_call.1} parent=5 // pred_check
        %p3574 = pneg %p3573
      $region94: #{tpu_custom_call.1} parent=5 // pred_check_branch
        %3576 = sbr.rel (%p3574) target = $region96
      $region95: #{tpu_custom_call.1} parent=5 // pred_region
        %s3577 = ssub.s32 %s29, 2
        // Predicated region
        $region97: #{tpu_custom_call.1} parent=95 // pred_check
          %p3578 = pneg %p304
        $region98: #{tpu_custom_call.1} parent=95 // pred_check_branch
          %3580 = sbr.rel (%p3578) target = $region100
        $region99: #{tpu_custom_call.1} parent=95 // pred_region
          %s3581 = sand.u32 %s289, 1
          %s3582 = scalar_lea.sflag [#allocation5], %s3581
          %s3583 = sand.u32 %s289, 1
          %s3584 = smul.addr %s3583, 32
          %s3585 = scalar_lea.vmem [#allocation14], %s3584
          %3587 = dma.done %s3582, 512
        $region100: #{tpu_custom_call.1} parent=95 // pred_fallthru
          _
      $region96: #{tpu_custom_call.1} parent=5 // pred_fallthru
        _
    $region6: #{tpu_custom_call.1} parent=1 // loop_footer
      %s33 = sadd.s32 1, %s29
    $region7: #{tpu_custom_call.1} parent=1 // loop_footer_branch
      %28 = sbr.rel target = $region3
    $region8: #{tpu_custom_call.1} parent=1 // loop_exit
      _
    %3588 = vsyncpa [#allocation4], 1
    %s3589 = scalar_lea.sflag [#allocation4], 1
    %3590 = vsyncpa %s3589, 1
    %3591 = vsyncpa [#allocation7], 1
    %s3592 = scalar_lea.sflag [#allocation7], 1
    %3593 = vsyncpa %s3592, 1
    %3594 = vsyncpa [#allocation10], 1
    %3595 = vsyncpa [#allocation13], 1
    %3596 = vsyncpa [#allocation5], 1
    %s3597 = scalar_lea.sflag [#allocation5], 1
    %3598 = vsyncpa %s3597, 1

</llo_original>
